<compile_context>
chip_gen: v5e
topology: v5e:2x2
jax: 0.10.0
libtpu: 0.0.40
codegen_flags: <defaults>
</compile_context>

<pallas_src>
import functools

import jax
import jax.numpy as jnp
from jax.experimental import pallas as pl
from jax.experimental.pallas import tpu as pltpu

_BN_EPS = 1e-3
_VMEM_LIMIT = 32 * 1024 * 1024  # conservative: fits v5e/v6e/v7x scoped VMEM


def _round_up(x, m):
    return (x + m - 1) // m * m


def _compiler_params():
    return pltpu.CompilerParams(
        dimension_semantics=("parallel",),
        vmem_limit_bytes=_VMEM_LIMIT)


# ------------------------------------------------------------------ kernels

def _mm_bn_relu_kernel(a_ref, w_ref, s_ref, b_ref, o_ref):
    # (TM, K) @ (K, C) on the MXU (bf16 in, f32 acc), folded-BN affine + ReLU.
    acc = jnp.dot(a_ref[...], w_ref[...], preferred_element_type=jnp.float32)
    y = jnp.maximum(acc * s_ref[...] + b_ref[...], 0.0)
    o_ref[...] = y.astype(o_ref.dtype)


def _tail_kernel(res_scale,
                 p1_ref, p2_ref, head_ref, x_ref,
                 w1_ref, s1_ref, b1_ref,
                 w2_ref, s2_ref, b2_ref,
                 wf_ref, bf_ref, o_ref):
    # branch1 second conv (3x3 via im2col patches) + BN + ReLU
    x1 = jnp.maximum(
        jnp.dot(p1_ref[...], w1_ref[...], preferred_element_type=jnp.float32)
        * s1_ref[...] + b1_ref[...], 0.0)
    # branch2 third conv (3x3 via im2col patches) + BN + ReLU
    x2 = jnp.maximum(
        jnp.dot(p2_ref[...], w2_ref[...], preferred_element_type=jnp.float32)
        * s2_ref[...] + b2_ref[...], 0.0)
    # Final 1x1 conv over the *virtual* concat [x0 | x1 | x2] expressed as
    # three row-sliced dots against conv2d_w -> no HBM concat is ever built.
    x0 = head_ref[:, 0:32]                       # x0 lives in head columns 0:32
    acc = jnp.dot(x0, wf_ref[0:32, :], preferred_element_type=jnp.float32)
    acc += jnp.dot(x1.astype(jnp.bfloat16), wf_ref[32:64, :],
                   preferred_element_type=jnp.float32)
    acc += jnp.dot(x2.astype(jnp.bfloat16), wf_ref[64:128, :],
                   preferred_element_type=jnp.float32)
    y = (acc + bf_ref[...]) * res_scale + x_ref[...]
    o_ref[...] = jnp.maximum(y, 0.0)


# ----------------------------------------------------------------- wrappers

def matmul_bn_relu(a, w, s, b, *, tm, out_dtype=jnp.bfloat16):
    """a: (Mp, K) with Mp % tm == 0 ; w: (K, C) ; s/b: (1, C)."""
    Mp, K = a.shape
    C = w.shape[1]
    return pl.pallas_call(
        _mm_bn_relu_kernel,
        grid=(Mp // tm,),
        in_specs=[
            pl.BlockSpec((tm, K), lambda i: (i, 0)),
            pl.BlockSpec((K, C), lambda i: (0, 0)),
            pl.BlockSpec((1, C), lambda i: (0, 0)),
            pl.BlockSpec((1, C), lambda i: (0, 0)),
        ],
        out_specs=pl.BlockSpec((tm, C), lambda i: (i, 0)),
        out_shape=jax.ShapeDtypeStruct((Mp, C), out_dtype),
        compiler_params=_compiler_params(),
    )(a, w, s, b)


def tail_fused(p1, p2, head, x_res, w1, s1, b1, w2, s2, b2, wf, bf,
               *, res_scale, tm):
    Mp, k1 = p1.shape
    k2 = p2.shape[1]
    kernel = functools.partial(_tail_kernel, float(res_scale))

    def const(shape):
        return pl.BlockSpec(shape, lambda i: (0, 0))

    return pl.pallas_call(
        kernel,
        grid=(Mp // tm,),
        in_specs=[
            pl.BlockSpec((tm, k1), lambda i: (i, 0)),
            pl.BlockSpec((tm, k2), lambda i: (i, 0)),
            pl.BlockSpec((tm, 128), lambda i: (i, 0)),
            pl.BlockSpec((tm, 320), lambda i: (i, 0)),
            const(w1.shape), const(s1.shape), const(b1.shape),
            const(w2.shape), const(s2.shape), const(b2.shape),
            const(wf.shape), const(bf.shape),
        ],
        out_specs=pl.BlockSpec((tm, 320), lambda i: (i, 0)),
        out_shape=jax.ShapeDtypeStruct((Mp, 320), jnp.float32),
        compiler_params=_compiler_params(),
    )(p1, p2, head, x_res, w1, s1, b1, w2, s2, b2, wf, bf)


def im2col_3x3(x_nhwc):
    """'same' (pad=1) 3x3 patches: (N,H,W,C) -> (N*H*W, 9*C); (kh,kw,cin) order."""
    N, H, W, C = x_nhwc.shape
    xp = jnp.pad(x_nhwc, ((0, 0), (1, 1), (1, 1), (0, 0)))
    patches = [xp[:, dy:dy + H, dx:dx + W, :]
               for dy in range(3) for dx in range(3)]
    return jnp.concatenate(patches, axis=-1).reshape(N * H * W, 9 * C)


# --------------------------------------------------------------- parameters

def make_basic_params(key, cin, cout, k):
    """Conv (no bias) + BatchNorm params, with BN folded into scale/bias."""
    kw, kg, kb, km, kv = jax.random.split(key, 5)
    w = jax.random.normal(kw, (cout, cin, k, k), jnp.float32) * 0.05   # OIHW
    gamma = 1.0 + 0.1 * jax.random.normal(kg, (cout,), jnp.float32)
    beta = 0.1 * jax.random.normal(kb, (cout,), jnp.float32)
    mean = 0.1 * jax.random.normal(km, (cout,), jnp.float32)
    var = 0.5 + 0.1 * jnp.abs(jax.random.normal(kv, (cout,), jnp.float32))
    s = gamma / jnp.sqrt(var + _BN_EPS)
    b = beta - mean * s
    wf = jnp.transpose(w, (2, 3, 1, 0)).reshape(k * k * cin, cout)  # HWIO flat
    return {
        "raw": (w, gamma, beta, mean, var),
        "wf": wf,                                # f32 flat (fusion / reference)
        "w": wf.astype(jnp.bfloat16),            # MXU operand
        "s": s.reshape(1, cout),
        "b": b.reshape(1, cout),
    }


def fuse_heads(p0, p10, p20, pad_to=128):
    """Concatenate the three 1x1 branch-head convs into one lane-dense matmul."""
    w = jnp.concatenate([p0["wf"], p10["wf"], p20["wf"]], axis=1)   # (320, 96)
    s = jnp.concatenate([p0["s"], p10["s"], p20["s"]], axis=1)
    b = jnp.concatenate([p0["b"], p10["b"], p20["b"]], axis=1)
    pad = pad_to - w.shape[1]
    w = jnp.pad(w, ((0, 0), (0, pad)))
    s = jnp.pad(s, ((0, 0), (0, pad)), constant_values=1.0)
    b = jnp.pad(b, ((0, 0), (0, pad)))
    return w.astype(jnp.bfloat16), s, b


# ----------------------------------------------------------------- Block35

def block35_forward(x_nchw, params, res_scale=1.0, tm=256):
    x = jnp.transpose(x_nchw, (0, 2, 3, 1)).astype(jnp.float32)   # NHWC
    N, H, W, C = x.shape
    M = N * H * W
    tm = min(tm, _round_up(M, 8))          # M-tile (multiple of 8, VMEM-safe on v7x)
    Mp = _round_up(M, tm)                  # pad M so the grid is exact

    def pad_rows(a):
        if a.shape[0] == Mp:
            return a
        return jnp.pad(a, ((0, Mp - a.shape[0]), (0, 0)))

    x_flat = x.reshape(M, C)
    x_bf = pad_rows(x_flat).astype(jnp.bfloat16)

    # fused branch heads: columns [x0 | b1a | b2a | zero-pad], 128-wide output
    head = matmul_bn_relu(x_bf, params["head_w"], params["head_s"],
                          params["head_b"], tm=tm)
    b1a = head[:M, 32:64].reshape(N, H, W, 32)
    b2a = head[:M, 64:96].reshape(N, H, W, 32)

    # branch2 middle 3x3 conv (32 -> 48)
    p2a = pad_rows(im2col_3x3(b2a))
    b2b = matmul_bn_relu(p2a, params["b2_1"]["w"], params["b2_1"]["s"],
                         params["b2_1"]["b"], tm=tm)
    b2b_sp = b2b[:M].reshape(N, H, W, 48)

    # fused tail: b1_1 3x3 + b2_2 3x3 + concat-free final 1x1 + residual + ReLU
    p1 = pad_rows(im2col_3x3(b1a))
    p2 = pad_rows(im2col_3x3(b2b_sp))
    x_res = pad_rows(x_flat)

    out = tail_fused(
        p1, p2, head, x_res,
        params["b1_1"]["w"], params["b1_1"]["s"], params["b1_1"]["b"],
        params["b2_2"]["w"], params["b2_2"]["s"], params["b2_2"]["b"],
        params["conv2d_w_bf16"], params["conv2d_b"],
        res_scale=res_scale, tm=tm)

    out = out[:M].reshape(N, H, W, C)
    return jnp.transpose(out, (0, 3, 1, 2))   # back to NCHW


# --------------------------------------------------------- pure-JAX reference

def _ref_basic(x_nhwc, p, padding):
    w, gamma, beta, mean, var = p["raw"]
    w_hwio = jnp.transpose(w, (2, 3, 1, 0))
    y = jax.lax.conv_general_dilated(
        x_nhwc, w_hwio, (1, 1), padding,
        dimension_numbers=("NHWC", "HWIO", "NHWC"))
    y = (y - mean) / jnp.sqrt(var + _BN_EPS) * gamma + beta
    return jnp.maximum(y, 0.0)


def ref_block35(x_nchw, params, res_scale=1.0):
    x = jnp.transpose(x_nchw, (0, 2, 3, 1)).astype(jnp.float32)
    same = [(1, 1), (1, 1)]
    x0 = _ref_basic(x, params["b0"], "VALID")
    x1 = _ref_basic(_ref_basic(x, params["b1_0"], "VALID"), params["b1_1"], same)
    x2 = _ref_basic(
        _ref_basic(_ref_basic(x, params["b2_0"], "VALID"), params["b2_1"], same),
        params["b2_2"], same)
    cat = jnp.concatenate([x0, x1, x2], axis=-1)
    out = jnp.einsum("nhwk,kc->nhwc", cat, params["conv2d_w"]) + params["conv2d_b"]
    out = jnp.maximum(out * res_scale + x, 0.0)
    return jnp.transpose(out, (0, 3, 1, 2))


# -------------------------------------------------------------------- main

if __name__ == "__main__":
    key = jax.random.PRNGKey(0)
    keys = jax.random.split(key, 9)

    params = {
        "b0":   make_basic_params(keys[0], 320, 32, 1),
        "b1_0": make_basic_params(keys[1], 320, 32, 1),
        "b1_1": make_basic_params(keys[2], 32, 32, 3),
        "b2_0": make_basic_params(keys[3], 320, 32, 1),
        "b2_1": make_basic_params(keys[4], 32, 48, 3),
        "b2_2": make_basic_params(keys[5], 48, 64, 3),
    }
    hw, hs, hb = fuse_heads(params["b0"], params["b1_0"], params["b2_0"])
    params["head_w"], params["head_s"], params["head_b"] = hw, hs, hb

    # final 1x1 conv WITH bias: torch weight (320, 128, 1, 1) -> (128, 320)
    conv2d_w_oihw = jax.random.normal(keys[6], (320, 128, 1, 1), jnp.float32) * 0.05
    params["conv2d_w"] = jnp.transpose(conv2d_w_oihw[:, :, 0, 0], (1, 0))
    params["conv2d_w_bf16"] = params["conv2d_w"].astype(jnp.bfloat16)
    params["conv2d_b"] = (0.1 * jax.random.normal(keys[7], (320,), jnp.float32)
                          ).reshape(1, 320)

    # module requires 320 input channels; keep spatial small (NCHW like torch)
    x = jax.random.normal(keys[8], (2, 320, 16, 16), jnp.float32)

    res_scale = 1.0  # Block35 default scale
    fwd = jax.jit(lambda xx: block35_forward(xx, params, res_scale))
    out = jax.block_until_ready(fwd(x))

    ref = ref_block35(x, params, res_scale)
    assert out.shape == x.shape
    max_err = float(jnp.max(jnp.abs(out - ref)))
    assert jnp.allclose(out, ref, atol=1e-1, rtol=1e-1), f"mismatch, max|diff|={max_err}"

    print("KERNEL_OK")
</pallas_src>

<mosaic_0001>
module attributes {stable_mosaic.version = 11 : i64} {
  func.func @_mm_bn_relu_kernel(%arg0: i32, %arg1: memref<256x320xbf16, #tpu.memory_space<vmem>>, %arg2: memref<320x128xbf16, #tpu.memory_space<vmem>>, %arg3: memref<1x128xf32, #tpu.memory_space<vmem>>, %arg4: memref<1x128xf32, #tpu.memory_space<vmem>>, %arg5: memref<256x128xbf16, #tpu.memory_space<vmem>>) attributes {dimension_semantics = [#tpu.dimension_semantics<parallel>], iteration_bounds = array<i64: 2>, scalar_prefetch = 0 : i64, scratch_operands = 0 : i64, tpu.core_type = #tpu.core_type<tc>, window_params = [{transform_indices = @transform_0, window_bounds = array<i64: 256, 320>}, {pipeline_mode = #tpu.pipeline_mode<synchronous>, transform_indices = @transform_1, window_bounds = array<i64: 320, 128>}, {pipeline_mode = #tpu.pipeline_mode<synchronous>, transform_indices = @transform_2, window_bounds = array<i64: 1, 128>}, {pipeline_mode = #tpu.pipeline_mode<synchronous>, transform_indices = @transform_3, window_bounds = array<i64: 1, 128>}, {transform_indices = @transform_4, window_bounds = array<i64: 256, 128>}]} {
    %c0 = arith.constant 0 : index
    %c0_0 = arith.constant 0 : index
    %0 = vector.load %arg1[%c0, %c0_0] : memref<256x320xbf16, #tpu.memory_space<vmem>>, vector<256x320xbf16>
    %c0_1 = arith.constant 0 : index
    %c0_2 = arith.constant 0 : index
    %1 = vector.load %arg2[%c0_1, %c0_2] : memref<320x128xbf16, #tpu.memory_space<vmem>>, vector<320x128xbf16>
    %cst = arith.constant dense<0.000000e+00> : vector<256x128xf32>
    %2 = tpu.matmul %0, %1, %cst {dimension_numbers = #tpu.dot_dimension_numbers<[1], [0], [0], [1], [0, 0, 1, 1], [], []>} : vector<256x320xbf16>, vector<320x128xbf16>, vector<256x128xf32> -> vector<256x128xf32>
    %c0_3 = arith.constant 0 : index
    %c0_4 = arith.constant 0 : index
    %3 = vector.load %arg3[%c0_3, %c0_4] : memref<1x128xf32, #tpu.memory_space<vmem>>, vector<1x128xf32>
    %4 = vector.broadcast %3 : vector<1x128xf32> to vector<256x128xf32>
    %5 = arith.mulf %2, %4 : vector<256x128xf32>
    %c0_5 = arith.constant 0 : index
    %c0_6 = arith.constant 0 : index
    %6 = vector.load %arg4[%c0_5, %c0_6] : memref<1x128xf32, #tpu.memory_space<vmem>>, vector<1x128xf32>
    %7 = vector.broadcast %6 : vector<1x128xf32> to vector<256x128xf32>
    %8 = arith.addf %5, %7 : vector<256x128xf32>
    %cst_7 = arith.constant 0.000000e+00 : f32
    %9 = vector.broadcast %cst_7 : f32 to vector<256x128xf32>
    %10 = arith.maximumf %8, %9 : vector<256x128xf32>
    %11 = arith.truncf %10 : vector<256x128xf32> to vector<256x128xbf16>
    %c0_8 = arith.constant 0 : index
    %c0_9 = arith.constant 0 : index
    %12 = vector.load %arg5[%c0_8, %c0_9] : memref<256x128xbf16, #tpu.memory_space<vmem>>, vector<256x128xbf16>
    tpu.vector_store %arg5[%c0_8, %c0_9], %11 {strides = array<i32>} : memref<256x128xbf16, #tpu.memory_space<vmem>>, vector<256x128xbf16>,
    return
  }
  func.func @transform_0(%arg0: i32) -> (i32, i32) {
    %c0_i32 = arith.constant 0 : i32
    %c0_i32_0 = arith.constant 0 : i32
    return %arg0, %c0_i32 : i32, i32
  }
  func.func @transform_1(%arg0: i32) -> (i32, i32) {
    %c0_i32 = arith.constant 0 : i32
    %c0_i32_0 = arith.constant 0 : i32
    %c0_i32_1 = arith.constant 0 : i32
    return %c0_i32, %c0_i32_0 : i32, i32
  }
  func.func @transform_2(%arg0: i32) -> (i32, i32) {
    %c0_i32 = arith.constant 0 : i32
    %c0_i32_0 = arith.constant 0 : i32
    %c0_i32_1 = arith.constant 0 : i32
    return %c0_i32, %c0_i32_0 : i32, i32
  }
  func.func @transform_3(%arg0: i32) -> (i32, i32) {
    %c0_i32 = arith.constant 0 : i32
    %c0_i32_0 = arith.constant 0 : i32
    %c0_i32_1 = arith.constant 0 : i32
    return %c0_i32, %c0_i32_0 : i32, i32
  }
  func.func @transform_4(%arg0: i32) -> (i32, i32) {
    %c0_i32 = arith.constant 0 : i32
    %c0_i32_0 = arith.constant 0 : i32
    return %arg0, %c0_i32 : i32, i32
  }
}

module attributes {stable_mosaic.version = 11 : i64} {
  func.func @_mm_bn_relu_kernel(%arg0: i32, %arg1: memref<256x288xbf16, #tpu.memory_space<vmem>>, %arg2: memref<288x48xbf16, #tpu.memory_space<vmem>>, %arg3: memref<1x48xf32, #tpu.memory_space<vmem>>, %arg4: memref<1x48xf32, #tpu.memory_space<vmem>>, %arg5: memref<256x48xbf16, #tpu.memory_space<vmem>>) attributes {dimension_semantics = [#tpu.dimension_semantics<parallel>], iteration_bounds = array<i64: 2>, scalar_prefetch = 0 : i64, scratch_operands = 0 : i64, tpu.core_type = #tpu.core_type<tc>, window_params = [{transform_indices = @transform_0, window_bounds = array<i64: 256, 288>}, {pipeline_mode = #tpu.pipeline_mode<synchronous>, transform_indices = @transform_1, window_bounds = array<i64: 288, 48>}, {pipeline_mode = #tpu.pipeline_mode<synchronous>, transform_indices = @transform_2, window_bounds = array<i64: 1, 48>}, {pipeline_mode = #tpu.pipeline_mode<synchronous>, transform_indices = @transform_3, window_bounds = array<i64: 1, 48>}, {transform_indices = @transform_4, window_bounds = array<i64: 256, 48>}]} {
    %c0 = arith.constant 0 : index
    %c0_0 = arith.constant 0 : index
    %0 = vector.load %arg1[%c0, %c0_0] : memref<256x288xbf16, #tpu.memory_space<vmem>>, vector<256x288xbf16>
    %c0_1 = arith.constant 0 : index
    %c0_2 = arith.constant 0 : index
    %1 = vector.load %arg2[%c0_1, %c0_2] : memref<288x48xbf16, #tpu.memory_space<vmem>>, vector<288x48xbf16>
    %cst = arith.constant dense<0.000000e+00> : vector<256x48xf32>
    %2 = tpu.matmul %0, %1, %cst {dimension_numbers = #tpu.dot_dimension_numbers<[1], [0], [0], [1], [0, 0, 1, 1], [], []>} : vector<256x288xbf16>, vector<288x48xbf16>, vector<256x48xf32> -> vector<256x48xf32>
    %c0_3 = arith.constant 0 : index
    %c0_4 = arith.constant 0 : index
    %3 = vector.load %arg3[%c0_3, %c0_4] : memref<1x48xf32, #tpu.memory_space<vmem>>, vector<1x48xf32>
    %4 = vector.broadcast %3 : vector<1x48xf32> to vector<256x48xf32>
    %5 = arith.mulf %2, %4 : vector<256x48xf32>
    %c0_5 = arith.constant 0 : index
    %c0_6 = arith.constant 0 : index
    %6 = vector.load %arg4[%c0_5, %c0_6] : memref<1x48xf32, #tpu.memory_space<vmem>>, vector<1x48xf32>
    %7 = vector.broadcast %6 : vector<1x48xf32> to vector<256x48xf32>
    %8 = arith.addf %5, %7 : vector<256x48xf32>
    %cst_7 = arith.constant 0.000000e+00 : f32
    %9 = vector.broadcast %cst_7 : f32 to vector<256x48xf32>
    %10 = arith.maximumf %8, %9 : vector<256x48xf32>
    %11 = arith.truncf %10 : vector<256x48xf32> to vector<256x48xbf16>
    %c0_8 = arith.constant 0 : index
    %c0_9 = arith.constant 0 : index
    %12 = vector.load %arg5[%c0_8, %c0_9] : memref<256x48xbf16, #tpu.memory_space<vmem>>, vector<256x48xbf16>
    tpu.vector_store %arg5[%c0_8, %c0_9], %11 {strides = array<i32>} : memref<256x48xbf16, #tpu.memory_space<vmem>>, vector<256x48xbf16>,
    return
  }
  func.func @transform_0(%arg0: i32) -> (i32, i32) {
    %c0_i32 = arith.constant 0 : i32
    %c0_i32_0 = arith.constant 0 : i32
    return %arg0, %c0_i32 : i32, i32
  }
  func.func @transform_1(%arg0: i32) -> (i32, i32) {
    %c0_i32 = arith.constant 0 : i32
    %c0_i32_0 = arith.constant 0 : i32
    %c0_i32_1 = arith.constant 0 : i32
    return %c0_i32, %c0_i32_0 : i32, i32
  }
  func.func @transform_2(%arg0: i32) -> (i32, i32) {
    %c0_i32 = arith.constant 0 : i32
    %c0_i32_0 = arith.constant 0 : i32
    %c0_i32_1 = arith.constant 0 : i32
    return %c0_i32, %c0_i32_0 : i32, i32
  }
  func.func @transform_3(%arg0: i32) -> (i32, i32) {
    %c0_i32 = arith.constant 0 : i32
    %c0_i32_0 = arith.constant 0 : i32
    %c0_i32_1 = arith.constant 0 : i32
    return %c0_i32, %c0_i32_0 : i32, i32
  }
  func.func @transform_4(%arg0: i32) -> (i32, i32) {
    %c0_i32 = arith.constant 0 : i32
    %c0_i32_0 = arith.constant 0 : i32
    return %arg0, %c0_i32 : i32, i32
  }
}

module attributes {stable_mosaic.version = 11 : i64} {
  func.func @_tail_kernel(%arg0: i32, %arg1: memref<256x288xbf16, #tpu.memory_space<vmem>>, %arg2: memref<256x432xbf16, #tpu.memory_space<vmem>>, %arg3: memref<256x128xbf16, #tpu.memory_space<vmem>>, %arg4: memref<256x320xf32, #tpu.memory_space<vmem>>, %arg5: memref<288x32xbf16, #tpu.memory_space<vmem>>, %arg6: memref<1x32xf32, #tpu.memory_space<vmem>>, %arg7: memref<1x32xf32, #tpu.memory_space<vmem>>, %arg8: memref<432x64xbf16, #tpu.memory_space<vmem>>, %arg9: memref<1x64xf32, #tpu.memory_space<vmem>>, %arg10: memref<1x64xf32, #tpu.memory_space<vmem>>, %arg11: memref<128x320xbf16, #tpu.memory_space<vmem>>, %arg12: memref<1x320xf32, #tpu.memory_space<vmem>>, %arg13: memref<256x320xf32, #tpu.memory_space<vmem>>) attributes {dimension_semantics = [#tpu.dimension_semantics<parallel>], iteration_bounds = array<i64: 2>, scalar_prefetch = 0 : i64, scratch_operands = 0 : i64, tpu.core_type = #tpu.core_type<tc>, window_params = [{transform_indices = @transform_0, window_bounds = array<i64: 256, 288>}, {transform_indices = @transform_1, window_bounds = array<i64: 256, 432>}, {transform_indices = @transform_2, window_bounds = array<i64: 256, 128>}, {transform_indices = @transform_3, window_bounds = array<i64: 256, 320>}, {pipeline_mode = #tpu.pipeline_mode<synchronous>, transform_indices = @transform_4, window_bounds = array<i64: 288, 32>}, {pipeline_mode = #tpu.pipeline_mode<synchronous>, transform_indices = @transform_5, window_bounds = array<i64: 1, 32>}, {pipeline_mode = #tpu.pipeline_mode<synchronous>, transform_indices = @transform_6, window_bounds = array<i64: 1, 32>}, {pipeline_mode = #tpu.pipeline_mode<synchronous>, transform_indices = @transform_7, window_bounds = array<i64: 432, 64>}, {pipeline_mode = #tpu.pipeline_mode<synchronous>, transform_indices = @transform_8, window_bounds = array<i64: 1, 64>}, {pipeline_mode = #tpu.pipeline_mode<synchronous>, transform_indices = @transform_9, window_bounds = array<i64: 1, 64>}, {pipeline_mode = #tpu.pipeline_mode<synchronous>, transform_indices = @transform_10, window_bounds = array<i64: 128, 320>}, {pipeline_mode = #tpu.pipeline_mode<synchronous>, transform_indices = @transform_11, window_bounds = array<i64: 1, 320>}, {transform_indices = @transform_12, window_bounds = array<i64: 256, 320>}]} {
    %c0 = arith.constant 0 : index
    %c0_0 = arith.constant 0 : index
    %0 = vector.load %arg1[%c0, %c0_0] : memref<256x288xbf16, #tpu.memory_space<vmem>>, vector<256x288xbf16>
    %c0_1 = arith.constant 0 : index
    %c0_2 = arith.constant 0 : index
    %1 = vector.load %arg5[%c0_1, %c0_2] : memref<288x32xbf16, #tpu.memory_space<vmem>>, vector<288x32xbf16>
    %cst = arith.constant dense<0.000000e+00> : vector<256x32xf32>
    %2 = tpu.matmul %0, %1, %cst {dimension_numbers = #tpu.dot_dimension_numbers<[1], [0], [0], [1], [0, 0, 1, 1], [], []>} : vector<256x288xbf16>, vector<288x32xbf16>, vector<256x32xf32> -> vector<256x32xf32>
    %c0_3 = arith.constant 0 : index
    %c0_4 = arith.constant 0 : index
    %3 = vector.load %arg6[%c0_3, %c0_4] : memref<1x32xf32, #tpu.memory_space<vmem>>, vector<1x32xf32>
    %4 = vector.broadcast %3 : vector<1x32xf32> to vector<256x32xf32>
    %5 = arith.mulf %2, %4 : vector<256x32xf32>
    %c0_5 = arith.constant 0 : index
    %c0_6 = arith.constant 0 : index
    %6 = vector.load %arg7[%c0_5, %c0_6] : memref<1x32xf32, #tpu.memory_space<vmem>>, vector<1x32xf32>
    %7 = vector.broadcast %6 : vector<1x32xf32> to vector<256x32xf32>
    %8 = arith.addf %5, %7 : vector<256x32xf32>
    %cst_7 = arith.constant 0.000000e+00 : f32
    %9 = vector.broadcast %cst_7 : f32 to vector<256x32xf32>
    %10 = arith.maximumf %8, %9 : vector<256x32xf32>
    %c0_8 = arith.constant 0 : index
    %c0_9 = arith.constant 0 : index
    %11 = vector.load %arg2[%c0_8, %c0_9] : memref<256x432xbf16, #tpu.memory_space<vmem>>, vector<256x432xbf16>
    %c0_10 = arith.constant 0 : index
    %c0_11 = arith.constant 0 : index
    %12 = vector.load %arg8[%c0_10, %c0_11] : memref<432x64xbf16, #tpu.memory_space<vmem>>, vector<432x64xbf16>
    %cst_12 = arith.constant dense<0.000000e+00> : vector<256x64xf32>
    %13 = tpu.matmul %11, %12, %cst_12 {dimension_numbers = #tpu.dot_dimension_numbers<[1], [0], [0], [1], [0, 0, 1, 1], [], []>} : vector<256x432xbf16>, vector<432x64xbf16>, vector<256x64xf32> -> vector<256x64xf32>
    %c0_13 = arith.constant 0 : index
    %c0_14 = arith.constant 0 : index
    %14 = vector.load %arg9[%c0_13, %c0_14] : memref<1x64xf32, #tpu.memory_space<vmem>>, vector<1x64xf32>
    %15 = vector.broadcast %14 : vector<1x64xf32> to vector<256x64xf32>
    %16 = arith.mulf %13, %15 : vector<256x64xf32>
    %c0_15 = arith.constant 0 : index
    %c0_16 = arith.constant 0 : index
    %17 = vector.load %arg10[%c0_15, %c0_16] : memref<1x64xf32, #tpu.memory_space<vmem>>, vector<1x64xf32>
    %18 = vector.broadcast %17 : vector<1x64xf32> to vector<256x64xf32>
    %19 = arith.addf %16, %18 : vector<256x64xf32>
    %cst_17 = arith.constant 0.000000e+00 : f32
    %20 = vector.broadcast %cst_17 : f32 to vector<256x64xf32>
    %21 = arith.maximumf %19, %20 : vector<256x64xf32>
    %c0_18 = arith.constant 0 : index
    %c0_19 = arith.constant 0 : index
    %22 = vector.load %arg3[%c0_18, %c0_19] : memref<256x128xbf16, #tpu.memory_space<vmem>>, vector<256x32xbf16>
    %c0_20 = arith.constant 0 : index
    %c0_21 = arith.constant 0 : index
    %23 = vector.load %arg11[%c0_20, %c0_21] : memref<128x320xbf16, #tpu.memory_space<vmem>>, vector<32x320xbf16>
    %cst_22 = arith.constant dense<0.000000e+00> : vector<256x320xf32>
    %24 = tpu.matmul %22, %23, %cst_22 {dimension_numbers = #tpu.dot_dimension_numbers<[1], [0], [0], [1], [0, 0, 1, 1], [], []>} : vector<256x32xbf16>, vector<32x320xbf16>, vector<256x320xf32> -> vector<256x320xf32>
    %25 = arith.truncf %10 : vector<256x32xf32> to vector<256x32xbf16>
    %c32 = arith.constant 32 : index
    %c0_23 = arith.constant 0 : index
    %26 = vector.load %arg11[%c32, %c0_23] : memref<128x320xbf16, #tpu.memory_space<vmem>>, vector<32x320xbf16>
    %cst_24 = arith.constant dense<0.000000e+00> : vector<256x320xf32>
    %27 = tpu.matmul %25, %26, %cst_24 {dimension_numbers = #tpu.dot_dimension_numbers<[1], [0], [0], [1], [0, 0, 1, 1], [], []>} : vector<256x32xbf16>, vector<32x320xbf16>, vector<256x320xf32> -> vector<256x320xf32>
    %28 = arith.addf %24, %27 : vector<256x320xf32>
    %29 = arith.truncf %21 : vector<256x64xf32> to vector<256x64xbf16>
    %c64 = arith.constant 64 : index
    %c0_25 = arith.constant 0 : index
    %30 = vector.load %arg11[%c64, %c0_25] : memref<128x320xbf16, #tpu.memory_space<vmem>>, vector<64x320xbf16>
    %cst_26 = arith.constant dense<0.000000e+00> : vector<256x320xf32>
    %31 = tpu.matmul %29, %30, %cst_26 {dimension_numbers = #tpu.dot_dimension_numbers<[1], [0], [0], [1], [0, 0, 1, 1], [], []>} : vector<256x64xbf16>, vector<64x320xbf16>, vector<256x320xf32> -> vector<256x320xf32>
    %32 = arith.addf %28, %31 : vector<256x320xf32>
    %c0_27 = arith.constant 0 : index
    %c0_28 = arith.constant 0 : index
    %33 = vector.load %arg12[%c0_27, %c0_28] : memref<1x320xf32, #tpu.memory_space<vmem>>, vector<1x320xf32>
    %34 = vector.broadcast %33 : vector<1x320xf32> to vector<256x320xf32>
    %35 = arith.addf %32, %34 : vector<256x320xf32>
    %cst_29 = arith.constant 1.000000e+00 : f32
    %36 = vector.broadcast %cst_29 : f32 to vector<256x320xf32>
    %37 = arith.mulf %35, %36 : vector<256x320xf32>
    %c0_30 = arith.constant 0 : index
    %c0_31 = arith.constant 0 : index
    %38 = vector.load %arg4[%c0_30, %c0_31] : memref<256x320xf32, #tpu.memory_space<vmem>>, vector<256x320xf32>
    %39 = arith.addf %37, %38 : vector<256x320xf32>
    %cst_32 = arith.constant 0.000000e+00 : f32
    %40 = vector.broadcast %cst_32 : f32 to vector<256x320xf32>
    %41 = arith.maximumf %39, %40 : vector<256x320xf32>
    %c0_33 = arith.constant 0 : index
    %c0_34 = arith.constant 0 : index
    %42 = vector.load %arg13[%c0_33, %c0_34] : memref<256x320xf32, #tpu.memory_space<vmem>>, vector<256x320xf32>
    tpu.vector_store %arg13[%c0_33, %c0_34], %41 {strides = array<i32>} : memref<256x320xf32, #tpu.memory_space<vmem>>, vector<256x320xf32>,
    return
  }
  func.func @transform_0(%arg0: i32) -> (i32, i32) {
    %c0_i32 = arith.constant 0 : i32
    %c0_i32_0 = arith.constant 0 : i32
    return %arg0, %c0_i32 : i32, i32
  }
  func.func @transform_1(%arg0: i32) -> (i32, i32) {
    %c0_i32 = arith.constant 0 : i32
    %c0_i32_0 = arith.constant 0 : i32
    return %arg0, %c0_i32 : i32, i32
  }
  func.func @transform_2(%arg0: i32) -> (i32, i32) {
    %c0_i32 = arith.constant 0 : i32
    %c0_i32_0 = arith.constant 0 : i32
    return %arg0, %c0_i32 : i32, i32
  }
  func.func @transform_3(%arg0: i32) -> (i32, i32) {
    %c0_i32 = arith.constant 0 : i32
    %c0_i32_0 = arith.constant 0 : i32
    return %arg0, %c0_i32 : i32, i32
  }
  func.func @transform_4(%arg0: i32) -> (i32, i32) {
    %c0_i32 = arith.constant 0 : i32
    %c0_i32_0 = arith.constant 0 : i32
    %c0_i32_1 = arith.constant 0 : i32
    return %c0_i32, %c0_i32_0 : i32, i32
  }
  func.func @transform_5(%arg0: i32) -> (i32, i32) {
    %c0_i32 = arith.constant 0 : i32
    %c0_i32_0 = arith.constant 0 : i32
    %c0_i32_1 = arith.constant 0 : i32
    return %c0_i32, %c0_i32_0 : i32, i32
  }
  func.func @transform_6(%arg0: i32) -> (i32, i32) {
    %c0_i32 = arith.constant 0 : i32
    %c0_i32_0 = arith.constant 0 : i32
    %c0_i32_1 = arith.constant 0 : i32
    return %c0_i32, %c0_i32_0 : i32, i32
  }
  func.func @transform_7(%arg0: i32) -> (i32, i32) {
    %c0_i32 = arith.constant 0 : i32
    %c0_i32_0 = arith.constant 0 : i32
    %c0_i32_1 = arith.constant 0 : i32
    return %c0_i32, %c0_i32_0 : i32, i32
  }
  func.func @transform_8(%arg0: i32) -> (i32, i32) {
    %c0_i32 = arith.constant 0 : i32
    %c0_i32_0 = arith.constant 0 : i32
    %c0_i32_1 = arith.constant 0 : i32
    return %c0_i32, %c0_i32_0 : i32, i32
  }
  func.func @transform_9(%arg0: i32) -> (i32, i32) {
    %c0_i32 = arith.constant 0 : i32
    %c0_i32_0 = arith.constant 0 : i32
    %c0_i32_1 = arith.constant 0 : i32
    return %c0_i32, %c0_i32_0 : i32, i32
  }
  func.func @transform_10(%arg0: i32) -> (i32, i32) {
    %c0_i32 = arith.constant 0 : i32
    %c0_i32_0 = arith.constant 0 : i32
    %c0_i32_1 = arith.constant 0 : i32
    return %c0_i32, %c0_i32_0 : i32, i32
  }
  func.func @transform_11(%arg0: i32) -> (i32, i32) {
    %c0_i32 = arith.constant 0 : i32
    %c0_i32_0 = arith.constant 0 : i32
    %c0_i32_1 = arith.constant 0 : i32
    return %c0_i32, %c0_i32_0 : i32, i32
  }
  func.func @transform_12(%arg0: i32) -> (i32, i32) {
    %c0_i32 = arith.constant 0 : i32
    %c0_i32_0 = arith.constant 0 : i32
    return %arg0, %c0_i32 : i32, i32
  }
}

</mosaic_0001>

<llo_original>
// kernel: _lambda_.3
$region0: #{_lambda_.3}
  #allocation0 [shape = 'u32[]', space=smem, size = 0x4, offset = 0x4, fixed_abs, tag = 'smem constant byte address 0x4 - core index']
  #allocation1 [shape = 'u32[72,128]{1,0:T(1,128)}', space=vmem, size = 0x9000, scoped, tag = 'internal scratch']
  %s0 = inlined_call_operand.vmem [shape: bf16[512,320], index: 0, kind: input, shape index: {}]
  %s1 = inlined_call_operand.vmem [shape: bf16[320,128], index: 1, kind: input, shape index: {}]
  %s2 = inlined_call_operand.vmem [shape: f32[1,128], index: 2, kind: input, shape index: {}]
  %s3 = inlined_call_operand.vmem [shape: f32[1,128], index: 3, kind: input, shape index: {}]
  %s4 = inlined_call_operand.vmem [shape: bf16[512,128], index: 4, kind: output, shape index: {}]
  %s5 = sld [smem:[#allocation0]]
  $region49: #{_lambda_.3} parent=0
    _
  %s7 = ssub.s32 1, %s5
  %s8 = scalar_select 0, %s7, %s5
  loop: start=0, step=1, limit=4
  $region2: #{_lambda_.3} parent=0 // loop_pre_header
    _
  $region3: #{_lambda_.3} parent=0 // loop_header
    %s10 = sphi 0, %s14
    %p11 = scmp.ge.s32.totalorder %s10, 4
    %s20 = sphi 0, %s22
    %s23 = sphi 0, %s20
    %s24 = sphi 0, %s23
    %s40 = sphi 0, %s24
    %s44 = sphi 0, %s44
    %s46 = sphi 0, %s44
    %s47 = sphi 0, %s46
    %s61 = sphi 0, %s47
    %s65 = sphi 0, %s65
    %s67 = sphi 0, %s65
    %s68 = sphi 0, %s67
    %s82 = sphi 0, %s68
    %s86 = sphi 0, %s86
    %s88 = sphi 0, %s86
    %s89 = sphi 0, %s88
    %s103 = sphi 0, %s89
    %s109 = sphi 0, %s111
    %s112 = sphi 0, %s109
    %s113 = sphi 0, %s112
    %s129 = sphi 0, %s113
  $region4: #{_lambda_.3} parent=0 // loop_header_branch
    %13 = sbr.rel (%p11) target = $region8
  $region5: #{_lambda_.3} parent=0 // loop_body
    %s15 = ssub.s32 %s10, 1
    %s16 = ssub.s32 %s10, 2
    %s17 = sadd.s32 %s10, 1
    %s18 = ssub.s32 %s10, %s17
    %p19 = scmp.eq.s32.totalorder %s18, 0
    %s21 = sadd.s32 %s20, 1
    %s22 = scalar_select %p19, %s20, %s21
    %p25 = pneg %p19
    %p26 = scmp.eq.s32.totalorder %s10, 1
    %p27 = por %p25, %p26
    %p28 = scmp.ne.s32.totalorder %s20, %s23
    %p29 = scmp.eq.s32.totalorder %s10, 0
    %p30 = por %p28, %p29
    %p31 = scmp.ne.s32.totalorder %s20, %s23
    %p32 = scmp.eq.s32.totalorder %s15, 1
    %p33 = por %p31, %p32
    %p34 = scmp.ne.s32.totalorder %s23, %s24
    %p35 = scmp.eq.s32.totalorder %s15, 0
    %p36 = por %p34, %p35
    %p37 = scmp.ne.s32.totalorder %s23, %s24
    %p38 = scmp.eq.s32.totalorder %s16, 1
    %p39 = por %p37, %p38
    %p41 = scmp.ne.s32.totalorder %s24, %s40
    %p42 = scmp.eq.s32.totalorder %s16, 0
    %p43 = por %p41, %p42
    %s45 = sadd.s32 %s44, 1
    %p48 = scmp.eq.s32.totalorder %s10, 1
    %p49 = scmp.ne.s32.totalorder %s44, %s46
    %p50 = scmp.eq.s32.totalorder %s10, 0
    %p51 = por %p49, %p50
    %p52 = scmp.ne.s32.totalorder %s44, %s46
    %p53 = scmp.eq.s32.totalorder %s15, 1
    %p54 = por %p52, %p53
    %p55 = scmp.ne.s32.totalorder %s46, %s47
    %p56 = scmp.eq.s32.totalorder %s15, 0
    %p57 = por %p55, %p56
    %p58 = scmp.ne.s32.totalorder %s46, %s47
    %p59 = scmp.eq.s32.totalorder %s16, 1
    %p60 = por %p58, %p59
    %p62 = scmp.ne.s32.totalorder %s47, %s61
    %p63 = scmp.eq.s32.totalorder %s16, 0
    %p64 = por %p62, %p63
    %s66 = sadd.s32 %s65, 1
    %p69 = scmp.eq.s32.totalorder %s10, 1
    %p70 = scmp.ne.s32.totalorder %s65, %s67
    %p71 = scmp.eq.s32.totalorder %s10, 0
    %p72 = por %p70, %p71
    %p73 = scmp.ne.s32.totalorder %s65, %s67
    %p74 = scmp.eq.s32.totalorder %s15, 1
    %p75 = por %p73, %p74
    %p76 = scmp.ne.s32.totalorder %s67, %s68
    %p77 = scmp.eq.s32.totalorder %s15, 0
    %p78 = por %p76, %p77
    %p79 = scmp.ne.s32.totalorder %s67, %s68
    %p80 = scmp.eq.s32.totalorder %s16, 1
    %p81 = por %p79, %p80
    %p83 = scmp.ne.s32.totalorder %s68, %s82
    %p84 = scmp.eq.s32.totalorder %s16, 0
    %p85 = por %p83, %p84
    %s87 = sadd.s32 %s86, 1
    %p90 = scmp.eq.s32.totalorder %s10, 1
    %p91 = scmp.ne.s32.totalorder %s86, %s88
    %p92 = scmp.eq.s32.totalorder %s10, 0
    %p93 = por %p91, %p92
    %p94 = scmp.ne.s32.totalorder %s86, %s88
    %p95 = scmp.eq.s32.totalorder %s15, 1
    %p96 = por %p94, %p95
    %p97 = scmp.ne.s32.totalorder %s88, %s89
    %p98 = scmp.eq.s32.totalorder %s15, 0
    %p99 = por %p97, %p98
    %p100 = scmp.ne.s32.totalorder %s88, %s89
    %p101 = scmp.eq.s32.totalorder %s16, 1
    %p102 = por %p100, %p101
    %p104 = scmp.ne.s32.totalorder %s89, %s103
    %p105 = scmp.eq.s32.totalorder %s16, 0
    %p106 = por %p104, %p105
    %s107 = ssub.s32 %s10, %s17
    %p108 = scmp.eq.s32.totalorder %s107, 0
    %s110 = sadd.s32 %s109, 1
    %s111 = scalar_select %p108, %s109, %s110
    %p114 = pneg %p108
    %p115 = scmp.eq.s32.totalorder %s10, 1
    %p116 = por %p114, %p115
    %p117 = scmp.ne.s32.totalorder %s109, %s112
    %p118 = scmp.eq.s32.totalorder %s10, 0
    %p119 = por %p117, %p118
    %p120 = scmp.ne.s32.totalorder %s109, %s112
    %p121 = scmp.eq.s32.totalorder %s15, 1
    %p122 = por %p120, %p121
    %p123 = scmp.ne.s32.totalorder %s112, %s113
    %p124 = scmp.eq.s32.totalorder %s15, 0
    %p125 = por %p123, %p124
    %p126 = scmp.ne.s32.totalorder %s112, %s113
    %p127 = scmp.eq.s32.totalorder %s16, 1
    %p128 = por %p126, %p127
    %p130 = scmp.ne.s32.totalorder %s113, %s129
    %p131 = scmp.eq.s32.totalorder %s16, 0
    %p132 = por %p130, %p131
    %p133 = scmp.le.s32.totalorder 1, %s10
    %p134 = scmp.lt.s32.totalorder %s10, 3
    %p135 = pnand %p133, %p134
    %p136 = pneg %p135
    // Predicated region
    $region9: #{_lambda_.3} parent=5 // pred_check
      _
    $region10: #{_lambda_.3} parent=5 // pred_check_branch
      %138 = sbr.rel (%p135) target = $region12
    $region11: #{_lambda_.3} parent=5 // pred_region
      %s139 = ssub.s32 %s10, 1
      // Predicated region
      $region13: #{_lambda_.3} parent=11 // pred_check
        %p140 = pneg %p57
      $region14: #{_lambda_.3} parent=11 // pred_check_branch
        %142 = sbr.rel (%p140) target = $region16
      $region15: #{_lambda_.3} parent=11 // pred_region
        _
      $region16: #{_lambda_.3} parent=11 // pred_fallthru
        _
      // Predicated region
      $region17: #{_lambda_.3} parent=11 // pred_check
        %p143 = pneg %p78
      $region18: #{_lambda_.3} parent=11 // pred_check_branch
        %145 = sbr.rel (%p143) target = $region20
      $region19: #{_lambda_.3} parent=11 // pred_region
        _
      $region20: #{_lambda_.3} parent=11 // pred_fallthru
        _
      // Predicated region
      $region21: #{_lambda_.3} parent=11 // pred_check
        %p146 = pneg %p99
      $region22: #{_lambda_.3} parent=11 // pred_check_branch
        %148 = sbr.rel (%p146) target = $region24
      $region23: #{_lambda_.3} parent=11 // pred_region
        _
      $region24: #{_lambda_.3} parent=11 // pred_fallthru
        _
    $region12: #{_lambda_.3} parent=5 // pred_fallthru
      _
    %p149 = scmp.lt.s32.totalorder %s10, 2
    // Predicated region
    $region25: #{_lambda_.3} parent=5 // pred_check
      %p150 = pneg %p149
    $region26: #{_lambda_.3} parent=5 // pred_check_branch
      %152 = sbr.rel (%p150) target = $region28
    $region27: #{_lambda_.3} parent=5 // pred_region
      // Predicated region
      $region29: #{_lambda_.3} parent=27 // pred_check
        %p153 = pneg %p30
      $region30: #{_lambda_.3} parent=27 // pred_check_branch
        %155 = sbr.rel (%p153) target = $region32
      $region31: #{_lambda_.3} parent=27 // pred_region
        %s156 = smul.u32 32, %s10
        %p157 = scmp.lt.s32.totalorder %s156, 63
        %s158 = scalar_select %p157, %s156, 63
        %s159 = smul.addr %s158, 3
        %s160 = smul.addr %s159, 4
        %s161 = scalar_lea.vmem %s0, %s160
        %s162 = smul.u32 32, %s10
      $region32: #{_lambda_.3} parent=27 // pred_fallthru
        _
    $region28: #{_lambda_.3} parent=5 // pred_fallthru
      _
    %p163 = scmp.le.s32.totalorder 1, %s10
    %p164 = scmp.lt.s32.totalorder %s10, 3
    %p165 = pnand %p163, %p164
    %p166 = pneg %p165
    // Predicated region
    $region33: #{_lambda_.3} parent=5 // pred_check
      _
    $region34: #{_lambda_.3} parent=5 // pred_check_branch
      %168 = sbr.rel (%p165) target = $region36
    $region35: #{_lambda_.3} parent=5 // pred_region
      %s169 = ssub.s32 %s10, 1
      %s170 = smul.u32 32, %s15
      %p171 = scmp.lt.s32.totalorder %s170, 63
      %s172 = scalar_select %p171, %s170, 63
      %s173 = smul.addr %s172, 3
      %s174 = smul.addr %s173, 4
      %s175 = scalar_lea.vmem %s0, %s174
      %p176 = pneg %p36
      %p177 = pneg %p33
      %p178 = pneg %p57
      %p179 = pneg %p54
      %p180 = pneg %p78
      %p181 = pneg %p75
      %p182 = pneg %p99
      %p183 = pneg %p96
      %p184 = pneg %p125
      %p185 = pneg %p122
      %s186 = smul.u32 32, %s15
      %p187 = scmp.lt.s32.totalorder %s186, 63
      %s188 = scalar_select %p187, %s186, 63
      %s189 = smul.addr %s188, 4
      %s190 = scalar_lea.vmem %s4, %s189
      %s191 = smul.u32 32, %s15
      %p192 = scmp.lt.s32.totalorder %s191, 63
      %s193 = scalar_select %p192, %s191, 63
      %s194 = smul.addr %s193, 3
      %s195 = smul.addr %s194, 4
      %s196 = scalar_lea.vmem %s0, %s195
      %s197 = smul.u32 32, %s15
      %s198 = smul.u32 32, %s15
      %p199 = scmp.lt.s32.totalorder %s198, 63
      %s200 = scalar_select %p199, %s198, 63
      %s201 = smul.addr %s200, 4
      %s202 = scalar_lea.vmem %s4, %s201
      %s203 = smul.u32 32, %s15
      %v205 = vld [vmem:[%s196] sm:$0xff]
      %v206 = vld [vmem:[%s196 + $0x8] sm:$0xf]
      %v207 = vld [vmem:[%s196 + $0xc] sm:$0xff]
      %v208 = vld [vmem:[%s196 + $0x14] sm:$0xf]
      %v209 = vld [vmem:[%s196 + $0x18] sm:$0xff]
      %v210 = vld [vmem:[%s196 + $0x20] sm:$0xf]
      %v211 = vld [vmem:[%s196 + $0x24] sm:$0xff]
      %v212 = vld [vmem:[%s196 + $0x2c] sm:$0xf]
      %v213 = vld [vmem:[%s196 + $0x30] sm:$0xff]
      %v214 = vld [vmem:[%s196 + $0x38] sm:$0xf]
      %v215 = vld [vmem:[%s196 + $0x3c] sm:$0xff]
      %v216 = vld [vmem:[%s196 + $0x44] sm:$0xf]
      %v217 = vld [vmem:[%s196 + $0x48] sm:$0xff]
      %v218 = vld [vmem:[%s196 + $0x50] sm:$0xf]
      %v219 = vld [vmem:[%s196 + $0x54] sm:$0xff]
      %v220 = vld [vmem:[%s196 + $0x5c] sm:$0xf]
      %v221 = vld [vmem:[%s196 + $0x60] sm:$0xff]
      %v222 = vld [vmem:[%s196 + $0x68] sm:$0xf]
      %v223 = vld [vmem:[%s196 + $0x6c] sm:$0xff]
      %v224 = vld [vmem:[%s196 + $0x74] sm:$0xf]
      %v225 = vld [vmem:[%s196 + $0x78] sm:$0xff]
      %v226 = vld [vmem:[%s196 + $0x80] sm:$0xf]
      %v227 = vld [vmem:[%s196 + $0x84] sm:$0xff]
      %v228 = vld [vmem:[%s196 + $0x8c] sm:$0xf]
      %v229 = vld [vmem:[%s196 + $0x90] sm:$0xff]
      %v230 = vld [vmem:[%s196 + $0x98] sm:$0xf]
      %v231 = vld [vmem:[%s196 + $0x9c] sm:$0xff]
      %v232 = vld [vmem:[%s196 + $0xa4] sm:$0xf]
      %v233 = vld [vmem:[%s196 + $0xa8] sm:$0xff]
      %v234 = vld [vmem:[%s196 + $0xb0] sm:$0xf]
      %v235 = vld [vmem:[%s196 + $0xb4] sm:$0xff]
      %v236 = vld [vmem:[%s196 + $0xbc] sm:$0xf]
      %v237 = vld [vmem:[%s196 + $0xc0] sm:$0xff]
      %v238 = vld [vmem:[%s196 + $0xc8] sm:$0xf]
      %v239 = vld [vmem:[%s196 + $0xcc] sm:$0xff]
      %v240 = vld [vmem:[%s196 + $0xd4] sm:$0xf]
      %v241 = vld [vmem:[%s196 + $0xd8] sm:$0xff]
      %v242 = vld [vmem:[%s196 + $0xe0] sm:$0xf]
      %v243 = vld [vmem:[%s196 + $0xe4] sm:$0xff]
      %v244 = vld [vmem:[%s196 + $0xec] sm:$0xf]
      %v245 = vld [vmem:[%s196 + $0xf0] sm:$0xff]
      %v246 = vld [vmem:[%s196 + $0xf8] sm:$0xf]
      %v247 = vld [vmem:[%s196 + $0xfc] sm:$0xff]
      %v248 = vld [vmem:[%s196 + $0x104] sm:$0xf]
      %v249 = vld [vmem:[%s196 + $0x108] sm:$0xff]
      %v250 = vld [vmem:[%s196 + $0x110] sm:$0xf]
      %v251 = vld [vmem:[%s196 + $0x114] sm:$0xff]
      %v252 = vld [vmem:[%s196 + $0x11c] sm:$0xf]
      %v253 = vld [vmem:[%s196 + $0x120] sm:$0xff]
      %v254 = vld [vmem:[%s196 + $0x128] sm:$0xf]
      %v255 = vld [vmem:[%s196 + $0x12c] sm:$0xff]
      %v256 = vld [vmem:[%s196 + $0x134] sm:$0xf]
      %v257 = vld [vmem:[%s196 + $0x138] sm:$0xff]
      %v258 = vld [vmem:[%s196 + $0x140] sm:$0xf]
      %v259 = vld [vmem:[%s196 + $0x144] sm:$0xff]
      %v260 = vld [vmem:[%s196 + $0x14c] sm:$0xf]
      %v261 = vld [vmem:[%s196 + $0x150] sm:$0xff]
      %v262 = vld [vmem:[%s196 + $0x158] sm:$0xf]
      %v263 = vld [vmem:[%s196 + $0x15c] sm:$0xff]
      %v264 = vld [vmem:[%s196 + $0x164] sm:$0xf]
      %v265 = vld [vmem:[%s196 + $0x168] sm:$0xff]
      %v266 = vld [vmem:[%s196 + $0x170] sm:$0xf]
      %v267 = vld [vmem:[%s196 + $0x174] sm:$0xff]
      %v268 = vld [vmem:[%s196 + $0x17c] sm:$0xf]
      %v269 = vld [vmem:[%s1] sm:$0xf]
      %v270 = vld [vmem:[%s1 + $0x4] sm:$0xf]
      %v271 = vld [vmem:[%s1 + $0x8] sm:$0xf]
      %v272 = vld [vmem:[%s1 + $0xc] sm:$0xf]
      %v273 = vld [vmem:[%s1 + $0x10] sm:$0xf]
      %v274 = vld [vmem:[%s1 + $0x14] sm:$0xf]
      %v275 = vld [vmem:[%s1 + $0x18] sm:$0xf]
      %v276 = vld [vmem:[%s1 + $0x1c] sm:$0xf]
      %v277 = vld [vmem:[%s1 + $0x20] sm:$0xf]
      %v278 = vld [vmem:[%s1 + $0x24] sm:$0xf]
      %v279 = vld [vmem:[%s1 + $0x28] sm:$0xf]
      %v280 = vld [vmem:[%s1 + $0x2c] sm:$0xf]
      %v281 = vld [vmem:[%s1 + $0x30] sm:$0xf]
      %v282 = vld [vmem:[%s1 + $0x34] sm:$0xf]
      %v283 = vld [vmem:[%s1 + $0x38] sm:$0xf]
      %v284 = vld [vmem:[%s1 + $0x3c] sm:$0xf]
      %v285 = vld [vmem:[%s1 + $0x40] sm:$0xf]
      %v286 = vld [vmem:[%s1 + $0x44] sm:$0xf]
      %v287 = vld [vmem:[%s1 + $0x48] sm:$0xf]
      %v288 = vld [vmem:[%s1 + $0x4c] sm:$0xf]
      %v289 = vld [vmem:[%s1 + $0x50] sm:$0xf]
      %v290 = vld [vmem:[%s1 + $0x54] sm:$0xf]
      %v291 = vld [vmem:[%s1 + $0x58] sm:$0xf]
      %v292 = vld [vmem:[%s1 + $0x5c] sm:$0xf]
      %v293 = vld [vmem:[%s1 + $0x60] sm:$0xf]
      %v294 = vld [vmem:[%s1 + $0x64] sm:$0xf]
      %v295 = vld [vmem:[%s1 + $0x68] sm:$0xf]
      %v296 = vld [vmem:[%s1 + $0x6c] sm:$0xf]
      %v297 = vld [vmem:[%s1 + $0x70] sm:$0xf]
      %v298 = vld [vmem:[%s1 + $0x74] sm:$0xf]
      %v299 = vld [vmem:[%s1 + $0x78] sm:$0xf]
      %v300 = vld [vmem:[%s1 + $0x7c] sm:$0xf]
      %v301 = vld [vmem:[%s1 + $0x80] sm:$0xf]
      %v302 = vld [vmem:[%s1 + $0x84] sm:$0xf]
      %v303 = vld [vmem:[%s1 + $0x88] sm:$0xf]
      %v304 = vld [vmem:[%s1 + $0x8c] sm:$0xf]
      %v305 = vld [vmem:[%s1 + $0x90] sm:$0xf]
      %v306 = vld [vmem:[%s1 + $0x94] sm:$0xf]
      %v307 = vld [vmem:[%s1 + $0x98] sm:$0xf]
      %v308 = vld [vmem:[%s1 + $0x9c] sm:$0xf]
      %v373 = vunpack.c.l.b16 %v205
      %v374 = vunpack.c.h.b16 %v205
      %v375 = vunpack.c.l.b16 %v206
      %v376 = vunpack.c.l.b16 %v207
      %v377 = vunpack.c.h.b16 %v207
      %v378 = vunpack.c.l.b16 %v208
      %v379 = vunpack.c.l.b16 %v209
      %v380 = vunpack.c.h.b16 %v209
      %v381 = vunpack.c.l.b16 %v210
      %v382 = vunpack.c.l.b16 %v211
      %v383 = vunpack.c.h.b16 %v211
      %v384 = vunpack.c.l.b16 %v212
      %v385 = vunpack.c.l.b16 %v213
      %v386 = vunpack.c.h.b16 %v213
      %v387 = vunpack.c.l.b16 %v214
      %v388 = vunpack.c.l.b16 %v215
      %v389 = vunpack.c.h.b16 %v215
      %v390 = vunpack.c.l.b16 %v216
      %v391 = vunpack.c.l.b16 %v217
      %v392 = vunpack.c.h.b16 %v217
      %v393 = vunpack.c.l.b16 %v218
      %v394 = vunpack.c.l.b16 %v219
      %v395 = vunpack.c.h.b16 %v219
      %v396 = vunpack.c.l.b16 %v220
      %v397 = vunpack.c.l.b16 %v221
      %v398 = vunpack.c.h.b16 %v221
      %v399 = vunpack.c.l.b16 %v222
      %v400 = vunpack.c.l.b16 %v223
      %v401 = vunpack.c.h.b16 %v223
      %v402 = vunpack.c.l.b16 %v224
      %v403 = vunpack.c.l.b16 %v225
      %v404 = vunpack.c.h.b16 %v225
      %v405 = vunpack.c.l.b16 %v226
      %v406 = vunpack.c.l.b16 %v227
      %v407 = vunpack.c.h.b16 %v227
      %v408 = vunpack.c.l.b16 %v228
      %v409 = vunpack.c.l.b16 %v229
      %v410 = vunpack.c.h.b16 %v229
      %v411 = vunpack.c.l.b16 %v230
      %v412 = vunpack.c.l.b16 %v231
      %v413 = vunpack.c.h.b16 %v231
      %v414 = vunpack.c.l.b16 %v232
      %v415 = vunpack.c.l.b16 %v233
      %v416 = vunpack.c.h.b16 %v233
      %v417 = vunpack.c.l.b16 %v234
      %v418 = vunpack.c.l.b16 %v235
      %v419 = vunpack.c.h.b16 %v235
      %v420 = vunpack.c.l.b16 %v236
      %v421 = vunpack.c.l.b16 %v237
      %v422 = vunpack.c.h.b16 %v237
      %v423 = vunpack.c.l.b16 %v238
      %v424 = vunpack.c.l.b16 %v239
      %v425 = vunpack.c.h.b16 %v239
      %v426 = vunpack.c.l.b16 %v240
      %v427 = vunpack.c.l.b16 %v241
      %v428 = vunpack.c.h.b16 %v241
      %v429 = vunpack.c.l.b16 %v242
      %v430 = vunpack.c.l.b16 %v243
      %v431 = vunpack.c.h.b16 %v243
      %v432 = vunpack.c.l.b16 %v244
      %v433 = vunpack.c.l.b16 %v245
      %v434 = vunpack.c.h.b16 %v245
      %v435 = vunpack.c.l.b16 %v246
      %v436 = vunpack.c.l.b16 %v247
      %v437 = vunpack.c.h.b16 %v247
      %v438 = vunpack.c.l.b16 %v248
      %v439 = vunpack.c.l.b16 %v249
      %v440 = vunpack.c.h.b16 %v249
      %v441 = vunpack.c.l.b16 %v250
      %v442 = vunpack.c.l.b16 %v251
      %v443 = vunpack.c.h.b16 %v251
      %v444 = vunpack.c.l.b16 %v252
      %v445 = vunpack.c.l.b16 %v253
      %v446 = vunpack.c.h.b16 %v253
      %v447 = vunpack.c.l.b16 %v254
      %v448 = vunpack.c.l.b16 %v255
      %v449 = vunpack.c.h.b16 %v255
      %v450 = vunpack.c.l.b16 %v256
      %v451 = vunpack.c.l.b16 %v257
      %v452 = vunpack.c.h.b16 %v257
      %v453 = vunpack.c.l.b16 %v258
      %v454 = vunpack.c.l.b16 %v259
      %v455 = vunpack.c.h.b16 %v259
      %v456 = vunpack.c.l.b16 %v260
      %v457 = vunpack.c.l.b16 %v261
      %v458 = vunpack.c.h.b16 %v261
      %v459 = vunpack.c.l.b16 %v262
      %v460 = vunpack.c.l.b16 %v263
      %v461 = vunpack.c.h.b16 %v263
      %v462 = vunpack.c.l.b16 %v264
      %v463 = vunpack.c.l.b16 %v265
      %v464 = vunpack.c.h.b16 %v265
      %v465 = vunpack.c.l.b16 %v266
      %v466 = vunpack.c.l.b16 %v267
      %v467 = vunpack.c.h.b16 %v267
      %v468 = vunpack.c.l.b16 %v268
      %v469 = vpack.c.b16 %v376, %v373
      %v470 = vpack.c.b16 %v377, %v374
      %v471 = vpack.c.b16 %v378, %v375
      %v472 = vpack.c.b16 %v382, %v379
      %v473 = vpack.c.b16 %v383, %v380
      %v474 = vpack.c.b16 %v384, %v381
      %v475 = vpack.c.b16 %v388, %v385
      %v476 = vpack.c.b16 %v389, %v386
      %v477 = vpack.c.b16 %v390, %v387
      %v478 = vpack.c.b16 %v394, %v391
      %v479 = vpack.c.b16 %v395, %v392
      %v480 = vpack.c.b16 %v396, %v393
      %v481 = vpack.c.b16 %v400, %v397
      %v482 = vpack.c.b16 %v401, %v398
      %v483 = vpack.c.b16 %v402, %v399
      %v484 = vpack.c.b16 %v406, %v403
      %v485 = vpack.c.b16 %v407, %v404
      %v486 = vpack.c.b16 %v408, %v405
      %v487 = vpack.c.b16 %v412, %v409
      %v488 = vpack.c.b16 %v413, %v410
      %v489 = vpack.c.b16 %v414, %v411
      %v490 = vpack.c.b16 %v418, %v415
      %v491 = vpack.c.b16 %v419, %v416
      %v492 = vpack.c.b16 %v420, %v417
      %v493 = vpack.c.b16 %v424, %v421
      %v494 = vpack.c.b16 %v425, %v422
      %v495 = vpack.c.b16 %v426, %v423
      %v496 = vpack.c.b16 %v430, %v427
      %v497 = vpack.c.b16 %v431, %v428
      %v498 = vpack.c.b16 %v432, %v429
      %v499 = vpack.c.b16 %v436, %v433
      %v500 = vpack.c.b16 %v437, %v434
      %v501 = vpack.c.b16 %v438, %v435
      %v502 = vpack.c.b16 %v442, %v439
      %v503 = vpack.c.b16 %v443, %v440
      %v504 = vpack.c.b16 %v444, %v441
      %v505 = vpack.c.b16 %v448, %v445
      %v506 = vpack.c.b16 %v449, %v446
      %v507 = vpack.c.b16 %v450, %v447
      %v508 = vpack.c.b16 %v454, %v451
      %v509 = vpack.c.b16 %v455, %v452
      %v510 = vpack.c.b16 %v456, %v453
      %v511 = vpack.c.b16 %v460, %v457
      %v512 = vpack.c.b16 %v461, %v458
      %v513 = vpack.c.b16 %v462, %v459
      %v514 = vpack.c.b16 %v466, %v463
      %v515 = vpack.c.b16 %v467, %v464
      %v516 = vpack.c.b16 %v468, %v465
      %v589 = vunpack.c.l.b16 %v269
      %v590 = vunpack.c.l.b16 %v270
      %v591 = vunpack.c.l.b16 %v271
      %v592 = vunpack.c.l.b16 %v272
      %v593 = vunpack.c.l.b16 %v273
      %v594 = vunpack.c.l.b16 %v274
      %v595 = vunpack.c.l.b16 %v275
      %v596 = vunpack.c.l.b16 %v276
      %v597 = vunpack.c.l.b16 %v277
      %v598 = vunpack.c.l.b16 %v278
      %v599 = vunpack.c.l.b16 %v279
      %v600 = vunpack.c.l.b16 %v280
      %v601 = vunpack.c.l.b16 %v281
      %v602 = vunpack.c.l.b16 %v282
      %v603 = vunpack.c.l.b16 %v283
      %v604 = vunpack.c.l.b16 %v284
      %v605 = vunpack.c.l.b16 %v285
      %v606 = vunpack.c.l.b16 %v286
      %v607 = vunpack.c.l.b16 %v287
      %v608 = vunpack.c.l.b16 %v288
      %v609 = vunpack.c.l.b16 %v289
      %v610 = vunpack.c.l.b16 %v290
      %v611 = vunpack.c.l.b16 %v291
      %v612 = vunpack.c.l.b16 %v292
      %v613 = vunpack.c.l.b16 %v293
      %v614 = vunpack.c.l.b16 %v294
      %v615 = vunpack.c.l.b16 %v295
      %v616 = vunpack.c.l.b16 %v296
      %v617 = vunpack.c.l.b16 %v297
      %v618 = vunpack.c.l.b16 %v298
      %v619 = vunpack.c.l.b16 %v299
      %v620 = vunpack.c.l.b16 %v300
      %v621 = vunpack.c.l.b16 %v301
      %v622 = vunpack.c.l.b16 %v302
      %v623 = vunpack.c.l.b16 %v303
      %v624 = vunpack.c.l.b16 %v304
      %v625 = vunpack.c.l.b16 %v305
      %v626 = vunpack.c.l.b16 %v306
      %v627 = vunpack.c.l.b16 %v307
      %v628 = vunpack.c.l.b16 %v308
      %v629 = vpack.c.b16 %v590, %v589
      %v630 = vpack.c.b16 %v592, %v591
      %v631 = vpack.c.b16 %v594, %v593
      %v632 = vpack.c.b16 %v596, %v595
      %v633 = vpack.c.b16 %v598, %v597
      %v634 = vpack.c.b16 %v600, %v599
      %v635 = vpack.c.b16 %v602, %v601
      %v636 = vpack.c.b16 %v604, %v603
      %v637 = vpack.c.b16 %v606, %v605
      %v638 = vpack.c.b16 %v608, %v607
      %v639 = vpack.c.b16 %v610, %v609
      %v640 = vpack.c.b16 %v612, %v611
      %v641 = vpack.c.b16 %v614, %v613
      %v642 = vpack.c.b16 %v616, %v615
      %v643 = vpack.c.b16 %v618, %v617
      %v644 = vpack.c.b16 %v620, %v619
      %v645 = vpack.c.b16 %v622, %v621
      %v646 = vpack.c.b16 %v624, %v623
      %v647 = vpack.c.b16 %v626, %v625
      %v648 = vpack.c.b16 %v628, %v627
      %vm669 = vcmask 523264
      %v671 = vsel %vm669, %v471, 0
      %v674 = vsel %vm669, %v474, 0
      %v677 = vsel %vm669, %v477, 0
      %v680 = vsel %vm669, %v480, 0
      %v683 = vsel %vm669, %v483, 0
      %v686 = vsel %vm669, %v486, 0
      %v689 = vsel %vm669, %v489, 0
      %v692 = vsel %vm669, %v492, 0
      %v695 = vsel %vm669, %v495, 0
      %v698 = vsel %vm669, %v498, 0
      %v701 = vsel %vm669, %v501, 0
      %v704 = vsel %vm669, %v504, 0
      %v707 = vsel %vm669, %v507, 0
      %v710 = vsel %vm669, %v510, 0
      %v713 = vsel %vm669, %v513, 0
      %v716 = vsel %vm669, %v516, 0
      %718 = vmatpush.bf16.msra.mxu0 %v636
      %719 = vmatpush.bf16.msra.mxu0 %v635
      %720 = vmatpush.bf16.msra.mxu0 %v634
      %721 = vmatpush.bf16.msra.mxu0 %v633
      %722 = vmatpush.bf16.msra.mxu0 %v632
      %723 = vmatpush.bf16.msra.mxu0 %v631
      %724 = vmatpush.bf16.msra.mxu0 %v630
      %725 = vmatpush.bf16.msra.mxu0 %v629
      %726 = vmatmul.bf16.gmra.mxu0 %v469
      %v727 = vpop.f32.mrf.mxu0
      %v728 = vadd.f32 0.0, %v727
      %v729 = vpop.f32.mrf.mxu0
      %v730 = vadd.f32 0.0, %v729
      %731 = vmatmul.bf16.gmra.mxu0 %v472
      %v732 = vpop.f32.mrf.mxu0
      %v733 = vadd.f32 0.0, %v732
      %v734 = vpop.f32.mrf.mxu0
      %v735 = vadd.f32 0.0, %v734
      %736 = vmatmul.bf16.gmra.mxu0 %v475
      %v737 = vpop.f32.mrf.mxu0
      %v738 = vadd.f32 0.0, %v737
      %v739 = vpop.f32.mrf.mxu0
      %v740 = vadd.f32 0.0, %v739
      %741 = vmatmul.bf16.gmra.mxu0 %v478
      %v742 = vpop.f32.mrf.mxu0
      %v743 = vadd.f32 0.0, %v742
      %v744 = vpop.f32.mrf.mxu0
      %v745 = vadd.f32 0.0, %v744
      %746 = vmatmul.bf16.gmra.mxu0 %v481
      %v747 = vpop.f32.mrf.mxu0
      %v748 = vadd.f32 0.0, %v747
      %v749 = vpop.f32.mrf.mxu0
      %v750 = vadd.f32 0.0, %v749
      %751 = vmatmul.bf16.gmra.mxu0 %v484
      %v752 = vpop.f32.mrf.mxu0
      %v753 = vadd.f32 0.0, %v752
      %v754 = vpop.f32.mrf.mxu0
      %v755 = vadd.f32 0.0, %v754
      %756 = vmatmul.bf16.gmra.mxu0 %v487
      %v757 = vpop.f32.mrf.mxu0
      %v758 = vadd.f32 0.0, %v757
      %v759 = vpop.f32.mrf.mxu0
      %v760 = vadd.f32 0.0, %v759
      %761 = vmatmul.bf16.gmra.mxu0 %v490
      %v762 = vpop.f32.mrf.mxu0
      %v763 = vadd.f32 0.0, %v762
      %v764 = vpop.f32.mrf.mxu0
      %v765 = vadd.f32 0.0, %v764
      %766 = vmatmul.bf16.gmra.mxu0 %v493
      %v767 = vpop.f32.mrf.mxu0
      %v768 = vadd.f32 0.0, %v767
      %v769 = vpop.f32.mrf.mxu0
      %v770 = vadd.f32 0.0, %v769
      %771 = vmatmul.bf16.gmra.mxu0 %v496
      %v772 = vpop.f32.mrf.mxu0
      %v773 = vadd.f32 0.0, %v772
      %v774 = vpop.f32.mrf.mxu0
      %v775 = vadd.f32 0.0, %v774
      %776 = vmatmul.bf16.gmra.mxu0 %v499
      %v777 = vpop.f32.mrf.mxu0
      %v778 = vadd.f32 0.0, %v777
      %v779 = vpop.f32.mrf.mxu0
      %v780 = vadd.f32 0.0, %v779
      %781 = vmatmul.bf16.gmra.mxu0 %v502
      %v782 = vpop.f32.mrf.mxu0
      %v783 = vadd.f32 0.0, %v782
      %v784 = vpop.f32.mrf.mxu0
      %v785 = vadd.f32 0.0, %v784
      %786 = vmatmul.bf16.gmra.mxu0 %v505
      %v787 = vpop.f32.mrf.mxu0
      %v788 = vadd.f32 0.0, %v787
      %v789 = vpop.f32.mrf.mxu0
      %v790 = vadd.f32 0.0, %v789
      %791 = vmatmul.bf16.gmra.mxu0 %v508
      %v792 = vpop.f32.mrf.mxu0
      %v793 = vadd.f32 0.0, %v792
      %v794 = vpop.f32.mrf.mxu0
      %v795 = vadd.f32 0.0, %v794
      %796 = vmatmul.bf16.gmra.mxu0 %v511
      %v797 = vpop.f32.mrf.mxu0
      %v798 = vadd.f32 0.0, %v797
      %v799 = vpop.f32.mrf.mxu0
      %v800 = vadd.f32 0.0, %v799
      %801 = vmatmul.bf16.gmra.mxu0 %v514
      %v802 = vpop.f32.mrf.mxu0
      %v803 = vadd.f32 0.0, %v802
      %v804 = vpop.f32.mrf.mxu0
      %v805 = vadd.f32 0.0, %v804
      %806 = vdwg.mxu0
      %807 = vmatpush.bf16.msra.mxu0 %v644
      %808 = vmatpush.bf16.msra.mxu0 %v643
      %809 = vmatpush.bf16.msra.mxu0 %v642
      %810 = vmatpush.bf16.msra.mxu0 %v641
      %811 = vmatpush.bf16.msra.mxu0 %v640
      %812 = vmatpush.bf16.msra.mxu0 %v639
      %813 = vmatpush.bf16.msra.mxu0 %v638
      %814 = vmatpush.bf16.msra.mxu0 %v637
      %815 = vmatmul.bf16.gmra.mxu0 %v470
      %v816 = vpop.f32.mrf.mxu0
      %v817 = vadd.f32 %v728, %v816
      %v818 = vpop.f32.mrf.mxu0
      %v819 = vadd.f32 %v730, %v818
      %820 = vmatmul.bf16.gmra.mxu0 %v473
      %v821 = vpop.f32.mrf.mxu0
      %v822 = vadd.f32 %v733, %v821
      %v823 = vpop.f32.mrf.mxu0
      %v824 = vadd.f32 %v735, %v823
      %825 = vmatmul.bf16.gmra.mxu0 %v476
      %v826 = vpop.f32.mrf.mxu0
      %v827 = vadd.f32 %v738, %v826
      %v828 = vpop.f32.mrf.mxu0
      %v829 = vadd.f32 %v740, %v828
      %830 = vmatmul.bf16.gmra.mxu0 %v479
      %v831 = vpop.f32.mrf.mxu0
      %v832 = vadd.f32 %v743, %v831
      %v833 = vpop.f32.mrf.mxu0
      %v834 = vadd.f32 %v745, %v833
      %835 = vmatmul.bf16.gmra.mxu0 %v482
      %v836 = vpop.f32.mrf.mxu0
      %v837 = vadd.f32 %v748, %v836
      %v838 = vpop.f32.mrf.mxu0
      %v839 = vadd.f32 %v750, %v838
      %840 = vmatmul.bf16.gmra.mxu0 %v485
      %v841 = vpop.f32.mrf.mxu0
      %v842 = vadd.f32 %v753, %v841
      %v843 = vpop.f32.mrf.mxu0
      %v844 = vadd.f32 %v755, %v843
      %845 = vmatmul.bf16.gmra.mxu0 %v488
      %v846 = vpop.f32.mrf.mxu0
      %v847 = vadd.f32 %v758, %v846
      %v848 = vpop.f32.mrf.mxu0
      %v849 = vadd.f32 %v760, %v848
      %850 = vmatmul.bf16.gmra.mxu0 %v491
      %v851 = vpop.f32.mrf.mxu0
      %v852 = vadd.f32 %v763, %v851
      %v853 = vpop.f32.mrf.mxu0
      %v854 = vadd.f32 %v765, %v853
      %855 = vmatmul.bf16.gmra.mxu0 %v494
      %v856 = vpop.f32.mrf.mxu0
      %v857 = vadd.f32 %v768, %v856
      %v858 = vpop.f32.mrf.mxu0
      %v859 = vadd.f32 %v770, %v858
      %860 = vmatmul.bf16.gmra.mxu0 %v497
      %v861 = vpop.f32.mrf.mxu0
      %v862 = vadd.f32 %v773, %v861
      %v863 = vpop.f32.mrf.mxu0
      %v864 = vadd.f32 %v775, %v863
      %865 = vmatmul.bf16.gmra.mxu0 %v500
      %v866 = vpop.f32.mrf.mxu0
      %v867 = vadd.f32 %v778, %v866
      %v868 = vpop.f32.mrf.mxu0
      %v869 = vadd.f32 %v780, %v868
      %870 = vmatmul.bf16.gmra.mxu0 %v503
      %v871 = vpop.f32.mrf.mxu0
      %v872 = vadd.f32 %v783, %v871
      %v873 = vpop.f32.mrf.mxu0
      %v874 = vadd.f32 %v785, %v873
      %875 = vmatmul.bf16.gmra.mxu0 %v506
      %v876 = vpop.f32.mrf.mxu0
      %v877 = vadd.f32 %v788, %v876
      %v878 = vpop.f32.mrf.mxu0
      %v879 = vadd.f32 %v790, %v878
      %880 = vmatmul.bf16.gmra.mxu0 %v509
      %v881 = vpop.f32.mrf.mxu0
      %v882 = vadd.f32 %v793, %v881
      %v883 = vpop.f32.mrf.mxu0
      %v884 = vadd.f32 %v795, %v883
      %885 = vmatmul.bf16.gmra.mxu0 %v512
      %v886 = vpop.f32.mrf.mxu0
      %v887 = vadd.f32 %v798, %v886
      %v888 = vpop.f32.mrf.mxu0
      %v889 = vadd.f32 %v800, %v888
      %890 = vmatmul.bf16.gmra.mxu0 %v515
      %v891 = vpop.f32.mrf.mxu0
      %v892 = vadd.f32 %v803, %v891
      %v893 = vpop.f32.mrf.mxu0
      %v894 = vadd.f32 %v805, %v893
      %895 = vdwg.mxu0
      %896 = vmatpush.bf16.msra.mxu0 0
      %897 = vmatpush.bf16.msra.mxu0 0
      %898 = vmatpush.bf16.msra.mxu0 0
      %899 = vmatpush.bf16.msra.mxu0 0
      %900 = vmatpush.bf16.msra.mxu0 %v648
      %901 = vmatpush.bf16.msra.mxu0 %v647
      %902 = vmatpush.bf16.msra.mxu0 %v646
      %903 = vmatpush.bf16.msra.mxu0 %v645
      %904 = vmatmul.bf16.gmra.mxu0 %v671
      %v905 = vpop.f32.mrf.mxu0
      %v906 = vadd.f32 %v817, %v905
      %v907 = vpop.f32.mrf.mxu0
      %v908 = vadd.f32 %v819, %v907
      %909 = vmatmul.bf16.gmra.mxu0 %v674
      %v910 = vpop.f32.mrf.mxu0
      %v911 = vadd.f32 %v822, %v910
      %v912 = vpop.f32.mrf.mxu0
      %v913 = vadd.f32 %v824, %v912
      %914 = vmatmul.bf16.gmra.mxu0 %v677
      %v915 = vpop.f32.mrf.mxu0
      %v916 = vadd.f32 %v827, %v915
      %v917 = vpop.f32.mrf.mxu0
      %v918 = vadd.f32 %v829, %v917
      %919 = vmatmul.bf16.gmra.mxu0 %v680
      %v920 = vpop.f32.mrf.mxu0
      %v921 = vadd.f32 %v832, %v920
      %v922 = vpop.f32.mrf.mxu0
      %v923 = vadd.f32 %v834, %v922
      %924 = vmatmul.bf16.gmra.mxu0 %v683
      %v925 = vpop.f32.mrf.mxu0
      %v926 = vadd.f32 %v837, %v925
      %v927 = vpop.f32.mrf.mxu0
      %v928 = vadd.f32 %v839, %v927
      %929 = vmatmul.bf16.gmra.mxu0 %v686
      %v930 = vpop.f32.mrf.mxu0
      %v931 = vadd.f32 %v842, %v930
      %v932 = vpop.f32.mrf.mxu0
      %v933 = vadd.f32 %v844, %v932
      %934 = vmatmul.bf16.gmra.mxu0 %v689
      %v935 = vpop.f32.mrf.mxu0
      %v936 = vadd.f32 %v847, %v935
      %v937 = vpop.f32.mrf.mxu0
      %v938 = vadd.f32 %v849, %v937
      %939 = vmatmul.bf16.gmra.mxu0 %v692
      %v940 = vpop.f32.mrf.mxu0
      %v941 = vadd.f32 %v852, %v940
      %v942 = vpop.f32.mrf.mxu0
      %v943 = vadd.f32 %v854, %v942
      %944 = vmatmul.bf16.gmra.mxu0 %v695
      %v945 = vpop.f32.mrf.mxu0
      %v946 = vadd.f32 %v857, %v945
      %v947 = vpop.f32.mrf.mxu0
      %v948 = vadd.f32 %v859, %v947
      %949 = vmatmul.bf16.gmra.mxu0 %v698
      %v950 = vpop.f32.mrf.mxu0
      %v951 = vadd.f32 %v862, %v950
      %v952 = vpop.f32.mrf.mxu0
      %v953 = vadd.f32 %v864, %v952
      %954 = vmatmul.bf16.gmra.mxu0 %v701
      %v955 = vpop.f32.mrf.mxu0
      %v956 = vadd.f32 %v867, %v955
      %v957 = vpop.f32.mrf.mxu0
      %v958 = vadd.f32 %v869, %v957
      %959 = vmatmul.bf16.gmra.mxu0 %v704
      %v960 = vpop.f32.mrf.mxu0
      %v961 = vadd.f32 %v872, %v960
      %v962 = vpop.f32.mrf.mxu0
      %v963 = vadd.f32 %v874, %v962
      %964 = vmatmul.bf16.gmra.mxu0 %v707
      %v965 = vpop.f32.mrf.mxu0
      %v966 = vadd.f32 %v877, %v965
      %v967 = vpop.f32.mrf.mxu0
      %v968 = vadd.f32 %v879, %v967
      %969 = vmatmul.bf16.gmra.mxu0 %v710
      %v970 = vpop.f32.mrf.mxu0
      %v971 = vadd.f32 %v882, %v970
      %v972 = vpop.f32.mrf.mxu0
      %v973 = vadd.f32 %v884, %v972
      %974 = vmatmul.bf16.gmra.mxu0 %v713
      %v975 = vpop.f32.mrf.mxu0
      %v976 = vadd.f32 %v887, %v975
      %v977 = vpop.f32.mrf.mxu0
      %v978 = vadd.f32 %v889, %v977
      %979 = vmatmul.bf16.gmra.mxu0 %v716
      %v980 = vpop.f32.mrf.mxu0
      %v981 = vadd.f32 %v892, %v980
      %v982 = vpop.f32.mrf.mxu0
      %v983 = vadd.f32 %v894, %v982
      %984 = vdwg.mxu0
      %v985 = vld [vmem:[%s2] sm:$0x1]
      %v987 = vperm.slane %v985, 0
      %v989 = vmul.f32 %v906, %v987
      %v990 = vmul.f32 %v908, %v987
      %v991 = vmul.f32 %v911, %v987
      %v992 = vmul.f32 %v913, %v987
      %v993 = vmul.f32 %v916, %v987
      %v994 = vmul.f32 %v918, %v987
      %v995 = vmul.f32 %v921, %v987
      %v996 = vmul.f32 %v923, %v987
      %v997 = vmul.f32 %v926, %v987
      %v998 = vmul.f32 %v928, %v987
      %v999 = vmul.f32 %v931, %v987
      %v1000 = vmul.f32 %v933, %v987
      %v1001 = vmul.f32 %v936, %v987
      %v1002 = vmul.f32 %v938, %v987
      %v1003 = vmul.f32 %v941, %v987
      %v1004 = vmul.f32 %v943, %v987
      %v1005 = vmul.f32 %v946, %v987
      %v1006 = vmul.f32 %v948, %v987
      %v1007 = vmul.f32 %v951, %v987
      %v1008 = vmul.f32 %v953, %v987
      %v1009 = vmul.f32 %v956, %v987
      %v1010 = vmul.f32 %v958, %v987
      %v1011 = vmul.f32 %v961, %v987
      %v1012 = vmul.f32 %v963, %v987
      %v1013 = vmul.f32 %v966, %v987
      %v1014 = vmul.f32 %v968, %v987
      %v1015 = vmul.f32 %v971, %v987
      %v1016 = vmul.f32 %v973, %v987
      %v1017 = vmul.f32 %v976, %v987
      %v1018 = vmul.f32 %v978, %v987
      %v1019 = vmul.f32 %v981, %v987
      %v1020 = vmul.f32 %v983, %v987
      %v1021 = vld [vmem:[%s3] sm:$0x1]
      %v1023 = vperm.slane %v1021, 0
      %v1025 = vadd.f32 %v989, %v1023
      %v1026 = vadd.f32 %v990, %v1023
      %v1027 = vadd.f32 %v991, %v1023
      %v1028 = vadd.f32 %v992, %v1023
      %v1029 = vadd.f32 %v993, %v1023
      %v1030 = vadd.f32 %v994, %v1023
      %v1031 = vadd.f32 %v995, %v1023
      %v1032 = vadd.f32 %v996, %v1023
      %v1033 = vadd.f32 %v997, %v1023
      %v1034 = vadd.f32 %v998, %v1023
      %v1035 = vadd.f32 %v999, %v1023
      %v1036 = vadd.f32 %v1000, %v1023
      %v1037 = vadd.f32 %v1001, %v1023
      %v1038 = vadd.f32 %v1002, %v1023
      %v1039 = vadd.f32 %v1003, %v1023
      %v1040 = vadd.f32 %v1004, %v1023
      %v1041 = vadd.f32 %v1005, %v1023
      %v1042 = vadd.f32 %v1006, %v1023
      %v1043 = vadd.f32 %v1007, %v1023
      %v1044 = vadd.f32 %v1008, %v1023
      %v1045 = vadd.f32 %v1009, %v1023
      %v1046 = vadd.f32 %v1010, %v1023
      %v1047 = vadd.f32 %v1011, %v1023
      %v1048 = vadd.f32 %v1012, %v1023
      %v1049 = vadd.f32 %v1013, %v1023
      %v1050 = vadd.f32 %v1014, %v1023
      %v1051 = vadd.f32 %v1015, %v1023
      %v1052 = vadd.f32 %v1016, %v1023
      %v1053 = vadd.f32 %v1017, %v1023
      %v1054 = vadd.f32 %v1018, %v1023
      %v1055 = vadd.f32 %v1019, %v1023
      %v1056 = vadd.f32 %v1020, %v1023
      %v1057 = vmax.f32 %v1025, 0.0
      %v1058 = vmax.f32 %v1026, 0.0
      %v1059 = vmax.f32 %v1027, 0.0
      %v1060 = vmax.f32 %v1028, 0.0
      %v1061 = vmax.f32 %v1029, 0.0
      %v1062 = vmax.f32 %v1030, 0.0
      %v1063 = vmax.f32 %v1031, 0.0
      %v1064 = vmax.f32 %v1032, 0.0
      %v1065 = vmax.f32 %v1033, 0.0
      %v1066 = vmax.f32 %v1034, 0.0
      %v1067 = vmax.f32 %v1035, 0.0
      %v1068 = vmax.f32 %v1036, 0.0
      %v1069 = vmax.f32 %v1037, 0.0
      %v1070 = vmax.f32 %v1038, 0.0
      %v1071 = vmax.f32 %v1039, 0.0
      %v1072 = vmax.f32 %v1040, 0.0
      %v1073 = vmax.f32 %v1041, 0.0
      %v1074 = vmax.f32 %v1042, 0.0
      %v1075 = vmax.f32 %v1043, 0.0
      %v1076 = vmax.f32 %v1044, 0.0
      %v1077 = vmax.f32 %v1045, 0.0
      %v1078 = vmax.f32 %v1046, 0.0
      %v1079 = vmax.f32 %v1047, 0.0
      %v1080 = vmax.f32 %v1048, 0.0
      %v1081 = vmax.f32 %v1049, 0.0
      %v1082 = vmax.f32 %v1050, 0.0
      %v1083 = vmax.f32 %v1051, 0.0
      %v1084 = vmax.f32 %v1052, 0.0
      %v1085 = vmax.f32 %v1053, 0.0
      %v1086 = vmax.f32 %v1054, 0.0
      %v1087 = vmax.f32 %v1055, 0.0
      %v1088 = vmax.f32 %v1056, 0.0
      %v1089 = vpack.c.bf16 %v1057, %v1057
      %v1090 = vpack.c.bf16 %v1058, %v1058
      %v1091 = vpack.c.bf16 %v1059, %v1059
      %v1092 = vpack.c.bf16 %v1060, %v1060
      %v1093 = vpack.c.bf16 %v1061, %v1061
      %v1094 = vpack.c.bf16 %v1062, %v1062
      %v1095 = vpack.c.bf16 %v1063, %v1063
      %v1096 = vpack.c.bf16 %v1064, %v1064
      %v1097 = vpack.c.bf16 %v1065, %v1065
      %v1098 = vpack.c.bf16 %v1066, %v1066
      %v1099 = vpack.c.bf16 %v1067, %v1067
      %v1100 = vpack.c.bf16 %v1068, %v1068
      %v1101 = vpack.c.bf16 %v1069, %v1069
      %v1102 = vpack.c.bf16 %v1070, %v1070
      %v1103 = vpack.c.bf16 %v1071, %v1071
      %v1104 = vpack.c.bf16 %v1072, %v1072
      %v1105 = vpack.c.bf16 %v1073, %v1073
      %v1106 = vpack.c.bf16 %v1074, %v1074
      %v1107 = vpack.c.bf16 %v1075, %v1075
      %v1108 = vpack.c.bf16 %v1076, %v1076
      %v1109 = vpack.c.bf16 %v1077, %v1077
      %v1110 = vpack.c.bf16 %v1078, %v1078
      %v1111 = vpack.c.bf16 %v1079, %v1079
      %v1112 = vpack.c.bf16 %v1080, %v1080
      %v1113 = vpack.c.bf16 %v1081, %v1081
      %v1114 = vpack.c.bf16 %v1082, %v1082
      %v1115 = vpack.c.bf16 %v1083, %v1083
      %v1116 = vpack.c.bf16 %v1084, %v1084
      %v1117 = vpack.c.bf16 %v1085, %v1085
      %v1118 = vpack.c.bf16 %v1086, %v1086
      %v1119 = vpack.c.bf16 %v1087, %v1087
      %v1120 = vpack.c.bf16 %v1088, %v1088
      %1121 = vst [vmem:[%s202] sm:$0xf] %v1089
      %1122 = vst [vmem:[%s202 + $0x4] sm:$0xf] %v1090
      %1123 = vst [vmem:[%s202 + $0x8] sm:$0xf] %v1091
      %1124 = vst [vmem:[%s202 + $0xc] sm:$0xf] %v1092
      %1125 = vst [vmem:[%s202 + $0x10] sm:$0xf] %v1093
      %1126 = vst [vmem:[%s202 + $0x14] sm:$0xf] %v1094
      %1127 = vst [vmem:[%s202 + $0x18] sm:$0xf] %v1095
      %1128 = vst [vmem:[%s202 + $0x1c] sm:$0xf] %v1096
      %1129 = vst [vmem:[%s202 + $0x20] sm:$0xf] %v1097
      %1130 = vst [vmem:[%s202 + $0x24] sm:$0xf] %v1098
      %1131 = vst [vmem:[%s202 + $0x28] sm:$0xf] %v1099
      %1132 = vst [vmem:[%s202 + $0x2c] sm:$0xf] %v1100
      %1133 = vst [vmem:[%s202 + $0x30] sm:$0xf] %v1101
      %1134 = vst [vmem:[%s202 + $0x34] sm:$0xf] %v1102
      %1135 = vst [vmem:[%s202 + $0x38] sm:$0xf] %v1103
      %1136 = vst [vmem:[%s202 + $0x3c] sm:$0xf] %v1104
      %1137 = vst [vmem:[%s202 + $0x40] sm:$0xf] %v1105
      %1138 = vst [vmem:[%s202 + $0x44] sm:$0xf] %v1106
      %1139 = vst [vmem:[%s202 + $0x48] sm:$0xf] %v1107
      %1140 = vst [vmem:[%s202 + $0x4c] sm:$0xf] %v1108
      %1141 = vst [vmem:[%s202 + $0x50] sm:$0xf] %v1109
      %1142 = vst [vmem:[%s202 + $0x54] sm:$0xf] %v1110
      %1143 = vst [vmem:[%s202 + $0x58] sm:$0xf] %v1111
      %1144 = vst [vmem:[%s202 + $0x5c] sm:$0xf] %v1112
      %1145 = vst [vmem:[%s202 + $0x60] sm:$0xf] %v1113
      %1146 = vst [vmem:[%s202 + $0x64] sm:$0xf] %v1114
      %1147 = vst [vmem:[%s202 + $0x68] sm:$0xf] %v1115
      %1148 = vst [vmem:[%s202 + $0x6c] sm:$0xf] %v1116
      %1149 = vst [vmem:[%s202 + $0x70] sm:$0xf] %v1117
      %1150 = vst [vmem:[%s202 + $0x74] sm:$0xf] %v1118
      %1151 = vst [vmem:[%s202 + $0x78] sm:$0xf] %v1119
      %1152 = vst [vmem:[%s202 + $0x7c] sm:$0xf] %v1120
      %s1153 = smul.u32 32, %s15
      %p1154 = scmp.lt.s32.totalorder %s1153, 63
      %s1155 = scalar_select %p1154, %s1153, 63
      %s1156 = smul.addr %s1155, 4
      %s1157 = scalar_lea.vmem %s4, %s1156
      // Predicated region
      $region37: #{_lambda_.3} parent=35 // pred_check
        %p1158 = pneg %p122
      $region38: #{_lambda_.3} parent=35 // pred_check_branch
        %1160 = sbr.rel (%p1158) target = $region40
      $region39: #{_lambda_.3} parent=35 // pred_region
        %s1161 = smul.u32 32, %s15
      $region40: #{_lambda_.3} parent=35 // pred_fallthru
        _
    $region36: #{_lambda_.3} parent=5 // pred_fallthru
      _
    %p1162 = scmp.le.s32.totalorder 2, %s10
    // Predicated region
    $region41: #{_lambda_.3} parent=5 // pred_check
      %p1163 = pneg %p1162
    $region42: #{_lambda_.3} parent=5 // pred_check_branch
      %1165 = sbr.rel (%p1163) target = $region44
    $region43: #{_lambda_.3} parent=5 // pred_region
      %s1166 = ssub.s32 %s10, 2
      // Predicated region
      $region45: #{_lambda_.3} parent=43 // pred_check
        %p1167 = pneg %p128
      $region46: #{_lambda_.3} parent=43 // pred_check_branch
        %1169 = sbr.rel (%p1167) target = $region48
      $region47: #{_lambda_.3} parent=43 // pred_region
        %s1170 = smul.u32 32, %s16
        %p1171 = scmp.lt.s32.totalorder %s1170, 63
        %s1172 = scalar_select %p1171, %s1170, 63
        %s1173 = smul.addr %s1172, 4
        %s1174 = scalar_lea.vmem %s4, %s1173
      $region48: #{_lambda_.3} parent=43 // pred_fallthru
        _
    $region44: #{_lambda_.3} parent=5 // pred_fallthru
      _
  $region6: #{_lambda_.3} parent=0 // loop_footer
    %s14 = sadd.s32 1, %s10
  $region7: #{_lambda_.3} parent=0 // loop_footer_branch
    %9 = sbr.rel target = $region3
  $region8: #{_lambda_.3} parent=0 // loop_exit
    _

// kernel: _lambda_.4
$region0: #{_lambda_.4}
  #allocation0 [shape = 'u32[]', space=smem, size = 0x4, offset = 0x4, fixed_abs, tag = 'smem constant byte address 0x4 - core index']
  #allocation1 [shape = 'u32[72,128]{1,0:T(1,128)}', space=vmem, size = 0x9000, scoped, tag = 'internal scratch']
  %s0 = inlined_call_operand.vmem [shape: bf16[512,288], index: 0, kind: input, shape index: {}]
  %s1 = inlined_call_operand.vmem [shape: bf16[288,48], index: 1, kind: input, shape index: {}]
  %s2 = inlined_call_operand.vmem [shape: f32[1,48], index: 2, kind: input, shape index: {}]
  %s3 = inlined_call_operand.vmem [shape: f32[1,48], index: 3, kind: input, shape index: {}]
  %s4 = inlined_call_operand.vmem [shape: bf16[512,48], index: 4, kind: output, shape index: {}]
  %s5 = sld [smem:[#allocation0]]
  $region49: #{_lambda_.4} parent=0
    _
  %s7 = ssub.s32 1, %s5
  %s8 = scalar_select 0, %s7, %s5
  loop: start=0, step=1, limit=4
  $region2: #{_lambda_.4} parent=0 // loop_pre_header
    _
  $region3: #{_lambda_.4} parent=0 // loop_header
    %s10 = sphi 0, %s14
    %p11 = scmp.ge.s32.totalorder %s10, 4
    %s20 = sphi 0, %s22
    %s23 = sphi 0, %s20
    %s24 = sphi 0, %s23
    %s40 = sphi 0, %s24
    %s44 = sphi 0, %s44
    %s46 = sphi 0, %s44
    %s47 = sphi 0, %s46
    %s61 = sphi 0, %s47
    %s65 = sphi 0, %s65
    %s67 = sphi 0, %s65
    %s68 = sphi 0, %s67
    %s82 = sphi 0, %s68
    %s86 = sphi 0, %s86
    %s88 = sphi 0, %s86
    %s89 = sphi 0, %s88
    %s103 = sphi 0, %s89
    %s109 = sphi 0, %s111
    %s112 = sphi 0, %s109
    %s113 = sphi 0, %s112
    %s129 = sphi 0, %s113
  $region4: #{_lambda_.4} parent=0 // loop_header_branch
    %13 = sbr.rel (%p11) target = $region8
  $region5: #{_lambda_.4} parent=0 // loop_body
    %s15 = ssub.s32 %s10, 1
    %s16 = ssub.s32 %s10, 2
    %s17 = sadd.s32 %s10, 1
    %s18 = ssub.s32 %s10, %s17
    %p19 = scmp.eq.s32.totalorder %s18, 0
    %s21 = sadd.s32 %s20, 1
    %s22 = scalar_select %p19, %s20, %s21
    %p25 = pneg %p19
    %p26 = scmp.eq.s32.totalorder %s10, 1
    %p27 = por %p25, %p26
    %p28 = scmp.ne.s32.totalorder %s20, %s23
    %p29 = scmp.eq.s32.totalorder %s10, 0
    %p30 = por %p28, %p29
    %p31 = scmp.ne.s32.totalorder %s20, %s23
    %p32 = scmp.eq.s32.totalorder %s15, 1
    %p33 = por %p31, %p32
    %p34 = scmp.ne.s32.totalorder %s23, %s24
    %p35 = scmp.eq.s32.totalorder %s15, 0
    %p36 = por %p34, %p35
    %p37 = scmp.ne.s32.totalorder %s23, %s24
    %p38 = scmp.eq.s32.totalorder %s16, 1
    %p39 = por %p37, %p38
    %p41 = scmp.ne.s32.totalorder %s24, %s40
    %p42 = scmp.eq.s32.totalorder %s16, 0
    %p43 = por %p41, %p42
    %s45 = sadd.s32 %s44, 1
    %p48 = scmp.eq.s32.totalorder %s10, 1
    %p49 = scmp.ne.s32.totalorder %s44, %s46
    %p50 = scmp.eq.s32.totalorder %s10, 0
    %p51 = por %p49, %p50
    %p52 = scmp.ne.s32.totalorder %s44, %s46
    %p53 = scmp.eq.s32.totalorder %s15, 1
    %p54 = por %p52, %p53
    %p55 = scmp.ne.s32.totalorder %s46, %s47
    %p56 = scmp.eq.s32.totalorder %s15, 0
    %p57 = por %p55, %p56
    %p58 = scmp.ne.s32.totalorder %s46, %s47
    %p59 = scmp.eq.s32.totalorder %s16, 1
    %p60 = por %p58, %p59
    %p62 = scmp.ne.s32.totalorder %s47, %s61
    %p63 = scmp.eq.s32.totalorder %s16, 0
    %p64 = por %p62, %p63
    %s66 = sadd.s32 %s65, 1
    %p69 = scmp.eq.s32.totalorder %s10, 1
    %p70 = scmp.ne.s32.totalorder %s65, %s67
    %p71 = scmp.eq.s32.totalorder %s10, 0
    %p72 = por %p70, %p71
    %p73 = scmp.ne.s32.totalorder %s65, %s67
    %p74 = scmp.eq.s32.totalorder %s15, 1
    %p75 = por %p73, %p74
    %p76 = scmp.ne.s32.totalorder %s67, %s68
    %p77 = scmp.eq.s32.totalorder %s15, 0
    %p78 = por %p76, %p77
    %p79 = scmp.ne.s32.totalorder %s67, %s68
    %p80 = scmp.eq.s32.totalorder %s16, 1
    %p81 = por %p79, %p80
    %p83 = scmp.ne.s32.totalorder %s68, %s82
    %p84 = scmp.eq.s32.totalorder %s16, 0
    %p85 = por %p83, %p84
    %s87 = sadd.s32 %s86, 1
    %p90 = scmp.eq.s32.totalorder %s10, 1
    %p91 = scmp.ne.s32.totalorder %s86, %s88
    %p92 = scmp.eq.s32.totalorder %s10, 0
    %p93 = por %p91, %p92
    %p94 = scmp.ne.s32.totalorder %s86, %s88
    %p95 = scmp.eq.s32.totalorder %s15, 1
    %p96 = por %p94, %p95
    %p97 = scmp.ne.s32.totalorder %s88, %s89
    %p98 = scmp.eq.s32.totalorder %s15, 0
    %p99 = por %p97, %p98
    %p100 = scmp.ne.s32.totalorder %s88, %s89
    %p101 = scmp.eq.s32.totalorder %s16, 1
    %p102 = por %p100, %p101
    %p104 = scmp.ne.s32.totalorder %s89, %s103
    %p105 = scmp.eq.s32.totalorder %s16, 0
    %p106 = por %p104, %p105
    %s107 = ssub.s32 %s10, %s17
    %p108 = scmp.eq.s32.totalorder %s107, 0
    %s110 = sadd.s32 %s109, 1
    %s111 = scalar_select %p108, %s109, %s110
    %p114 = pneg %p108
    %p115 = scmp.eq.s32.totalorder %s10, 1
    %p116 = por %p114, %p115
    %p117 = scmp.ne.s32.totalorder %s109, %s112
    %p118 = scmp.eq.s32.totalorder %s10, 0
    %p119 = por %p117, %p118
    %p120 = scmp.ne.s32.totalorder %s109, %s112
    %p121 = scmp.eq.s32.totalorder %s15, 1
    %p122 = por %p120, %p121
    %p123 = scmp.ne.s32.totalorder %s112, %s113
    %p124 = scmp.eq.s32.totalorder %s15, 0
    %p125 = por %p123, %p124
    %p126 = scmp.ne.s32.totalorder %s112, %s113
    %p127 = scmp.eq.s32.totalorder %s16, 1
    %p128 = por %p126, %p127
    %p130 = scmp.ne.s32.totalorder %s113, %s129
    %p131 = scmp.eq.s32.totalorder %s16, 0
    %p132 = por %p130, %p131
    %p133 = scmp.le.s32.totalorder 1, %s10
    %p134 = scmp.lt.s32.totalorder %s10, 3
    %p135 = pnand %p133, %p134
    %p136 = pneg %p135
    // Predicated region
    $region9: #{_lambda_.4} parent=5 // pred_check
      _
    $region10: #{_lambda_.4} parent=5 // pred_check_branch
      %138 = sbr.rel (%p135) target = $region12
    $region11: #{_lambda_.4} parent=5 // pred_region
      %s139 = ssub.s32 %s10, 1
      // Predicated region
      $region13: #{_lambda_.4} parent=11 // pred_check
        %p140 = pneg %p57
      $region14: #{_lambda_.4} parent=11 // pred_check_branch
        %142 = sbr.rel (%p140) target = $region16
      $region15: #{_lambda_.4} parent=11 // pred_region
        _
      $region16: #{_lambda_.4} parent=11 // pred_fallthru
        _
      // Predicated region
      $region17: #{_lambda_.4} parent=11 // pred_check
        %p143 = pneg %p78
      $region18: #{_lambda_.4} parent=11 // pred_check_branch
        %145 = sbr.rel (%p143) target = $region20
      $region19: #{_lambda_.4} parent=11 // pred_region
        _
      $region20: #{_lambda_.4} parent=11 // pred_fallthru
        _
      // Predicated region
      $region21: #{_lambda_.4} parent=11 // pred_check
        %p146 = pneg %p99
      $region22: #{_lambda_.4} parent=11 // pred_check_branch
        %148 = sbr.rel (%p146) target = $region24
      $region23: #{_lambda_.4} parent=11 // pred_region
        _
      $region24: #{_lambda_.4} parent=11 // pred_fallthru
        _
    $region12: #{_lambda_.4} parent=5 // pred_fallthru
      _
    %p149 = scmp.lt.s32.totalorder %s10, 2
    // Predicated region
    $region25: #{_lambda_.4} parent=5 // pred_check
      %p150 = pneg %p149
    $region26: #{_lambda_.4} parent=5 // pred_check_branch
      %152 = sbr.rel (%p150) target = $region28
    $region27: #{_lambda_.4} parent=5 // pred_region
      // Predicated region
      $region29: #{_lambda_.4} parent=27 // pred_check
        %p153 = pneg %p30
      $region30: #{_lambda_.4} parent=27 // pred_check_branch
        %155 = sbr.rel (%p153) target = $region32
      $region31: #{_lambda_.4} parent=27 // pred_region
        %s156 = smul.u32 32, %s10
        %p157 = scmp.lt.s32.totalorder %s156, 63
        %s158 = scalar_select %p157, %s156, 63
        %s159 = smul.addr %s158, 3
        %s160 = smul.addr %s159, 4
        %s161 = scalar_lea.vmem %s0, %s160
        %s162 = smul.u32 32, %s10
      $region32: #{_lambda_.4} parent=27 // pred_fallthru
        _
    $region28: #{_lambda_.4} parent=5 // pred_fallthru
      _
    %p163 = scmp.le.s32.totalorder 1, %s10
    %p164 = scmp.lt.s32.totalorder %s10, 3
    %p165 = pnand %p163, %p164
    %p166 = pneg %p165
    // Predicated region
    $region33: #{_lambda_.4} parent=5 // pred_check
      _
    $region34: #{_lambda_.4} parent=5 // pred_check_branch
      %168 = sbr.rel (%p165) target = $region36
    $region35: #{_lambda_.4} parent=5 // pred_region
      %s169 = ssub.s32 %s10, 1
      %s170 = smul.u32 32, %s15
      %p171 = scmp.lt.s32.totalorder %s170, 63
      %s172 = scalar_select %p171, %s170, 63
      %s173 = smul.addr %s172, 3
      %s174 = smul.addr %s173, 4
      %s175 = scalar_lea.vmem %s0, %s174
      %p176 = pneg %p36
      %p177 = pneg %p33
      %p178 = pneg %p57
      %p179 = pneg %p54
      %p180 = pneg %p78
      %p181 = pneg %p75
      %p182 = pneg %p99
      %p183 = pneg %p96
      %p184 = pneg %p125
      %p185 = pneg %p122
      %s186 = smul.u32 32, %s15
      %p187 = scmp.lt.s32.totalorder %s186, 63
      %s188 = scalar_select %p187, %s186, 63
      %s189 = smul.addr %s188, 4
      %s190 = scalar_lea.vmem %s4, %s189
      %s191 = smul.u32 32, %s15
      %p192 = scmp.lt.s32.totalorder %s191, 63
      %s193 = scalar_select %p192, %s191, 63
      %s194 = smul.addr %s193, 3
      %s195 = smul.addr %s194, 4
      %s196 = scalar_lea.vmem %s0, %s195
      %s197 = smul.u32 32, %s15
      %s198 = smul.u32 32, %s15
      %p199 = scmp.lt.s32.totalorder %s198, 63
      %s200 = scalar_select %p199, %s198, 63
      %s201 = smul.addr %s200, 4
      %s202 = scalar_lea.vmem %s4, %s201
      %s203 = smul.u32 32, %s15
      %v205 = vld [vmem:[%s196] sm:$0xff]
      %v206 = vld [vmem:[%s196 + $0x8] sm:$0xf]
      %v207 = vld [vmem:[%s196 + $0xc] sm:$0xff]
      %v208 = vld [vmem:[%s196 + $0x14] sm:$0xf]
      %v209 = vld [vmem:[%s196 + $0x18] sm:$0xff]
      %v210 = vld [vmem:[%s196 + $0x20] sm:$0xf]
      %v211 = vld [vmem:[%s196 + $0x24] sm:$0xff]
      %v212 = vld [vmem:[%s196 + $0x2c] sm:$0xf]
      %v213 = vld [vmem:[%s196 + $0x30] sm:$0xff]
      %v214 = vld [vmem:[%s196 + $0x38] sm:$0xf]
      %v215 = vld [vmem:[%s196 + $0x3c] sm:$0xff]
      %v216 = vld [vmem:[%s196 + $0x44] sm:$0xf]
      %v217 = vld [vmem:[%s196 + $0x48] sm:$0xff]
      %v218 = vld [vmem:[%s196 + $0x50] sm:$0xf]
      %v219 = vld [vmem:[%s196 + $0x54] sm:$0xff]
      %v220 = vld [vmem:[%s196 + $0x5c] sm:$0xf]
      %v221 = vld [vmem:[%s196 + $0x60] sm:$0xff]
      %v222 = vld [vmem:[%s196 + $0x68] sm:$0xf]
      %v223 = vld [vmem:[%s196 + $0x6c] sm:$0xff]
      %v224 = vld [vmem:[%s196 + $0x74] sm:$0xf]
      %v225 = vld [vmem:[%s196 + $0x78] sm:$0xff]
      %v226 = vld [vmem:[%s196 + $0x80] sm:$0xf]
      %v227 = vld [vmem:[%s196 + $0x84] sm:$0xff]
      %v228 = vld [vmem:[%s196 + $0x8c] sm:$0xf]
      %v229 = vld [vmem:[%s196 + $0x90] sm:$0xff]
      %v230 = vld [vmem:[%s196 + $0x98] sm:$0xf]
      %v231 = vld [vmem:[%s196 + $0x9c] sm:$0xff]
      %v232 = vld [vmem:[%s196 + $0xa4] sm:$0xf]
      %v233 = vld [vmem:[%s196 + $0xa8] sm:$0xff]
      %v234 = vld [vmem:[%s196 + $0xb0] sm:$0xf]
      %v235 = vld [vmem:[%s196 + $0xb4] sm:$0xff]
      %v236 = vld [vmem:[%s196 + $0xbc] sm:$0xf]
      %v237 = vld [vmem:[%s196 + $0xc0] sm:$0xff]
      %v238 = vld [vmem:[%s196 + $0xc8] sm:$0xf]
      %v239 = vld [vmem:[%s196 + $0xcc] sm:$0xff]
      %v240 = vld [vmem:[%s196 + $0xd4] sm:$0xf]
      %v241 = vld [vmem:[%s196 + $0xd8] sm:$0xff]
      %v242 = vld [vmem:[%s196 + $0xe0] sm:$0xf]
      %v243 = vld [vmem:[%s196 + $0xe4] sm:$0xff]
      %v244 = vld [vmem:[%s196 + $0xec] sm:$0xf]
      %v245 = vld [vmem:[%s196 + $0xf0] sm:$0xff]
      %v246 = vld [vmem:[%s196 + $0xf8] sm:$0xf]
      %v247 = vld [vmem:[%s196 + $0xfc] sm:$0xff]
      %v248 = vld [vmem:[%s196 + $0x104] sm:$0xf]
      %v249 = vld [vmem:[%s196 + $0x108] sm:$0xff]
      %v250 = vld [vmem:[%s196 + $0x110] sm:$0xf]
      %v251 = vld [vmem:[%s196 + $0x114] sm:$0xff]
      %v252 = vld [vmem:[%s196 + $0x11c] sm:$0xf]
      %v253 = vld [vmem:[%s196 + $0x120] sm:$0xff]
      %v254 = vld [vmem:[%s196 + $0x128] sm:$0xf]
      %v255 = vld [vmem:[%s196 + $0x12c] sm:$0xff]
      %v256 = vld [vmem:[%s196 + $0x134] sm:$0xf]
      %v257 = vld [vmem:[%s196 + $0x138] sm:$0xff]
      %v258 = vld [vmem:[%s196 + $0x140] sm:$0xf]
      %v259 = vld [vmem:[%s196 + $0x144] sm:$0xff]
      %v260 = vld [vmem:[%s196 + $0x14c] sm:$0xf]
      %v261 = vld [vmem:[%s196 + $0x150] sm:$0xff]
      %v262 = vld [vmem:[%s196 + $0x158] sm:$0xf]
      %v263 = vld [vmem:[%s196 + $0x15c] sm:$0xff]
      %v264 = vld [vmem:[%s196 + $0x164] sm:$0xf]
      %v265 = vld [vmem:[%s196 + $0x168] sm:$0xff]
      %v266 = vld [vmem:[%s196 + $0x170] sm:$0xf]
      %v267 = vld [vmem:[%s196 + $0x174] sm:$0xff]
      %v268 = vld [vmem:[%s196 + $0x17c] sm:$0xf]
      %v269 = vld [vmem:[%s1] sm:$0xf]
      %v270 = vld [vmem:[%s1 + $0x4] sm:$0xf]
      %v271 = vld [vmem:[%s1 + $0x8] sm:$0xf]
      %v272 = vld [vmem:[%s1 + $0xc] sm:$0xf]
      %v273 = vld [vmem:[%s1 + $0x10] sm:$0xf]
      %v274 = vld [vmem:[%s1 + $0x14] sm:$0xf]
      %v275 = vld [vmem:[%s1 + $0x18] sm:$0xf]
      %v276 = vld [vmem:[%s1 + $0x1c] sm:$0xf]
      %v277 = vld [vmem:[%s1 + $0x20] sm:$0xf]
      %v278 = vld [vmem:[%s1 + $0x24] sm:$0xf]
      %v279 = vld [vmem:[%s1 + $0x28] sm:$0xf]
      %v280 = vld [vmem:[%s1 + $0x2c] sm:$0xf]
      %v281 = vld [vmem:[%s1 + $0x30] sm:$0xf]
      %v282 = vld [vmem:[%s1 + $0x34] sm:$0xf]
      %v283 = vld [vmem:[%s1 + $0x38] sm:$0xf]
      %v284 = vld [vmem:[%s1 + $0x3c] sm:$0xf]
      %v285 = vld [vmem:[%s1 + $0x40] sm:$0xf]
      %v286 = vld [vmem:[%s1 + $0x44] sm:$0xf]
      %v287 = vld [vmem:[%s1 + $0x48] sm:$0xf]
      %v288 = vld [vmem:[%s1 + $0x4c] sm:$0xf]
      %v289 = vld [vmem:[%s1 + $0x50] sm:$0xf]
      %v290 = vld [vmem:[%s1 + $0x54] sm:$0xf]
      %v291 = vld [vmem:[%s1 + $0x58] sm:$0xf]
      %v292 = vld [vmem:[%s1 + $0x5c] sm:$0xf]
      %v293 = vld [vmem:[%s1 + $0x60] sm:$0xf]
      %v294 = vld [vmem:[%s1 + $0x64] sm:$0xf]
      %v295 = vld [vmem:[%s1 + $0x68] sm:$0xf]
      %v296 = vld [vmem:[%s1 + $0x6c] sm:$0xf]
      %v297 = vld [vmem:[%s1 + $0x70] sm:$0xf]
      %v298 = vld [vmem:[%s1 + $0x74] sm:$0xf]
      %v299 = vld [vmem:[%s1 + $0x78] sm:$0xf]
      %v300 = vld [vmem:[%s1 + $0x7c] sm:$0xf]
      %v301 = vld [vmem:[%s1 + $0x80] sm:$0xf]
      %v302 = vld [vmem:[%s1 + $0x84] sm:$0xf]
      %v303 = vld [vmem:[%s1 + $0x88] sm:$0xf]
      %v304 = vld [vmem:[%s1 + $0x8c] sm:$0xf]
      %v369 = vunpack.c.l.b16 %v205
      %v370 = vunpack.c.h.b16 %v205
      %v371 = vunpack.c.l.b16 %v206
      %v372 = vunpack.c.l.b16 %v207
      %v373 = vunpack.c.h.b16 %v207
      %v374 = vunpack.c.l.b16 %v208
      %v375 = vunpack.c.l.b16 %v209
      %v376 = vunpack.c.h.b16 %v209
      %v377 = vunpack.c.l.b16 %v210
      %v378 = vunpack.c.l.b16 %v211
      %v379 = vunpack.c.h.b16 %v211
      %v380 = vunpack.c.l.b16 %v212
      %v381 = vunpack.c.l.b16 %v213
      %v382 = vunpack.c.h.b16 %v213
      %v383 = vunpack.c.l.b16 %v214
      %v384 = vunpack.c.l.b16 %v215
      %v385 = vunpack.c.h.b16 %v215
      %v386 = vunpack.c.l.b16 %v216
      %v387 = vunpack.c.l.b16 %v217
      %v388 = vunpack.c.h.b16 %v217
      %v389 = vunpack.c.l.b16 %v218
      %v390 = vunpack.c.l.b16 %v219
      %v391 = vunpack.c.h.b16 %v219
      %v392 = vunpack.c.l.b16 %v220
      %v393 = vunpack.c.l.b16 %v221
      %v394 = vunpack.c.h.b16 %v221
      %v395 = vunpack.c.l.b16 %v222
      %v396 = vunpack.c.l.b16 %v223
      %v397 = vunpack.c.h.b16 %v223
      %v398 = vunpack.c.l.b16 %v224
      %v399 = vunpack.c.l.b16 %v225
      %v400 = vunpack.c.h.b16 %v225
      %v401 = vunpack.c.l.b16 %v226
      %v402 = vunpack.c.l.b16 %v227
      %v403 = vunpack.c.h.b16 %v227
      %v404 = vunpack.c.l.b16 %v228
      %v405 = vunpack.c.l.b16 %v229
      %v406 = vunpack.c.h.b16 %v229
      %v407 = vunpack.c.l.b16 %v230
      %v408 = vunpack.c.l.b16 %v231
      %v409 = vunpack.c.h.b16 %v231
      %v410 = vunpack.c.l.b16 %v232
      %v411 = vunpack.c.l.b16 %v233
      %v412 = vunpack.c.h.b16 %v233
      %v413 = vunpack.c.l.b16 %v234
      %v414 = vunpack.c.l.b16 %v235
      %v415 = vunpack.c.h.b16 %v235
      %v416 = vunpack.c.l.b16 %v236
      %v417 = vunpack.c.l.b16 %v237
      %v418 = vunpack.c.h.b16 %v237
      %v419 = vunpack.c.l.b16 %v238
      %v420 = vunpack.c.l.b16 %v239
      %v421 = vunpack.c.h.b16 %v239
      %v422 = vunpack.c.l.b16 %v240
      %v423 = vunpack.c.l.b16 %v241
      %v424 = vunpack.c.h.b16 %v241
      %v425 = vunpack.c.l.b16 %v242
      %v426 = vunpack.c.l.b16 %v243
      %v427 = vunpack.c.h.b16 %v243
      %v428 = vunpack.c.l.b16 %v244
      %v429 = vunpack.c.l.b16 %v245
      %v430 = vunpack.c.h.b16 %v245
      %v431 = vunpack.c.l.b16 %v246
      %v432 = vunpack.c.l.b16 %v247
      %v433 = vunpack.c.h.b16 %v247
      %v434 = vunpack.c.l.b16 %v248
      %v435 = vunpack.c.l.b16 %v249
      %v436 = vunpack.c.h.b16 %v249
      %v437 = vunpack.c.l.b16 %v250
      %v438 = vunpack.c.l.b16 %v251
      %v439 = vunpack.c.h.b16 %v251
      %v440 = vunpack.c.l.b16 %v252
      %v441 = vunpack.c.l.b16 %v253
      %v442 = vunpack.c.h.b16 %v253
      %v443 = vunpack.c.l.b16 %v254
      %v444 = vunpack.c.l.b16 %v255
      %v445 = vunpack.c.h.b16 %v255
      %v446 = vunpack.c.l.b16 %v256
      %v447 = vunpack.c.l.b16 %v257
      %v448 = vunpack.c.h.b16 %v257
      %v449 = vunpack.c.l.b16 %v258
      %v450 = vunpack.c.l.b16 %v259
      %v451 = vunpack.c.h.b16 %v259
      %v452 = vunpack.c.l.b16 %v260
      %v453 = vunpack.c.l.b16 %v261
      %v454 = vunpack.c.h.b16 %v261
      %v455 = vunpack.c.l.b16 %v262
      %v456 = vunpack.c.l.b16 %v263
      %v457 = vunpack.c.h.b16 %v263
      %v458 = vunpack.c.l.b16 %v264
      %v459 = vunpack.c.l.b16 %v265
      %v460 = vunpack.c.h.b16 %v265
      %v461 = vunpack.c.l.b16 %v266
      %v462 = vunpack.c.l.b16 %v267
      %v463 = vunpack.c.h.b16 %v267
      %v464 = vunpack.c.l.b16 %v268
      %v465 = vpack.c.b16 %v372, %v369
      %v466 = vpack.c.b16 %v373, %v370
      %v467 = vpack.c.b16 %v374, %v371
      %v468 = vpack.c.b16 %v378, %v375
      %v469 = vpack.c.b16 %v379, %v376
      %v470 = vpack.c.b16 %v380, %v377
      %v471 = vpack.c.b16 %v384, %v381
      %v472 = vpack.c.b16 %v385, %v382
      %v473 = vpack.c.b16 %v386, %v383
      %v474 = vpack.c.b16 %v390, %v387
      %v475 = vpack.c.b16 %v391, %v388
      %v476 = vpack.c.b16 %v392, %v389
      %v477 = vpack.c.b16 %v396, %v393
      %v478 = vpack.c.b16 %v397, %v394
      %v479 = vpack.c.b16 %v398, %v395
      %v480 = vpack.c.b16 %v402, %v399
      %v481 = vpack.c.b16 %v403, %v400
      %v482 = vpack.c.b16 %v404, %v401
      %v483 = vpack.c.b16 %v408, %v405
      %v484 = vpack.c.b16 %v409, %v406
      %v485 = vpack.c.b16 %v410, %v407
      %v486 = vpack.c.b16 %v414, %v411
      %v487 = vpack.c.b16 %v415, %v412
      %v488 = vpack.c.b16 %v416, %v413
      %v489 = vpack.c.b16 %v420, %v417
      %v490 = vpack.c.b16 %v421, %v418
      %v491 = vpack.c.b16 %v422, %v419
      %v492 = vpack.c.b16 %v426, %v423
      %v493 = vpack.c.b16 %v427, %v424
      %v494 = vpack.c.b16 %v428, %v425
      %v495 = vpack.c.b16 %v432, %v429
      %v496 = vpack.c.b16 %v433, %v430
      %v497 = vpack.c.b16 %v434, %v431
      %v498 = vpack.c.b16 %v438, %v435
      %v499 = vpack.c.b16 %v439, %v436
      %v500 = vpack.c.b16 %v440, %v437
      %v501 = vpack.c.b16 %v444, %v441
      %v502 = vpack.c.b16 %v445, %v442
      %v503 = vpack.c.b16 %v446, %v443
      %v504 = vpack.c.b16 %v450, %v447
      %v505 = vpack.c.b16 %v451, %v448
      %v506 = vpack.c.b16 %v452, %v449
      %v507 = vpack.c.b16 %v456, %v453
      %v508 = vpack.c.b16 %v457, %v454
      %v509 = vpack.c.b16 %v458, %v455
      %v510 = vpack.c.b16 %v462, %v459
      %v511 = vpack.c.b16 %v463, %v460
      %v512 = vpack.c.b16 %v464, %v461
      %v581 = vunpack.c.l.b16 %v269
      %v582 = vunpack.c.l.b16 %v270
      %v583 = vunpack.c.l.b16 %v271
      %v584 = vunpack.c.l.b16 %v272
      %v585 = vunpack.c.l.b16 %v273
      %v586 = vunpack.c.l.b16 %v274
      %v587 = vunpack.c.l.b16 %v275
      %v588 = vunpack.c.l.b16 %v276
      %v589 = vunpack.c.l.b16 %v277
      %v590 = vunpack.c.l.b16 %v278
      %v591 = vunpack.c.l.b16 %v279
      %v592 = vunpack.c.l.b16 %v280
      %v593 = vunpack.c.l.b16 %v281
      %v594 = vunpack.c.l.b16 %v282
      %v595 = vunpack.c.l.b16 %v283
      %v596 = vunpack.c.l.b16 %v284
      %v597 = vunpack.c.l.b16 %v285
      %v598 = vunpack.c.l.b16 %v286
      %v599 = vunpack.c.l.b16 %v287
      %v600 = vunpack.c.l.b16 %v288
      %v601 = vunpack.c.l.b16 %v289
      %v602 = vunpack.c.l.b16 %v290
      %v603 = vunpack.c.l.b16 %v291
      %v604 = vunpack.c.l.b16 %v292
      %v605 = vunpack.c.l.b16 %v293
      %v606 = vunpack.c.l.b16 %v294
      %v607 = vunpack.c.l.b16 %v295
      %v608 = vunpack.c.l.b16 %v296
      %v609 = vunpack.c.l.b16 %v297
      %v610 = vunpack.c.l.b16 %v298
      %v611 = vunpack.c.l.b16 %v299
      %v612 = vunpack.c.l.b16 %v300
      %v613 = vunpack.c.l.b16 %v301
      %v614 = vunpack.c.l.b16 %v302
      %v615 = vunpack.c.l.b16 %v303
      %v616 = vunpack.c.l.b16 %v304
      %v617 = vpack.c.b16 %v582, %v581
      %v618 = vpack.c.b16 %v584, %v583
      %v619 = vpack.c.b16 %v586, %v585
      %v620 = vpack.c.b16 %v588, %v587
      %v621 = vpack.c.b16 %v590, %v589
      %v622 = vpack.c.b16 %v592, %v591
      %v623 = vpack.c.b16 %v594, %v593
      %v624 = vpack.c.b16 %v596, %v595
      %v625 = vpack.c.b16 %v598, %v597
      %v626 = vpack.c.b16 %v600, %v599
      %v627 = vpack.c.b16 %v602, %v601
      %v628 = vpack.c.b16 %v604, %v603
      %v629 = vpack.c.b16 %v606, %v605
      %v630 = vpack.c.b16 %v608, %v607
      %v631 = vpack.c.b16 %v610, %v609
      %v632 = vpack.c.b16 %v612, %v611
      %v633 = vpack.c.b16 %v614, %v613
      %v634 = vpack.c.b16 %v616, %v615
      %vm653 = vcmask 261120
      %v655 = vsel %vm653, %v467, 0
      %v658 = vsel %vm653, %v470, 0
      %v661 = vsel %vm653, %v473, 0
      %v664 = vsel %vm653, %v476, 0
      %v667 = vsel %vm653, %v479, 0
      %v670 = vsel %vm653, %v482, 0
      %v673 = vsel %vm653, %v485, 0
      %v676 = vsel %vm653, %v488, 0
      %v679 = vsel %vm653, %v491, 0
      %v682 = vsel %vm653, %v494, 0
      %v685 = vsel %vm653, %v497, 0
      %v688 = vsel %vm653, %v500, 0
      %v691 = vsel %vm653, %v503, 0
      %v694 = vsel %vm653, %v506, 0
      %v697 = vsel %vm653, %v509, 0
      %v700 = vsel %vm653, %v512, 0
      %702 = vmatpush.bf16.msra.mxu0 %v624
      %703 = vmatpush.bf16.msra.mxu0 %v623
      %704 = vmatpush.bf16.msra.mxu0 %v622
      %705 = vmatpush.bf16.msra.mxu0 %v621
      %706 = vmatpush.bf16.msra.mxu0 %v620
      %707 = vmatpush.bf16.msra.mxu0 %v619
      %708 = vmatpush.bf16.msra.mxu0 %v618
      %709 = vmatpush.bf16.msra.mxu0 %v617
      %710 = vmatmul.bf16.gmra.mxu0 %v465
      %v711 = vpop.f32.mrf.mxu0
      %v712 = vadd.f32 0.0, %v711
      %v713 = vpop.f32.mrf.mxu0
      %v714 = vadd.f32 0.0, %v713
      %715 = vmatmul.bf16.gmra.mxu0 %v468
      %v716 = vpop.f32.mrf.mxu0
      %v717 = vadd.f32 0.0, %v716
      %v718 = vpop.f32.mrf.mxu0
      %v719 = vadd.f32 0.0, %v718
      %720 = vmatmul.bf16.gmra.mxu0 %v471
      %v721 = vpop.f32.mrf.mxu0
      %v722 = vadd.f32 0.0, %v721
      %v723 = vpop.f32.mrf.mxu0
      %v724 = vadd.f32 0.0, %v723
      %725 = vmatmul.bf16.gmra.mxu0 %v474
      %v726 = vpop.f32.mrf.mxu0
      %v727 = vadd.f32 0.0, %v726
      %v728 = vpop.f32.mrf.mxu0
      %v729 = vadd.f32 0.0, %v728
      %730 = vmatmul.bf16.gmra.mxu0 %v477
      %v731 = vpop.f32.mrf.mxu0
      %v732 = vadd.f32 0.0, %v731
      %v733 = vpop.f32.mrf.mxu0
      %v734 = vadd.f32 0.0, %v733
      %735 = vmatmul.bf16.gmra.mxu0 %v480
      %v736 = vpop.f32.mrf.mxu0
      %v737 = vadd.f32 0.0, %v736
      %v738 = vpop.f32.mrf.mxu0
      %v739 = vadd.f32 0.0, %v738
      %740 = vmatmul.bf16.gmra.mxu0 %v483
      %v741 = vpop.f32.mrf.mxu0
      %v742 = vadd.f32 0.0, %v741
      %v743 = vpop.f32.mrf.mxu0
      %v744 = vadd.f32 0.0, %v743
      %745 = vmatmul.bf16.gmra.mxu0 %v486
      %v746 = vpop.f32.mrf.mxu0
      %v747 = vadd.f32 0.0, %v746
      %v748 = vpop.f32.mrf.mxu0
      %v749 = vadd.f32 0.0, %v748
      %750 = vmatmul.bf16.gmra.mxu0 %v489
      %v751 = vpop.f32.mrf.mxu0
      %v752 = vadd.f32 0.0, %v751
      %v753 = vpop.f32.mrf.mxu0
      %v754 = vadd.f32 0.0, %v753
      %755 = vmatmul.bf16.gmra.mxu0 %v492
      %v756 = vpop.f32.mrf.mxu0
      %v757 = vadd.f32 0.0, %v756
      %v758 = vpop.f32.mrf.mxu0
      %v759 = vadd.f32 0.0, %v758
      %760 = vmatmul.bf16.gmra.mxu0 %v495
      %v761 = vpop.f32.mrf.mxu0
      %v762 = vadd.f32 0.0, %v761
      %v763 = vpop.f32.mrf.mxu0
      %v764 = vadd.f32 0.0, %v763
      %765 = vmatmul.bf16.gmra.mxu0 %v498
      %v766 = vpop.f32.mrf.mxu0
      %v767 = vadd.f32 0.0, %v766
      %v768 = vpop.f32.mrf.mxu0
      %v769 = vadd.f32 0.0, %v768
      %770 = vmatmul.bf16.gmra.mxu0 %v501
      %v771 = vpop.f32.mrf.mxu0
      %v772 = vadd.f32 0.0, %v771
      %v773 = vpop.f32.mrf.mxu0
      %v774 = vadd.f32 0.0, %v773
      %775 = vmatmul.bf16.gmra.mxu0 %v504
      %v776 = vpop.f32.mrf.mxu0
      %v777 = vadd.f32 0.0, %v776
      %v778 = vpop.f32.mrf.mxu0
      %v779 = vadd.f32 0.0, %v778
      %780 = vmatmul.bf16.gmra.mxu0 %v507
      %v781 = vpop.f32.mrf.mxu0
      %v782 = vadd.f32 0.0, %v781
      %v783 = vpop.f32.mrf.mxu0
      %v784 = vadd.f32 0.0, %v783
      %785 = vmatmul.bf16.gmra.mxu0 %v510
      %v786 = vpop.f32.mrf.mxu0
      %v787 = vadd.f32 0.0, %v786
      %v788 = vpop.f32.mrf.mxu0
      %v789 = vadd.f32 0.0, %v788
      %790 = vdwg.mxu0
      %791 = vmatpush.bf16.msra.mxu0 %v632
      %792 = vmatpush.bf16.msra.mxu0 %v631
      %793 = vmatpush.bf16.msra.mxu0 %v630
      %794 = vmatpush.bf16.msra.mxu0 %v629
      %795 = vmatpush.bf16.msra.mxu0 %v628
      %796 = vmatpush.bf16.msra.mxu0 %v627
      %797 = vmatpush.bf16.msra.mxu0 %v626
      %798 = vmatpush.bf16.msra.mxu0 %v625
      %799 = vmatmul.bf16.gmra.mxu0 %v466
      %v800 = vpop.f32.mrf.mxu0
      %v801 = vadd.f32 %v712, %v800
      %v802 = vpop.f32.mrf.mxu0
      %v803 = vadd.f32 %v714, %v802
      %804 = vmatmul.bf16.gmra.mxu0 %v469
      %v805 = vpop.f32.mrf.mxu0
      %v806 = vadd.f32 %v717, %v805
      %v807 = vpop.f32.mrf.mxu0
      %v808 = vadd.f32 %v719, %v807
      %809 = vmatmul.bf16.gmra.mxu0 %v472
      %v810 = vpop.f32.mrf.mxu0
      %v811 = vadd.f32 %v722, %v810
      %v812 = vpop.f32.mrf.mxu0
      %v813 = vadd.f32 %v724, %v812
      %814 = vmatmul.bf16.gmra.mxu0 %v475
      %v815 = vpop.f32.mrf.mxu0
      %v816 = vadd.f32 %v727, %v815
      %v817 = vpop.f32.mrf.mxu0
      %v818 = vadd.f32 %v729, %v817
      %819 = vmatmul.bf16.gmra.mxu0 %v478
      %v820 = vpop.f32.mrf.mxu0
      %v821 = vadd.f32 %v732, %v820
      %v822 = vpop.f32.mrf.mxu0
      %v823 = vadd.f32 %v734, %v822
      %824 = vmatmul.bf16.gmra.mxu0 %v481
      %v825 = vpop.f32.mrf.mxu0
      %v826 = vadd.f32 %v737, %v825
      %v827 = vpop.f32.mrf.mxu0
      %v828 = vadd.f32 %v739, %v827
      %829 = vmatmul.bf16.gmra.mxu0 %v484
      %v830 = vpop.f32.mrf.mxu0
      %v831 = vadd.f32 %v742, %v830
      %v832 = vpop.f32.mrf.mxu0
      %v833 = vadd.f32 %v744, %v832
      %834 = vmatmul.bf16.gmra.mxu0 %v487
      %v835 = vpop.f32.mrf.mxu0
      %v836 = vadd.f32 %v747, %v835
      %v837 = vpop.f32.mrf.mxu0
      %v838 = vadd.f32 %v749, %v837
      %839 = vmatmul.bf16.gmra.mxu0 %v490
      %v840 = vpop.f32.mrf.mxu0
      %v841 = vadd.f32 %v752, %v840
      %v842 = vpop.f32.mrf.mxu0
      %v843 = vadd.f32 %v754, %v842
      %844 = vmatmul.bf16.gmra.mxu0 %v493
      %v845 = vpop.f32.mrf.mxu0
      %v846 = vadd.f32 %v757, %v845
      %v847 = vpop.f32.mrf.mxu0
      %v848 = vadd.f32 %v759, %v847
      %849 = vmatmul.bf16.gmra.mxu0 %v496
      %v850 = vpop.f32.mrf.mxu0
      %v851 = vadd.f32 %v762, %v850
      %v852 = vpop.f32.mrf.mxu0
      %v853 = vadd.f32 %v764, %v852
      %854 = vmatmul.bf16.gmra.mxu0 %v499
      %v855 = vpop.f32.mrf.mxu0
      %v856 = vadd.f32 %v767, %v855
      %v857 = vpop.f32.mrf.mxu0
      %v858 = vadd.f32 %v769, %v857
      %859 = vmatmul.bf16.gmra.mxu0 %v502
      %v860 = vpop.f32.mrf.mxu0
      %v861 = vadd.f32 %v772, %v860
      %v862 = vpop.f32.mrf.mxu0
      %v863 = vadd.f32 %v774, %v862
      %864 = vmatmul.bf16.gmra.mxu0 %v505
      %v865 = vpop.f32.mrf.mxu0
      %v866 = vadd.f32 %v777, %v865
      %v867 = vpop.f32.mrf.mxu0
      %v868 = vadd.f32 %v779, %v867
      %869 = vmatmul.bf16.gmra.mxu0 %v508
      %v870 = vpop.f32.mrf.mxu0
      %v871 = vadd.f32 %v782, %v870
      %v872 = vpop.f32.mrf.mxu0
      %v873 = vadd.f32 %v784, %v872
      %874 = vmatmul.bf16.gmra.mxu0 %v511
      %v875 = vpop.f32.mrf.mxu0
      %v876 = vadd.f32 %v787, %v875
      %v877 = vpop.f32.mrf.mxu0
      %v878 = vadd.f32 %v789, %v877
      %879 = vdwg.mxu0
      %880 = vmatpush.bf16.msra.mxu0 0
      %881 = vmatpush.bf16.msra.mxu0 0
      %882 = vmatpush.bf16.msra.mxu0 0
      %883 = vmatpush.bf16.msra.mxu0 0
      %884 = vmatpush.bf16.msra.mxu0 0
      %885 = vmatpush.bf16.msra.mxu0 0
      %886 = vmatpush.bf16.msra.mxu0 %v634
      %887 = vmatpush.bf16.msra.mxu0 %v633
      %888 = vmatmul.bf16.gmra.mxu0 %v655
      %v889 = vpop.f32.mrf.mxu0
      %v890 = vadd.f32 %v801, %v889
      %v891 = vpop.f32.mrf.mxu0
      %v892 = vadd.f32 %v803, %v891
      %893 = vmatmul.bf16.gmra.mxu0 %v658
      %v894 = vpop.f32.mrf.mxu0
      %v895 = vadd.f32 %v806, %v894
      %v896 = vpop.f32.mrf.mxu0
      %v897 = vadd.f32 %v808, %v896
      %898 = vmatmul.bf16.gmra.mxu0 %v661
      %v899 = vpop.f32.mrf.mxu0
      %v900 = vadd.f32 %v811, %v899
      %v901 = vpop.f32.mrf.mxu0
      %v902 = vadd.f32 %v813, %v901
      %903 = vmatmul.bf16.gmra.mxu0 %v664
      %v904 = vpop.f32.mrf.mxu0
      %v905 = vadd.f32 %v816, %v904
      %v906 = vpop.f32.mrf.mxu0
      %v907 = vadd.f32 %v818, %v906
      %908 = vmatmul.bf16.gmra.mxu0 %v667
      %v909 = vpop.f32.mrf.mxu0
      %v910 = vadd.f32 %v821, %v909
      %v911 = vpop.f32.mrf.mxu0
      %v912 = vadd.f32 %v823, %v911
      %913 = vmatmul.bf16.gmra.mxu0 %v670
      %v914 = vpop.f32.mrf.mxu0
      %v915 = vadd.f32 %v826, %v914
      %v916 = vpop.f32.mrf.mxu0
      %v917 = vadd.f32 %v828, %v916
      %918 = vmatmul.bf16.gmra.mxu0 %v673
      %v919 = vpop.f32.mrf.mxu0
      %v920 = vadd.f32 %v831, %v919
      %v921 = vpop.f32.mrf.mxu0
      %v922 = vadd.f32 %v833, %v921
      %923 = vmatmul.bf16.gmra.mxu0 %v676
      %v924 = vpop.f32.mrf.mxu0
      %v925 = vadd.f32 %v836, %v924
      %v926 = vpop.f32.mrf.mxu0
      %v927 = vadd.f32 %v838, %v926
      %928 = vmatmul.bf16.gmra.mxu0 %v679
      %v929 = vpop.f32.mrf.mxu0
      %v930 = vadd.f32 %v841, %v929
      %v931 = vpop.f32.mrf.mxu0
      %v932 = vadd.f32 %v843, %v931
      %933 = vmatmul.bf16.gmra.mxu0 %v682
      %v934 = vpop.f32.mrf.mxu0
      %v935 = vadd.f32 %v846, %v934
      %v936 = vpop.f32.mrf.mxu0
      %v937 = vadd.f32 %v848, %v936
      %938 = vmatmul.bf16.gmra.mxu0 %v685
      %v939 = vpop.f32.mrf.mxu0
      %v940 = vadd.f32 %v851, %v939
      %v941 = vpop.f32.mrf.mxu0
      %v942 = vadd.f32 %v853, %v941
      %943 = vmatmul.bf16.gmra.mxu0 %v688
      %v944 = vpop.f32.mrf.mxu0
      %v945 = vadd.f32 %v856, %v944
      %v946 = vpop.f32.mrf.mxu0
      %v947 = vadd.f32 %v858, %v946
      %948 = vmatmul.bf16.gmra.mxu0 %v691
      %v949 = vpop.f32.mrf.mxu0
      %v950 = vadd.f32 %v861, %v949
      %v951 = vpop.f32.mrf.mxu0
      %v952 = vadd.f32 %v863, %v951
      %953 = vmatmul.bf16.gmra.mxu0 %v694
      %v954 = vpop.f32.mrf.mxu0
      %v955 = vadd.f32 %v866, %v954
      %v956 = vpop.f32.mrf.mxu0
      %v957 = vadd.f32 %v868, %v956
      %958 = vmatmul.bf16.gmra.mxu0 %v697
      %v959 = vpop.f32.mrf.mxu0
      %v960 = vadd.f32 %v871, %v959
      %v961 = vpop.f32.mrf.mxu0
      %v962 = vadd.f32 %v873, %v961
      %963 = vmatmul.bf16.gmra.mxu0 %v700
      %v964 = vpop.f32.mrf.mxu0
      %v965 = vadd.f32 %v876, %v964
      %v966 = vpop.f32.mrf.mxu0
      %v967 = vadd.f32 %v878, %v966
      %968 = vdwg.mxu0
      %v969 = vld [vmem:[%s2] sm:$0x1]
      %v971 = vperm.slane %v969, 0
      %v973 = vmul.f32 %v890, %v971
      %v974 = vmul.f32 %v892, %v971
      %v975 = vmul.f32 %v895, %v971
      %v976 = vmul.f32 %v897, %v971
      %v977 = vmul.f32 %v900, %v971
      %v978 = vmul.f32 %v902, %v971
      %v979 = vmul.f32 %v905, %v971
      %v980 = vmul.f32 %v907, %v971
      %v981 = vmul.f32 %v910, %v971
      %v982 = vmul.f32 %v912, %v971
      %v983 = vmul.f32 %v915, %v971
      %v984 = vmul.f32 %v917, %v971
      %v985 = vmul.f32 %v920, %v971
      %v986 = vmul.f32 %v922, %v971
      %v987 = vmul.f32 %v925, %v971
      %v988 = vmul.f32 %v927, %v971
      %v989 = vmul.f32 %v930, %v971
      %v990 = vmul.f32 %v932, %v971
      %v991 = vmul.f32 %v935, %v971
      %v992 = vmul.f32 %v937, %v971
      %v993 = vmul.f32 %v940, %v971
      %v994 = vmul.f32 %v942, %v971
      %v995 = vmul.f32 %v945, %v971
      %v996 = vmul.f32 %v947, %v971
      %v997 = vmul.f32 %v950, %v971
      %v998 = vmul.f32 %v952, %v971
      %v999 = vmul.f32 %v955, %v971
      %v1000 = vmul.f32 %v957, %v971
      %v1001 = vmul.f32 %v960, %v971
      %v1002 = vmul.f32 %v962, %v971
      %v1003 = vmul.f32 %v965, %v971
      %v1004 = vmul.f32 %v967, %v971
      %v1005 = vld [vmem:[%s3] sm:$0x1]
      %v1007 = vperm.slane %v1005, 0
      %v1009 = vadd.f32 %v973, %v1007
      %v1010 = vadd.f32 %v974, %v1007
      %v1011 = vadd.f32 %v975, %v1007
      %v1012 = vadd.f32 %v976, %v1007
      %v1013 = vadd.f32 %v977, %v1007
      %v1014 = vadd.f32 %v978, %v1007
      %v1015 = vadd.f32 %v979, %v1007
      %v1016 = vadd.f32 %v980, %v1007
      %v1017 = vadd.f32 %v981, %v1007
      %v1018 = vadd.f32 %v982, %v1007
      %v1019 = vadd.f32 %v983, %v1007
      %v1020 = vadd.f32 %v984, %v1007
      %v1021 = vadd.f32 %v985, %v1007
      %v1022 = vadd.f32 %v986, %v1007
      %v1023 = vadd.f32 %v987, %v1007
      %v1024 = vadd.f32 %v988, %v1007
      %v1025 = vadd.f32 %v989, %v1007
      %v1026 = vadd.f32 %v990, %v1007
      %v1027 = vadd.f32 %v991, %v1007
      %v1028 = vadd.f32 %v992, %v1007
      %v1029 = vadd.f32 %v993, %v1007
      %v1030 = vadd.f32 %v994, %v1007
      %v1031 = vadd.f32 %v995, %v1007
      %v1032 = vadd.f32 %v996, %v1007
      %v1033 = vadd.f32 %v997, %v1007
      %v1034 = vadd.f32 %v998, %v1007
      %v1035 = vadd.f32 %v999, %v1007
      %v1036 = vadd.f32 %v1000, %v1007
      %v1037 = vadd.f32 %v1001, %v1007
      %v1038 = vadd.f32 %v1002, %v1007
      %v1039 = vadd.f32 %v1003, %v1007
      %v1040 = vadd.f32 %v1004, %v1007
      %v1041 = vmax.f32 %v1009, 0.0
      %v1042 = vmax.f32 %v1010, 0.0
      %v1043 = vmax.f32 %v1011, 0.0
      %v1044 = vmax.f32 %v1012, 0.0
      %v1045 = vmax.f32 %v1013, 0.0
      %v1046 = vmax.f32 %v1014, 0.0
      %v1047 = vmax.f32 %v1015, 0.0
      %v1048 = vmax.f32 %v1016, 0.0
      %v1049 = vmax.f32 %v1017, 0.0
      %v1050 = vmax.f32 %v1018, 0.0
      %v1051 = vmax.f32 %v1019, 0.0
      %v1052 = vmax.f32 %v1020, 0.0
      %v1053 = vmax.f32 %v1021, 0.0
      %v1054 = vmax.f32 %v1022, 0.0
      %v1055 = vmax.f32 %v1023, 0.0
      %v1056 = vmax.f32 %v1024, 0.0
      %v1057 = vmax.f32 %v1025, 0.0
      %v1058 = vmax.f32 %v1026, 0.0
      %v1059 = vmax.f32 %v1027, 0.0
      %v1060 = vmax.f32 %v1028, 0.0
      %v1061 = vmax.f32 %v1029, 0.0
      %v1062 = vmax.f32 %v1030, 0.0
      %v1063 = vmax.f32 %v1031, 0.0
      %v1064 = vmax.f32 %v1032, 0.0
      %v1065 = vmax.f32 %v1033, 0.0
      %v1066 = vmax.f32 %v1034, 0.0
      %v1067 = vmax.f32 %v1035, 0.0
      %v1068 = vmax.f32 %v1036, 0.0
      %v1069 = vmax.f32 %v1037, 0.0
      %v1070 = vmax.f32 %v1038, 0.0
      %v1071 = vmax.f32 %v1039, 0.0
      %v1072 = vmax.f32 %v1040, 0.0
      %v1073 = vpack.c.bf16 %v1041, %v1041
      %v1074 = vpack.c.bf16 %v1042, %v1042
      %v1075 = vpack.c.bf16 %v1043, %v1043
      %v1076 = vpack.c.bf16 %v1044, %v1044
      %v1077 = vpack.c.bf16 %v1045, %v1045
      %v1078 = vpack.c.bf16 %v1046, %v1046
      %v1079 = vpack.c.bf16 %v1047, %v1047
      %v1080 = vpack.c.bf16 %v1048, %v1048
      %v1081 = vpack.c.bf16 %v1049, %v1049
      %v1082 = vpack.c.bf16 %v1050, %v1050
      %v1083 = vpack.c.bf16 %v1051, %v1051
      %v1084 = vpack.c.bf16 %v1052, %v1052
      %v1085 = vpack.c.bf16 %v1053, %v1053
      %v1086 = vpack.c.bf16 %v1054, %v1054
      %v1087 = vpack.c.bf16 %v1055, %v1055
      %v1088 = vpack.c.bf16 %v1056, %v1056
      %v1089 = vpack.c.bf16 %v1057, %v1057
      %v1090 = vpack.c.bf16 %v1058, %v1058
      %v1091 = vpack.c.bf16 %v1059, %v1059
      %v1092 = vpack.c.bf16 %v1060, %v1060
      %v1093 = vpack.c.bf16 %v1061, %v1061
      %v1094 = vpack.c.bf16 %v1062, %v1062
      %v1095 = vpack.c.bf16 %v1063, %v1063
      %v1096 = vpack.c.bf16 %v1064, %v1064
      %v1097 = vpack.c.bf16 %v1065, %v1065
      %v1098 = vpack.c.bf16 %v1066, %v1066
      %v1099 = vpack.c.bf16 %v1067, %v1067
      %v1100 = vpack.c.bf16 %v1068, %v1068
      %v1101 = vpack.c.bf16 %v1069, %v1069
      %v1102 = vpack.c.bf16 %v1070, %v1070
      %v1103 = vpack.c.bf16 %v1071, %v1071
      %v1104 = vpack.c.bf16 %v1072, %v1072
      %vm1105 = vcmask 388096
      %1106 = vst.msk [vmem:[%s202] sm:$0xf] %vm1105, %v1073
      %1107 = vst.msk [vmem:[%s202 + $0x4] sm:$0xf] %vm1105, %v1074
      %1108 = vst.msk [vmem:[%s202 + $0x8] sm:$0xf] %vm1105, %v1075
      %1109 = vst.msk [vmem:[%s202 + $0xc] sm:$0xf] %vm1105, %v1076
      %1110 = vst.msk [vmem:[%s202 + $0x10] sm:$0xf] %vm1105, %v1077
      %1111 = vst.msk [vmem:[%s202 + $0x14] sm:$0xf] %vm1105, %v1078
      %1112 = vst.msk [vmem:[%s202 + $0x18] sm:$0xf] %vm1105, %v1079
      %1113 = vst.msk [vmem:[%s202 + $0x1c] sm:$0xf] %vm1105, %v1080
      %1114 = vst.msk [vmem:[%s202 + $0x20] sm:$0xf] %vm1105, %v1081
      %1115 = vst.msk [vmem:[%s202 + $0x24] sm:$0xf] %vm1105, %v1082
      %1116 = vst.msk [vmem:[%s202 + $0x28] sm:$0xf] %vm1105, %v1083
      %1117 = vst.msk [vmem:[%s202 + $0x2c] sm:$0xf] %vm1105, %v1084
      %1118 = vst.msk [vmem:[%s202 + $0x30] sm:$0xf] %vm1105, %v1085
      %1119 = vst.msk [vmem:[%s202 + $0x34] sm:$0xf] %vm1105, %v1086
      %1120 = vst.msk [vmem:[%s202 + $0x38] sm:$0xf] %vm1105, %v1087
      %1121 = vst.msk [vmem:[%s202 + $0x3c] sm:$0xf] %vm1105, %v1088
      %1122 = vst.msk [vmem:[%s202 + $0x40] sm:$0xf] %vm1105, %v1089
      %1123 = vst.msk [vmem:[%s202 + $0x44] sm:$0xf] %vm1105, %v1090
      %1124 = vst.msk [vmem:[%s202 + $0x48] sm:$0xf] %vm1105, %v1091
      %1125 = vst.msk [vmem:[%s202 + $0x4c] sm:$0xf] %vm1105, %v1092
      %1126 = vst.msk [vmem:[%s202 + $0x50] sm:$0xf] %vm1105, %v1093
      %1127 = vst.msk [vmem:[%s202 + $0x54] sm:$0xf] %vm1105, %v1094
      %1128 = vst.msk [vmem:[%s202 + $0x58] sm:$0xf] %vm1105, %v1095
      %1129 = vst.msk [vmem:[%s202 + $0x5c] sm:$0xf] %vm1105, %v1096
      %1130 = vst.msk [vmem:[%s202 + $0x60] sm:$0xf] %vm1105, %v1097
      %1131 = vst.msk [vmem:[%s202 + $0x64] sm:$0xf] %vm1105, %v1098
      %1132 = vst.msk [vmem:[%s202 + $0x68] sm:$0xf] %vm1105, %v1099
      %1133 = vst.msk [vmem:[%s202 + $0x6c] sm:$0xf] %vm1105, %v1100
      %1134 = vst.msk [vmem:[%s202 + $0x70] sm:$0xf] %vm1105, %v1101
      %1135 = vst.msk [vmem:[%s202 + $0x74] sm:$0xf] %vm1105, %v1102
      %1136 = vst.msk [vmem:[%s202 + $0x78] sm:$0xf] %vm1105, %v1103
      %1137 = vst.msk [vmem:[%s202 + $0x7c] sm:$0xf] %vm1105, %v1104
      %s1138 = smul.u32 32, %s15
      %p1139 = scmp.lt.s32.totalorder %s1138, 63
      %s1140 = scalar_select %p1139, %s1138, 63
      %s1141 = smul.addr %s1140, 4
      %s1142 = scalar_lea.vmem %s4, %s1141
      // Predicated region
      $region37: #{_lambda_.4} parent=35 // pred_check
        %p1143 = pneg %p122
      $region38: #{_lambda_.4} parent=35 // pred_check_branch
        %1145 = sbr.rel (%p1143) target = $region40
      $region39: #{_lambda_.4} parent=35 // pred_region
        %s1146 = smul.u32 32, %s15
      $region40: #{_lambda_.4} parent=35 // pred_fallthru
        _
    $region36: #{_lambda_.4} parent=5 // pred_fallthru
      _
    %p1147 = scmp.le.s32.totalorder 2, %s10
    // Predicated region
    $region41: #{_lambda_.4} parent=5 // pred_check
      %p1148 = pneg %p1147
    $region42: #{_lambda_.4} parent=5 // pred_check_branch
      %1150 = sbr.rel (%p1148) target = $region44
    $region43: #{_lambda_.4} parent=5 // pred_region
      %s1151 = ssub.s32 %s10, 2
      // Predicated region
      $region45: #{_lambda_.4} parent=43 // pred_check
        %p1152 = pneg %p128
      $region46: #{_lambda_.4} parent=43 // pred_check_branch
        %1154 = sbr.rel (%p1152) target = $region48
      $region47: #{_lambda_.4} parent=43 // pred_region
        %s1155 = smul.u32 32, %s16
        %p1156 = scmp.lt.s32.totalorder %s1155, 63
        %s1157 = scalar_select %p1156, %s1155, 63
        %s1158 = smul.addr %s1157, 4
        %s1159 = scalar_lea.vmem %s4, %s1158
      $region48: #{_lambda_.4} parent=43 // pred_fallthru
        _
    $region44: #{_lambda_.4} parent=5 // pred_fallthru
      _
  $region6: #{_lambda_.4} parent=0 // loop_footer
    %s14 = sadd.s32 1, %s10
  $region7: #{_lambda_.4} parent=0 // loop_footer_branch
    %9 = sbr.rel target = $region3
  $region8: #{_lambda_.4} parent=0 // loop_exit
    _

// kernel: _lambda_.5
$region0: #{_lambda_.5}
  #allocation0 [shape = 'u32[]', space=smem, size = 0x4, offset = 0x4, fixed_abs, tag = 'smem constant byte address 0x4 - core index']
  #allocation1 [shape = 'u32[72,128]{1,0:T(1,128)}', space=vmem, size = 0x9000, scoped, tag = 'internal scratch']
  %s0 = inlined_call_operand.vmem [shape: bf16[512,288], index: 0, kind: input, shape index: {}]
  %s1 = inlined_call_operand.vmem [shape: bf16[512,432], index: 1, kind: input, shape index: {}]
  %s2 = inlined_call_operand.vmem [shape: bf16[512,128], index: 2, kind: input, shape index: {}]
  %s3 = inlined_call_operand.vmem [shape: f32[512,320], index: 3, kind: input, shape index: {}]
  %s4 = inlined_call_operand.vmem [shape: bf16[288,32], index: 4, kind: input, shape index: {}]
  %s5 = inlined_call_operand.vmem [shape: f32[1,32], index: 5, kind: input, shape index: {}]
  %s6 = inlined_call_operand.vmem [shape: f32[1,32], index: 6, kind: input, shape index: {}]
  %s7 = inlined_call_operand.vmem [shape: bf16[432,64], index: 7, kind: input, shape index: {}]
  %s8 = inlined_call_operand.vmem [shape: f32[1,64], index: 8, kind: input, shape index: {}]
  %s9 = inlined_call_operand.vmem [shape: f32[1,64], index: 9, kind: input, shape index: {}]
  %s10 = inlined_call_operand.vmem [shape: bf16[128,320], index: 10, kind: input, shape index: {}]
  %s11 = inlined_call_operand.vmem [shape: f32[1,320], index: 11, kind: input, shape index: {}]
  %s12 = inlined_call_operand.hbm [shape: f32[512,320], index: 12, kind: output, shape index: {}]
  %s13 = sld [smem:[#allocation0]]
  $region81: #{_lambda_.5} parent=0
    _
  %s15 = ssub.s32 1, %s13
  %s16 = scalar_select 0, %s15, %s13
  $region1: #{_lambda_.5} parent=0
    #allocation2 [shape = 'u8[786432]{0}', space=vmem, size = 0xc0000, scoped, tag = 'output window, operand 0']
    #allocation3 [shape = 's32[2]{0}', space=sflag, size = 0x8, scoped, tag = 'scoped memory for _lambda_.5']
    %17 = vsyncpa [#allocation3], 0
    %s18 = scalar_lea.sflag [#allocation3], 1
    %19 = vsyncpa %s18, 0
    loop: start=0, step=1, limit=4
    $region2: #{_lambda_.5} parent=1 // loop_pre_header
      _
    $region3: #{_lambda_.5} parent=1 // loop_header
      %s21 = sphi 0, %s25
      %p22 = scmp.ge.s32.totalorder %s21, 4
      %s31 = sphi 0, %s33
      %s34 = sphi 0, %s31
      %s35 = sphi 0, %s34
      %s51 = sphi 0, %s35
      %s57 = sphi 0, %s59
      %s60 = sphi 0, %s57
      %s61 = sphi 0, %s60
      %s77 = sphi 0, %s61
      %s83 = sphi 0, %s85
      %s86 = sphi 0, %s83
      %s87 = sphi 0, %s86
      %s103 = sphi 0, %s87
      %s109 = sphi 0, %s111
      %s112 = sphi 0, %s109
      %s113 = sphi 0, %s112
      %s129 = sphi 0, %s113
      %s133 = sphi 0, %s133
      %s135 = sphi 0, %s133
      %s136 = sphi 0, %s135
      %s150 = sphi 0, %s136
      %s154 = sphi 0, %s154
      %s156 = sphi 0, %s154
      %s157 = sphi 0, %s156
      %s171 = sphi 0, %s157
      %s175 = sphi 0, %s175
      %s177 = sphi 0, %s175
      %s178 = sphi 0, %s177
      %s192 = sphi 0, %s178
      %s196 = sphi 0, %s196
      %s198 = sphi 0, %s196
      %s199 = sphi 0, %s198
      %s213 = sphi 0, %s199
      %s217 = sphi 0, %s217
      %s219 = sphi 0, %s217
      %s220 = sphi 0, %s219
      %s234 = sphi 0, %s220
      %s238 = sphi 0, %s238
      %s240 = sphi 0, %s238
      %s241 = sphi 0, %s240
      %s255 = sphi 0, %s241
      %s259 = sphi 0, %s259
      %s261 = sphi 0, %s259
      %s262 = sphi 0, %s261
      %s276 = sphi 0, %s262
      %s280 = sphi 0, %s280
      %s282 = sphi 0, %s280
      %s283 = sphi 0, %s282
      %s297 = sphi 0, %s283
      %s303 = sphi 0, %s305
      %s306 = sphi 0, %s303
      %s307 = sphi 0, %s306
      %s323 = sphi 0, %s307
    $region4: #{_lambda_.5} parent=1 // loop_header_branch
      %24 = sbr.rel (%p22) target = $region8
    $region5: #{_lambda_.5} parent=1 // loop_body
      %s26 = ssub.s32 %s21, 1
      %s27 = ssub.s32 %s21, 2
      %s28 = sadd.s32 %s21, 1
      %s29 = ssub.s32 %s21, %s28
      %p30 = scmp.eq.s32.totalorder %s29, 0
      %s32 = sadd.s32 %s31, 1
      %s33 = scalar_select %p30, %s31, %s32
      %p36 = pneg %p30
      %p37 = scmp.eq.s32.totalorder %s21, 1
      %p38 = por %p36, %p37
      %p39 = scmp.ne.s32.totalorder %s31, %s34
      %p40 = scmp.eq.s32.totalorder %s21, 0
      %p41 = por %p39, %p40
      %p42 = scmp.ne.s32.totalorder %s31, %s34
      %p43 = scmp.eq.s32.totalorder %s26, 1
      %p44 = por %p42, %p43
      %p45 = scmp.ne.s32.totalorder %s34, %s35
      %p46 = scmp.eq.s32.totalorder %s26, 0
      %p47 = por %p45, %p46
      %p48 = scmp.ne.s32.totalorder %s34, %s35
      %p49 = scmp.eq.s32.totalorder %s27, 1
      %p50 = por %p48, %p49
      %p52 = scmp.ne.s32.totalorder %s35, %s51
      %p53 = scmp.eq.s32.totalorder %s27, 0
      %p54 = por %p52, %p53
      %s55 = ssub.s32 %s21, %s28
      %p56 = scmp.eq.s32.totalorder %s55, 0
      %s58 = sadd.s32 %s57, 1
      %s59 = scalar_select %p56, %s57, %s58
      %p62 = pneg %p56
      %p63 = scmp.eq.s32.totalorder %s21, 1
      %p64 = por %p62, %p63
      %p65 = scmp.ne.s32.totalorder %s57, %s60
      %p66 = scmp.eq.s32.totalorder %s21, 0
      %p67 = por %p65, %p66
      %p68 = scmp.ne.s32.totalorder %s57, %s60
      %p69 = scmp.eq.s32.totalorder %s26, 1
      %p70 = por %p68, %p69
      %p71 = scmp.ne.s32.totalorder %s60, %s61
      %p72 = scmp.eq.s32.totalorder %s26, 0
      %p73 = por %p71, %p72
      %p74 = scmp.ne.s32.totalorder %s60, %s61
      %p75 = scmp.eq.s32.totalorder %s27, 1
      %p76 = por %p74, %p75
      %p78 = scmp.ne.s32.totalorder %s61, %s77
      %p79 = scmp.eq.s32.totalorder %s27, 0
      %p80 = por %p78, %p79
      %s81 = ssub.s32 %s21, %s28
      %p82 = scmp.eq.s32.totalorder %s81, 0
      %s84 = sadd.s32 %s83, 1
      %s85 = scalar_select %p82, %s83, %s84
      %p88 = pneg %p82
      %p89 = scmp.eq.s32.totalorder %s21, 1
      %p90 = por %p88, %p89
      %p91 = scmp.ne.s32.totalorder %s83, %s86
      %p92 = scmp.eq.s32.totalorder %s21, 0
      %p93 = por %p91, %p92
      %p94 = scmp.ne.s32.totalorder %s83, %s86
      %p95 = scmp.eq.s32.totalorder %s26, 1
      %p96 = por %p94, %p95
      %p97 = scmp.ne.s32.totalorder %s86, %s87
      %p98 = scmp.eq.s32.totalorder %s26, 0
      %p99 = por %p97, %p98
      %p100 = scmp.ne.s32.totalorder %s86, %s87
      %p101 = scmp.eq.s32.totalorder %s27, 1
      %p102 = por %p100, %p101
      %p104 = scmp.ne.s32.totalorder %s87, %s103
      %p105 = scmp.eq.s32.totalorder %s27, 0
      %p106 = por %p104, %p105
      %s107 = ssub.s32 %s21, %s28
      %p108 = scmp.eq.s32.totalorder %s107, 0
      %s110 = sadd.s32 %s109, 1
      %s111 = scalar_select %p108, %s109, %s110
      %p114 = pneg %p108
      %p115 = scmp.eq.s32.totalorder %s21, 1
      %p116 = por %p114, %p115
      %p117 = scmp.ne.s32.totalorder %s109, %s112
      %p118 = scmp.eq.s32.totalorder %s21, 0
      %p119 = por %p117, %p118
      %p120 = scmp.ne.s32.totalorder %s109, %s112
      %p121 = scmp.eq.s32.totalorder %s26, 1
      %p122 = por %p120, %p121
      %p123 = scmp.ne.s32.totalorder %s112, %s113
      %p124 = scmp.eq.s32.totalorder %s26, 0
      %p125 = por %p123, %p124
      %p126 = scmp.ne.s32.totalorder %s112, %s113
      %p127 = scmp.eq.s32.totalorder %s27, 1
      %p128 = por %p126, %p127
      %p130 = scmp.ne.s32.totalorder %s113, %s129
      %p131 = scmp.eq.s32.totalorder %s27, 0
      %p132 = por %p130, %p131
      %s134 = sadd.s32 %s133, 1
      %p137 = scmp.eq.s32.totalorder %s21, 1
      %p138 = scmp.ne.s32.totalorder %s133, %s135
      %p139 = scmp.eq.s32.totalorder %s21, 0
      %p140 = por %p138, %p139
      %p141 = scmp.ne.s32.totalorder %s133, %s135
      %p142 = scmp.eq.s32.totalorder %s26, 1
      %p143 = por %p141, %p142
      %p144 = scmp.ne.s32.totalorder %s135, %s136
      %p145 = scmp.eq.s32.totalorder %s26, 0
      %p146 = por %p144, %p145
      %p147 = scmp.ne.s32.totalorder %s135, %s136
      %p148 = scmp.eq.s32.totalorder %s27, 1
      %p149 = por %p147, %p148
      %p151 = scmp.ne.s32.totalorder %s136, %s150
      %p152 = scmp.eq.s32.totalorder %s27, 0
      %p153 = por %p151, %p152
      %s155 = sadd.s32 %s154, 1
      %p158 = scmp.eq.s32.totalorder %s21, 1
      %p159 = scmp.ne.s32.totalorder %s154, %s156
      %p160 = scmp.eq.s32.totalorder %s21, 0
      %p161 = por %p159, %p160
      %p162 = scmp.ne.s32.totalorder %s154, %s156
      %p163 = scmp.eq.s32.totalorder %s26, 1
      %p164 = por %p162, %p163
      %p165 = scmp.ne.s32.totalorder %s156, %s157
      %p166 = scmp.eq.s32.totalorder %s26, 0
      %p167 = por %p165, %p166
      %p168 = scmp.ne.s32.totalorder %s156, %s157
      %p169 = scmp.eq.s32.totalorder %s27, 1
      %p170 = por %p168, %p169
      %p172 = scmp.ne.s32.totalorder %s157, %s171
      %p173 = scmp.eq.s32.totalorder %s27, 0
      %p174 = por %p172, %p173
      %s176 = sadd.s32 %s175, 1
      %p179 = scmp.eq.s32.totalorder %s21, 1
      %p180 = scmp.ne.s32.totalorder %s175, %s177
      %p181 = scmp.eq.s32.totalorder %s21, 0
      %p182 = por %p180, %p181
      %p183 = scmp.ne.s32.totalorder %s175, %s177
      %p184 = scmp.eq.s32.totalorder %s26, 1
      %p185 = por %p183, %p184
      %p186 = scmp.ne.s32.totalorder %s177, %s178
      %p187 = scmp.eq.s32.totalorder %s26, 0
      %p188 = por %p186, %p187
      %p189 = scmp.ne.s32.totalorder %s177, %s178
      %p190 = scmp.eq.s32.totalorder %s27, 1
      %p191 = por %p189, %p190
      %p193 = scmp.ne.s32.totalorder %s178, %s192
      %p194 = scmp.eq.s32.totalorder %s27, 0
      %p195 = por %p193, %p194
      %s197 = sadd.s32 %s196, 1
      %p200 = scmp.eq.s32.totalorder %s21, 1
      %p201 = scmp.ne.s32.totalorder %s196, %s198
      %p202 = scmp.eq.s32.totalorder %s21, 0
      %p203 = por %p201, %p202
      %p204 = scmp.ne.s32.totalorder %s196, %s198
      %p205 = scmp.eq.s32.totalorder %s26, 1
      %p206 = por %p204, %p205
      %p207 = scmp.ne.s32.totalorder %s198, %s199
      %p208 = scmp.eq.s32.totalorder %s26, 0
      %p209 = por %p207, %p208
      %p210 = scmp.ne.s32.totalorder %s198, %s199
      %p211 = scmp.eq.s32.totalorder %s27, 1
      %p212 = por %p210, %p211
      %p214 = scmp.ne.s32.totalorder %s199, %s213
      %p215 = scmp.eq.s32.totalorder %s27, 0
      %p216 = por %p214, %p215
      %s218 = sadd.s32 %s217, 1
      %p221 = scmp.eq.s32.totalorder %s21, 1
      %p222 = scmp.ne.s32.totalorder %s217, %s219
      %p223 = scmp.eq.s32.totalorder %s21, 0
      %p224 = por %p222, %p223
      %p225 = scmp.ne.s32.totalorder %s217, %s219
      %p226 = scmp.eq.s32.totalorder %s26, 1
      %p227 = por %p225, %p226
      %p228 = scmp.ne.s32.totalorder %s219, %s220
      %p229 = scmp.eq.s32.totalorder %s26, 0
      %p230 = por %p228, %p229
      %p231 = scmp.ne.s32.totalorder %s219, %s220
      %p232 = scmp.eq.s32.totalorder %s27, 1
      %p233 = por %p231, %p232
      %p235 = scmp.ne.s32.totalorder %s220, %s234
      %p236 = scmp.eq.s32.totalorder %s27, 0
      %p237 = por %p235, %p236
      %s239 = sadd.s32 %s238, 1
      %p242 = scmp.eq.s32.totalorder %s21, 1
      %p243 = scmp.ne.s32.totalorder %s238, %s240
      %p244 = scmp.eq.s32.totalorder %s21, 0
      %p245 = por %p243, %p244
      %p246 = scmp.ne.s32.totalorder %s238, %s240
      %p247 = scmp.eq.s32.totalorder %s26, 1
      %p248 = por %p246, %p247
      %p249 = scmp.ne.s32.totalorder %s240, %s241
      %p250 = scmp.eq.s32.totalorder %s26, 0
      %p251 = por %p249, %p250
      %p252 = scmp.ne.s32.totalorder %s240, %s241
      %p253 = scmp.eq.s32.totalorder %s27, 1
      %p254 = por %p252, %p253
      %p256 = scmp.ne.s32.totalorder %s241, %s255
      %p257 = scmp.eq.s32.totalorder %s27, 0
      %p258 = por %p256, %p257
      %s260 = sadd.s32 %s259, 1
      %p263 = scmp.eq.s32.totalorder %s21, 1
      %p264 = scmp.ne.s32.totalorder %s259, %s261
      %p265 = scmp.eq.s32.totalorder %s21, 0
      %p266 = por %p264, %p265
      %p267 = scmp.ne.s32.totalorder %s259, %s261
      %p268 = scmp.eq.s32.totalorder %s26, 1
      %p269 = por %p267, %p268
      %p270 = scmp.ne.s32.totalorder %s261, %s262
      %p271 = scmp.eq.s32.totalorder %s26, 0
      %p272 = por %p270, %p271
      %p273 = scmp.ne.s32.totalorder %s261, %s262
      %p274 = scmp.eq.s32.totalorder %s27, 1
      %p275 = por %p273, %p274
      %p277 = scmp.ne.s32.totalorder %s262, %s276
      %p278 = scmp.eq.s32.totalorder %s27, 0
      %p279 = por %p277, %p278
      %s281 = sadd.s32 %s280, 1
      %p284 = scmp.eq.s32.totalorder %s21, 1
      %p285 = scmp.ne.s32.totalorder %s280, %s282
      %p286 = scmp.eq.s32.totalorder %s21, 0
      %p287 = por %p285, %p286
      %p288 = scmp.ne.s32.totalorder %s280, %s282
      %p289 = scmp.eq.s32.totalorder %s26, 1
      %p290 = por %p288, %p289
      %p291 = scmp.ne.s32.totalorder %s282, %s283
      %p292 = scmp.eq.s32.totalorder %s26, 0
      %p293 = por %p291, %p292
      %p294 = scmp.ne.s32.totalorder %s282, %s283
      %p295 = scmp.eq.s32.totalorder %s27, 1
      %p296 = por %p294, %p295
      %p298 = scmp.ne.s32.totalorder %s283, %s297
      %p299 = scmp.eq.s32.totalorder %s27, 0
      %p300 = por %p298, %p299
      %s301 = ssub.s32 %s21, %s28
      %p302 = scmp.eq.s32.totalorder %s301, 0
      %s304 = sadd.s32 %s303, 1
      %s305 = scalar_select %p302, %s303, %s304
      %p308 = pneg %p302
      %p309 = scmp.eq.s32.totalorder %s21, 1
      %p310 = por %p308, %p309
      %p311 = scmp.ne.s32.totalorder %s303, %s306
      %p312 = scmp.eq.s32.totalorder %s21, 0
      %p313 = por %p311, %p312
      %p314 = scmp.ne.s32.totalorder %s303, %s306
      %p315 = scmp.eq.s32.totalorder %s26, 1
      %p316 = por %p314, %p315
      %p317 = scmp.ne.s32.totalorder %s306, %s307
      %p318 = scmp.eq.s32.totalorder %s26, 0
      %p319 = por %p317, %p318
      %p320 = scmp.ne.s32.totalorder %s306, %s307
      %p321 = scmp.eq.s32.totalorder %s27, 1
      %p322 = por %p320, %p321
      %p324 = scmp.ne.s32.totalorder %s307, %s323
      %p325 = scmp.eq.s32.totalorder %s27, 0
      %p326 = por %p324, %p325
      %p327 = scmp.le.s32.totalorder 1, %s21
      %p328 = scmp.lt.s32.totalorder %s21, 3
      %p329 = pnand %p327, %p328
      %p330 = pneg %p329
      // Predicated region
      $region9: #{_lambda_.5} parent=5 // pred_check
        _
      $region10: #{_lambda_.5} parent=5 // pred_check_branch
        %332 = sbr.rel (%p329) target = $region12
      $region11: #{_lambda_.5} parent=5 // pred_region
        %s333 = ssub.s32 %s21, 1
        // Predicated region
        $region13: #{_lambda_.5} parent=11 // pred_check
          %p334 = pneg %p146
        $region14: #{_lambda_.5} parent=11 // pred_check_branch
          %336 = sbr.rel (%p334) target = $region16
        $region15: #{_lambda_.5} parent=11 // pred_region
          _
        $region16: #{_lambda_.5} parent=11 // pred_fallthru
          _
        // Predicated region
        $region17: #{_lambda_.5} parent=11 // pred_check
          %p337 = pneg %p167
        $region18: #{_lambda_.5} parent=11 // pred_check_branch
          %339 = sbr.rel (%p337) target = $region20
        $region19: #{_lambda_.5} parent=11 // pred_region
          _
        $region20: #{_lambda_.5} parent=11 // pred_fallthru
          _
        // Predicated region
        $region21: #{_lambda_.5} parent=11 // pred_check
          %p340 = pneg %p188
        $region22: #{_lambda_.5} parent=11 // pred_check_branch
          %342 = sbr.rel (%p340) target = $region24
        $region23: #{_lambda_.5} parent=11 // pred_region
          _
        $region24: #{_lambda_.5} parent=11 // pred_fallthru
          _
        // Predicated region
        $region25: #{_lambda_.5} parent=11 // pred_check
          %p343 = pneg %p209
        $region26: #{_lambda_.5} parent=11 // pred_check_branch
          %345 = sbr.rel (%p343) target = $region28
        $region27: #{_lambda_.5} parent=11 // pred_region
          _
        $region28: #{_lambda_.5} parent=11 // pred_fallthru
          _
        // Predicated region
        $region29: #{_lambda_.5} parent=11 // pred_check
          %p346 = pneg %p230
        $region30: #{_lambda_.5} parent=11 // pred_check_branch
          %348 = sbr.rel (%p346) target = $region32
        $region31: #{_lambda_.5} parent=11 // pred_region
          _
        $region32: #{_lambda_.5} parent=11 // pred_fallthru
          _
        // Predicated region
        $region33: #{_lambda_.5} parent=11 // pred_check
          %p349 = pneg %p251
        $region34: #{_lambda_.5} parent=11 // pred_check_branch
          %351 = sbr.rel (%p349) target = $region36
        $region35: #{_lambda_.5} parent=11 // pred_region
          _
        $region36: #{_lambda_.5} parent=11 // pred_fallthru
          _
        // Predicated region
        $region37: #{_lambda_.5} parent=11 // pred_check
          %p352 = pneg %p272
        $region38: #{_lambda_.5} parent=11 // pred_check_branch
          %354 = sbr.rel (%p352) target = $region40
        $region39: #{_lambda_.5} parent=11 // pred_region
          _
        $region40: #{_lambda_.5} parent=11 // pred_fallthru
          _
        // Predicated region
        $region41: #{_lambda_.5} parent=11 // pred_check
          %p355 = pneg %p293
        $region42: #{_lambda_.5} parent=11 // pred_check_branch
          %357 = sbr.rel (%p355) target = $region44
        $region43: #{_lambda_.5} parent=11 // pred_region
          _
        $region44: #{_lambda_.5} parent=11 // pred_fallthru
          _
      $region12: #{_lambda_.5} parent=5 // pred_fallthru
        _
      %p358 = scmp.lt.s32.totalorder %s21, 2
      // Predicated region
      $region45: #{_lambda_.5} parent=5 // pred_check
        %p359 = pneg %p358
      $region46: #{_lambda_.5} parent=5 // pred_check_branch
        %361 = sbr.rel (%p359) target = $region48
      $region47: #{_lambda_.5} parent=5 // pred_region
        // Predicated region
        $region49: #{_lambda_.5} parent=47 // pred_check
          %p362 = pneg %p41
        $region50: #{_lambda_.5} parent=47 // pred_check_branch
          %364 = sbr.rel (%p362) target = $region52
        $region51: #{_lambda_.5} parent=47 // pred_region
          %s365 = smul.u32 32, %s21
          %p366 = scmp.lt.s32.totalorder %s365, 63
          %s367 = scalar_select %p366, %s365, 63
          %s368 = smul.addr %s367, 3
          %s369 = smul.addr %s368, 4
          %s370 = scalar_lea.vmem %s0, %s369
          %s371 = smul.u32 32, %s21
        $region52: #{_lambda_.5} parent=47 // pred_fallthru
          _
        // Predicated region
        $region53: #{_lambda_.5} parent=47 // pred_check
          %p372 = pneg %p67
        $region54: #{_lambda_.5} parent=47 // pred_check_branch
          %374 = sbr.rel (%p372) target = $region56
        $region55: #{_lambda_.5} parent=47 // pred_region
          %s375 = smul.u32 32, %s21
          %p376 = scmp.lt.s32.totalorder %s375, 63
          %s377 = scalar_select %p376, %s375, 63
          %s378 = smul.addr %s377, 4
          %s379 = smul.addr %s378, 4
          %s380 = scalar_lea.vmem %s1, %s379
          %s381 = smul.u32 32, %s21
        $region56: #{_lambda_.5} parent=47 // pred_fallthru
          _
        // Predicated region
        $region57: #{_lambda_.5} parent=47 // pred_check
          %p382 = pneg %p93
        $region58: #{_lambda_.5} parent=47 // pred_check_branch
          %384 = sbr.rel (%p382) target = $region60
        $region59: #{_lambda_.5} parent=47 // pred_region
          %s385 = smul.u32 32, %s21
          %p386 = scmp.lt.s32.totalorder %s385, 63
          %s387 = scalar_select %p386, %s385, 63
          %s388 = smul.addr %s387, 4
          %s389 = scalar_lea.vmem %s2, %s388
          %s390 = smul.u32 32, %s21
        $region60: #{_lambda_.5} parent=47 // pred_fallthru
          _
        // Predicated region
        $region61: #{_lambda_.5} parent=47 // pred_check
          %p391 = pneg %p119
        $region62: #{_lambda_.5} parent=47 // pred_check_branch
          %393 = sbr.rel (%p391) target = $region64
        $region63: #{_lambda_.5} parent=47 // pred_region
          %s394 = smul.u32 32, %s21
          %p395 = scmp.lt.s32.totalorder %s394, 63
          %s396 = scalar_select %p395, %s394, 63
          %s397 = smul.addr %s396, 3
          %s398 = smul.addr %s397, 8
          %s399 = scalar_lea.vmem %s3, %s398
          %s400 = smul.u32 32, %s21
        $region64: #{_lambda_.5} parent=47 // pred_fallthru
          _
      $region48: #{_lambda_.5} parent=5 // pred_fallthru
        _
      %p401 = scmp.le.s32.totalorder 1, %s21
      %p402 = scmp.lt.s32.totalorder %s21, 3
      %p403 = pnand %p401, %p402
      %p404 = pneg %p403
      // Predicated region
      $region65: #{_lambda_.5} parent=5 // pred_check
        _
      $region66: #{_lambda_.5} parent=5 // pred_check_branch
        %406 = sbr.rel (%p403) target = $region68
      $region67: #{_lambda_.5} parent=5 // pred_region
        %s407 = ssub.s32 %s21, 1
        %s408 = smul.u32 32, %s26
        %p409 = scmp.lt.s32.totalorder %s408, 63
        %s410 = scalar_select %p409, %s408, 63
        %s411 = smul.addr %s410, 3
        %s412 = smul.addr %s411, 4
        %s413 = scalar_lea.vmem %s0, %s412
        %p414 = pneg %p47
        %p415 = pneg %p44
        %s416 = smul.u32 32, %s26
        %p417 = scmp.lt.s32.totalorder %s416, 63
        %s418 = scalar_select %p417, %s416, 63
        %s419 = smul.addr %s418, 4
        %s420 = smul.addr %s419, 4
        %s421 = scalar_lea.vmem %s1, %s420
        %p422 = pneg %p73
        %p423 = pneg %p70
        %s424 = smul.u32 32, %s26
        %p425 = scmp.lt.s32.totalorder %s424, 63
        %s426 = scalar_select %p425, %s424, 63
        %s427 = smul.addr %s426, 4
        %s428 = scalar_lea.vmem %s2, %s427
        %p429 = pneg %p99
        %p430 = pneg %p96
        %s431 = smul.u32 32, %s26
        %p432 = scmp.lt.s32.totalorder %s431, 63
        %s433 = scalar_select %p432, %s431, 63
        %s434 = smul.addr %s433, 3
        %s435 = smul.addr %s434, 8
        %s436 = scalar_lea.vmem %s3, %s435
        %p437 = pneg %p125
        %p438 = pneg %p122
        %p439 = pneg %p146
        %p440 = pneg %p143
        %p441 = pneg %p167
        %p442 = pneg %p164
        %p443 = pneg %p188
        %p444 = pneg %p185
        %p445 = pneg %p209
        %p446 = pneg %p206
        %p447 = pneg %p230
        %p448 = pneg %p227
        %p449 = pneg %p251
        %p450 = pneg %p248
        %p451 = pneg %p272
        %p452 = pneg %p269
        %p453 = pneg %p293
        %p454 = pneg %p290
        %p455 = pneg %p319
        %p456 = pneg %p316
        %s457 = sand.u32 %s306, 1
        %s458 = scalar_lea.sflag [#allocation3], %s457
        %s459 = sand.u32 %s306, 1
        %s460 = smul.addr %s459, 768
        %s461 = scalar_lea.vmem [#allocation2], %s460
        %s462 = smul.u32 32, %s26
        %p463 = scmp.lt.s32.totalorder %s462, 63
        %s464 = scalar_select %p463, %s462, 63
        %s465 = smul.addr %s464, 3
        %s466 = smul.addr %s465, 4
        %s467 = scalar_lea.vmem %s0, %s466
        %s468 = smul.u32 32, %s26
        %s469 = smul.u32 32, %s26
        %p470 = scmp.lt.s32.totalorder %s469, 63
        %s471 = scalar_select %p470, %s469, 63
        %s472 = smul.addr %s471, 4
        %s473 = smul.addr %s472, 4
        %s474 = scalar_lea.vmem %s1, %s473
        %s475 = smul.u32 32, %s26
        %s476 = smul.u32 32, %s26
        %p477 = scmp.lt.s32.totalorder %s476, 63
        %s478 = scalar_select %p477, %s476, 63
        %s479 = smul.addr %s478, 4
        %s480 = scalar_lea.vmem %s2, %s479
        %s481 = smul.u32 32, %s26
        %s482 = smul.u32 32, %s26
        %p483 = scmp.lt.s32.totalorder %s482, 63
        %s484 = scalar_select %p483, %s482, 63
        %s485 = smul.addr %s484, 3
        %s486 = smul.addr %s485, 8
        %s487 = scalar_lea.vmem %s3, %s486
        %s488 = smul.u32 32, %s26
        %s489 = smul.u32 32, %s26
        %v491 = vld [vmem:[%s467] sm:$0xff]
        %v492 = vld [vmem:[%s467 + $0x8] sm:$0xf]
        %v493 = vld [vmem:[%s467 + $0xc] sm:$0xff]
        %v494 = vld [vmem:[%s467 + $0x14] sm:$0xf]
        %v495 = vld [vmem:[%s467 + $0x18] sm:$0xff]
        %v496 = vld [vmem:[%s467 + $0x20] sm:$0xf]
        %v497 = vld [vmem:[%s467 + $0x24] sm:$0xff]
        %v498 = vld [vmem:[%s467 + $0x2c] sm:$0xf]
        %v499 = vld [vmem:[%s467 + $0x30] sm:$0xff]
        %v500 = vld [vmem:[%s467 + $0x38] sm:$0xf]
        %v501 = vld [vmem:[%s467 + $0x3c] sm:$0xff]
        %v502 = vld [vmem:[%s467 + $0x44] sm:$0xf]
        %v503 = vld [vmem:[%s467 + $0x48] sm:$0xff]
        %v504 = vld [vmem:[%s467 + $0x50] sm:$0xf]
        %v505 = vld [vmem:[%s467 + $0x54] sm:$0xff]
        %v506 = vld [vmem:[%s467 + $0x5c] sm:$0xf]
        %v507 = vld [vmem:[%s467 + $0x60] sm:$0xff]
        %v508 = vld [vmem:[%s467 + $0x68] sm:$0xf]
        %v509 = vld [vmem:[%s467 + $0x6c] sm:$0xff]
        %v510 = vld [vmem:[%s467 + $0x74] sm:$0xf]
        %v511 = vld [vmem:[%s467 + $0x78] sm:$0xff]
        %v512 = vld [vmem:[%s467 + $0x80] sm:$0xf]
        %v513 = vld [vmem:[%s467 + $0x84] sm:$0xff]
        %v514 = vld [vmem:[%s467 + $0x8c] sm:$0xf]
        %v515 = vld [vmem:[%s467 + $0x90] sm:$0xff]
        %v516 = vld [vmem:[%s467 + $0x98] sm:$0xf]
        %v517 = vld [vmem:[%s467 + $0x9c] sm:$0xff]
        %v518 = vld [vmem:[%s467 + $0xa4] sm:$0xf]
        %v519 = vld [vmem:[%s467 + $0xa8] sm:$0xff]
        %v520 = vld [vmem:[%s467 + $0xb0] sm:$0xf]
        %v521 = vld [vmem:[%s467 + $0xb4] sm:$0xff]
        %v522 = vld [vmem:[%s467 + $0xbc] sm:$0xf]
        %v523 = vld [vmem:[%s467 + $0xc0] sm:$0xff]
        %v524 = vld [vmem:[%s467 + $0xc8] sm:$0xf]
        %v525 = vld [vmem:[%s467 + $0xcc] sm:$0xff]
        %v526 = vld [vmem:[%s467 + $0xd4] sm:$0xf]
        %v527 = vld [vmem:[%s467 + $0xd8] sm:$0xff]
        %v528 = vld [vmem:[%s467 + $0xe0] sm:$0xf]
        %v529 = vld [vmem:[%s467 + $0xe4] sm:$0xff]
        %v530 = vld [vmem:[%s467 + $0xec] sm:$0xf]
        %v531 = vld [vmem:[%s467 + $0xf0] sm:$0xff]
        %v532 = vld [vmem:[%s467 + $0xf8] sm:$0xf]
        %v533 = vld [vmem:[%s467 + $0xfc] sm:$0xff]
        %v534 = vld [vmem:[%s467 + $0x104] sm:$0xf]
        %v535 = vld [vmem:[%s467 + $0x108] sm:$0xff]
        %v536 = vld [vmem:[%s467 + $0x110] sm:$0xf]
        %v537 = vld [vmem:[%s467 + $0x114] sm:$0xff]
        %v538 = vld [vmem:[%s467 + $0x11c] sm:$0xf]
        %v539 = vld [vmem:[%s467 + $0x120] sm:$0xff]
        %v540 = vld [vmem:[%s467 + $0x128] sm:$0xf]
        %v541 = vld [vmem:[%s467 + $0x12c] sm:$0xff]
        %v542 = vld [vmem:[%s467 + $0x134] sm:$0xf]
        %v543 = vld [vmem:[%s467 + $0x138] sm:$0xff]
        %v544 = vld [vmem:[%s467 + $0x140] sm:$0xf]
        %v545 = vld [vmem:[%s467 + $0x144] sm:$0xff]
        %v546 = vld [vmem:[%s467 + $0x14c] sm:$0xf]
        %v547 = vld [vmem:[%s467 + $0x150] sm:$0xff]
        %v548 = vld [vmem:[%s467 + $0x158] sm:$0xf]
        %v549 = vld [vmem:[%s467 + $0x15c] sm:$0xff]
        %v550 = vld [vmem:[%s467 + $0x164] sm:$0xf]
        %v551 = vld [vmem:[%s467 + $0x168] sm:$0xff]
        %v552 = vld [vmem:[%s467 + $0x170] sm:$0xf]
        %v553 = vld [vmem:[%s467 + $0x174] sm:$0xff]
        %v554 = vld [vmem:[%s467 + $0x17c] sm:$0xf]
        %v555 = vld [vmem:[%s4] sm:$0xf]
        %v556 = vld [vmem:[%s4 + $0x4] sm:$0xf]
        %v557 = vld [vmem:[%s4 + $0x8] sm:$0xf]
        %v558 = vld [vmem:[%s4 + $0xc] sm:$0xf]
        %v559 = vld [vmem:[%s4 + $0x10] sm:$0xf]
        %v560 = vld [vmem:[%s4 + $0x14] sm:$0xf]
        %v561 = vld [vmem:[%s4 + $0x18] sm:$0xf]
        %v562 = vld [vmem:[%s4 + $0x1c] sm:$0xf]
        %v563 = vld [vmem:[%s4 + $0x20] sm:$0xf]
        %v564 = vld [vmem:[%s4 + $0x24] sm:$0xf]
        %v565 = vld [vmem:[%s4 + $0x28] sm:$0xf]
        %v566 = vld [vmem:[%s4 + $0x2c] sm:$0xf]
        %v567 = vld [vmem:[%s4 + $0x30] sm:$0xf]
        %v568 = vld [vmem:[%s4 + $0x34] sm:$0xf]
        %v569 = vld [vmem:[%s4 + $0x38] sm:$0xf]
        %v570 = vld [vmem:[%s4 + $0x3c] sm:$0xf]
        %v571 = vld [vmem:[%s4 + $0x40] sm:$0xf]
        %v572 = vld [vmem:[%s4 + $0x44] sm:$0xf]
        %v573 = vld [vmem:[%s4 + $0x48] sm:$0xf]
        %v574 = vld [vmem:[%s4 + $0x4c] sm:$0xf]
        %v575 = vld [vmem:[%s4 + $0x50] sm:$0xf]
        %v576 = vld [vmem:[%s4 + $0x54] sm:$0xf]
        %v577 = vld [vmem:[%s4 + $0x58] sm:$0xf]
        %v578 = vld [vmem:[%s4 + $0x5c] sm:$0xf]
        %v579 = vld [vmem:[%s4 + $0x60] sm:$0xf]
        %v580 = vld [vmem:[%s4 + $0x64] sm:$0xf]
        %v581 = vld [vmem:[%s4 + $0x68] sm:$0xf]
        %v582 = vld [vmem:[%s4 + $0x6c] sm:$0xf]
        %v583 = vld [vmem:[%s4 + $0x70] sm:$0xf]
        %v584 = vld [vmem:[%s4 + $0x74] sm:$0xf]
        %v585 = vld [vmem:[%s4 + $0x78] sm:$0xf]
        %v586 = vld [vmem:[%s4 + $0x7c] sm:$0xf]
        %v587 = vld [vmem:[%s4 + $0x80] sm:$0xf]
        %v588 = vld [vmem:[%s4 + $0x84] sm:$0xf]
        %v589 = vld [vmem:[%s4 + $0x88] sm:$0xf]
        %v590 = vld [vmem:[%s4 + $0x8c] sm:$0xf]
        %v655 = vunpack.c.l.b16 %v491
        %v656 = vunpack.c.h.b16 %v491
        %v657 = vunpack.c.l.b16 %v492
        %v658 = vunpack.c.l.b16 %v493
        %v659 = vunpack.c.h.b16 %v493
        %v660 = vunpack.c.l.b16 %v494
        %v661 = vunpack.c.l.b16 %v495
        %v662 = vunpack.c.h.b16 %v495
        %v663 = vunpack.c.l.b16 %v496
        %v664 = vunpack.c.l.b16 %v497
        %v665 = vunpack.c.h.b16 %v497
        %v666 = vunpack.c.l.b16 %v498
        %v667 = vunpack.c.l.b16 %v499
        %v668 = vunpack.c.h.b16 %v499
        %v669 = vunpack.c.l.b16 %v500
        %v670 = vunpack.c.l.b16 %v501
        %v671 = vunpack.c.h.b16 %v501
        %v672 = vunpack.c.l.b16 %v502
        %v673 = vunpack.c.l.b16 %v503
        %v674 = vunpack.c.h.b16 %v503
        %v675 = vunpack.c.l.b16 %v504
        %v676 = vunpack.c.l.b16 %v505
        %v677 = vunpack.c.h.b16 %v505
        %v678 = vunpack.c.l.b16 %v506
        %v679 = vunpack.c.l.b16 %v507
        %v680 = vunpack.c.h.b16 %v507
        %v681 = vunpack.c.l.b16 %v508
        %v682 = vunpack.c.l.b16 %v509
        %v683 = vunpack.c.h.b16 %v509
        %v684 = vunpack.c.l.b16 %v510
        %v685 = vunpack.c.l.b16 %v511
        %v686 = vunpack.c.h.b16 %v511
        %v687 = vunpack.c.l.b16 %v512
        %v688 = vunpack.c.l.b16 %v513
        %v689 = vunpack.c.h.b16 %v513
        %v690 = vunpack.c.l.b16 %v514
        %v691 = vunpack.c.l.b16 %v515
        %v692 = vunpack.c.h.b16 %v515
        %v693 = vunpack.c.l.b16 %v516
        %v694 = vunpack.c.l.b16 %v517
        %v695 = vunpack.c.h.b16 %v517
        %v696 = vunpack.c.l.b16 %v518
        %v697 = vunpack.c.l.b16 %v519
        %v698 = vunpack.c.h.b16 %v519
        %v699 = vunpack.c.l.b16 %v520
        %v700 = vunpack.c.l.b16 %v521
        %v701 = vunpack.c.h.b16 %v521
        %v702 = vunpack.c.l.b16 %v522
        %v703 = vunpack.c.l.b16 %v523
        %v704 = vunpack.c.h.b16 %v523
        %v705 = vunpack.c.l.b16 %v524
        %v706 = vunpack.c.l.b16 %v525
        %v707 = vunpack.c.h.b16 %v525
        %v708 = vunpack.c.l.b16 %v526
        %v709 = vunpack.c.l.b16 %v527
        %v710 = vunpack.c.h.b16 %v527
        %v711 = vunpack.c.l.b16 %v528
        %v712 = vunpack.c.l.b16 %v529
        %v713 = vunpack.c.h.b16 %v529
        %v714 = vunpack.c.l.b16 %v530
        %v715 = vunpack.c.l.b16 %v531
        %v716 = vunpack.c.h.b16 %v531
        %v717 = vunpack.c.l.b16 %v532
        %v718 = vunpack.c.l.b16 %v533
        %v719 = vunpack.c.h.b16 %v533
        %v720 = vunpack.c.l.b16 %v534
        %v721 = vunpack.c.l.b16 %v535
        %v722 = vunpack.c.h.b16 %v535
        %v723 = vunpack.c.l.b16 %v536
        %v724 = vunpack.c.l.b16 %v537
        %v725 = vunpack.c.h.b16 %v537
        %v726 = vunpack.c.l.b16 %v538
        %v727 = vunpack.c.l.b16 %v539
        %v728 = vunpack.c.h.b16 %v539
        %v729 = vunpack.c.l.b16 %v540
        %v730 = vunpack.c.l.b16 %v541
        %v731 = vunpack.c.h.b16 %v541
        %v732 = vunpack.c.l.b16 %v542
        %v733 = vunpack.c.l.b16 %v543
        %v734 = vunpack.c.h.b16 %v543
        %v735 = vunpack.c.l.b16 %v544
        %v736 = vunpack.c.l.b16 %v545
        %v737 = vunpack.c.h.b16 %v545
        %v738 = vunpack.c.l.b16 %v546
        %v739 = vunpack.c.l.b16 %v547
        %v740 = vunpack.c.h.b16 %v547
        %v741 = vunpack.c.l.b16 %v548
        %v742 = vunpack.c.l.b16 %v549
        %v743 = vunpack.c.h.b16 %v549
        %v744 = vunpack.c.l.b16 %v550
        %v745 = vunpack.c.l.b16 %v551
        %v746 = vunpack.c.h.b16 %v551
        %v747 = vunpack.c.l.b16 %v552
        %v748 = vunpack.c.l.b16 %v553
        %v749 = vunpack.c.h.b16 %v553
        %v750 = vunpack.c.l.b16 %v554
        %v751 = vpack.c.b16 %v658, %v655
        %v752 = vpack.c.b16 %v659, %v656
        %v753 = vpack.c.b16 %v660, %v657
        %v754 = vpack.c.b16 %v664, %v661
        %v755 = vpack.c.b16 %v665, %v662
        %v756 = vpack.c.b16 %v666, %v663
        %v757 = vpack.c.b16 %v670, %v667
        %v758 = vpack.c.b16 %v671, %v668
        %v759 = vpack.c.b16 %v672, %v669
        %v760 = vpack.c.b16 %v676, %v673
        %v761 = vpack.c.b16 %v677, %v674
        %v762 = vpack.c.b16 %v678, %v675
        %v763 = vpack.c.b16 %v682, %v679
        %v764 = vpack.c.b16 %v683, %v680
        %v765 = vpack.c.b16 %v684, %v681
        %v766 = vpack.c.b16 %v688, %v685
        %v767 = vpack.c.b16 %v689, %v686
        %v768 = vpack.c.b16 %v690, %v687
        %v769 = vpack.c.b16 %v694, %v691
        %v770 = vpack.c.b16 %v695, %v692
        %v771 = vpack.c.b16 %v696, %v693
        %v772 = vpack.c.b16 %v700, %v697
        %v773 = vpack.c.b16 %v701, %v698
        %v774 = vpack.c.b16 %v702, %v699
        %v775 = vpack.c.b16 %v706, %v703
        %v776 = vpack.c.b16 %v707, %v704
        %v777 = vpack.c.b16 %v708, %v705
        %v778 = vpack.c.b16 %v712, %v709
        %v779 = vpack.c.b16 %v713, %v710
        %v780 = vpack.c.b16 %v714, %v711
        %v781 = vpack.c.b16 %v718, %v715
        %v782 = vpack.c.b16 %v719, %v716
        %v783 = vpack.c.b16 %v720, %v717
        %v784 = vpack.c.b16 %v724, %v721
        %v785 = vpack.c.b16 %v725, %v722
        %v786 = vpack.c.b16 %v726, %v723
        %v787 = vpack.c.b16 %v730, %v727
        %v788 = vpack.c.b16 %v731, %v728
        %v789 = vpack.c.b16 %v732, %v729
        %v790 = vpack.c.b16 %v736, %v733
        %v791 = vpack.c.b16 %v737, %v734
        %v792 = vpack.c.b16 %v738, %v735
        %v793 = vpack.c.b16 %v742, %v739
        %v794 = vpack.c.b16 %v743, %v740
        %v795 = vpack.c.b16 %v744, %v741
        %v796 = vpack.c.b16 %v748, %v745
        %v797 = vpack.c.b16 %v749, %v746
        %v798 = vpack.c.b16 %v750, %v747
        %v867 = vunpack.c.l.b16 %v555
        %v868 = vunpack.c.l.b16 %v556
        %v869 = vunpack.c.l.b16 %v557
        %v870 = vunpack.c.l.b16 %v558
        %v871 = vunpack.c.l.b16 %v559
        %v872 = vunpack.c.l.b16 %v560
        %v873 = vunpack.c.l.b16 %v561
        %v874 = vunpack.c.l.b16 %v562
        %v875 = vunpack.c.l.b16 %v563
        %v876 = vunpack.c.l.b16 %v564
        %v877 = vunpack.c.l.b16 %v565
        %v878 = vunpack.c.l.b16 %v566
        %v879 = vunpack.c.l.b16 %v567
        %v880 = vunpack.c.l.b16 %v568
        %v881 = vunpack.c.l.b16 %v569
        %v882 = vunpack.c.l.b16 %v570
        %v883 = vunpack.c.l.b16 %v571
        %v884 = vunpack.c.l.b16 %v572
        %v885 = vunpack.c.l.b16 %v573
        %v886 = vunpack.c.l.b16 %v574
        %v887 = vunpack.c.l.b16 %v575
        %v888 = vunpack.c.l.b16 %v576
        %v889 = vunpack.c.l.b16 %v577
        %v890 = vunpack.c.l.b16 %v578
        %v891 = vunpack.c.l.b16 %v579
        %v892 = vunpack.c.l.b16 %v580
        %v893 = vunpack.c.l.b16 %v581
        %v894 = vunpack.c.l.b16 %v582
        %v895 = vunpack.c.l.b16 %v583
        %v896 = vunpack.c.l.b16 %v584
        %v897 = vunpack.c.l.b16 %v585
        %v898 = vunpack.c.l.b16 %v586
        %v899 = vunpack.c.l.b16 %v587
        %v900 = vunpack.c.l.b16 %v588
        %v901 = vunpack.c.l.b16 %v589
        %v902 = vunpack.c.l.b16 %v590
        %v903 = vpack.c.b16 %v868, %v867
        %v904 = vpack.c.b16 %v870, %v869
        %v905 = vpack.c.b16 %v872, %v871
        %v906 = vpack.c.b16 %v874, %v873
        %v907 = vpack.c.b16 %v876, %v875
        %v908 = vpack.c.b16 %v878, %v877
        %v909 = vpack.c.b16 %v880, %v879
        %v910 = vpack.c.b16 %v882, %v881
        %v911 = vpack.c.b16 %v884, %v883
        %v912 = vpack.c.b16 %v886, %v885
        %v913 = vpack.c.b16 %v888, %v887
        %v914 = vpack.c.b16 %v890, %v889
        %v915 = vpack.c.b16 %v892, %v891
        %v916 = vpack.c.b16 %v894, %v893
        %v917 = vpack.c.b16 %v896, %v895
        %v918 = vpack.c.b16 %v898, %v897
        %v919 = vpack.c.b16 %v900, %v899
        %v920 = vpack.c.b16 %v902, %v901
        %vm939 = vcmask 261120
        %v941 = vsel %vm939, %v753, 0
        %v944 = vsel %vm939, %v756, 0
        %v947 = vsel %vm939, %v759, 0
        %v950 = vsel %vm939, %v762, 0
        %v953 = vsel %vm939, %v765, 0
        %v956 = vsel %vm939, %v768, 0
        %v959 = vsel %vm939, %v771, 0
        %v962 = vsel %vm939, %v774, 0
        %v965 = vsel %vm939, %v777, 0
        %v968 = vsel %vm939, %v780, 0
        %v971 = vsel %vm939, %v783, 0
        %v974 = vsel %vm939, %v786, 0
        %v977 = vsel %vm939, %v789, 0
        %v980 = vsel %vm939, %v792, 0
        %v983 = vsel %vm939, %v795, 0
        %v986 = vsel %vm939, %v798, 0
        %988 = vmatpush.bf16.msra.mxu0 %v910
        %989 = vmatpush.bf16.msra.mxu0 %v909
        %990 = vmatpush.bf16.msra.mxu0 %v908
        %991 = vmatpush.bf16.msra.mxu0 %v907
        %992 = vmatpush.bf16.msra.mxu0 %v906
        %993 = vmatpush.bf16.msra.mxu0 %v905
        %994 = vmatpush.bf16.msra.mxu0 %v904
        %995 = vmatpush.bf16.msra.mxu0 %v903
        %996 = vmatmul.bf16.gmra.mxu0 %v751
        %v997 = vpop.f32.mrf.mxu0
        %v998 = vadd.f32 0.0, %v997
        %v999 = vpop.f32.mrf.mxu0
        %v1000 = vadd.f32 0.0, %v999
        %1001 = vmatmul.bf16.gmra.mxu0 %v754
        %v1002 = vpop.f32.mrf.mxu0
        %v1003 = vadd.f32 0.0, %v1002
        %v1004 = vpop.f32.mrf.mxu0
        %v1005 = vadd.f32 0.0, %v1004
        %1006 = vmatmul.bf16.gmra.mxu0 %v757
        %v1007 = vpop.f32.mrf.mxu0
        %v1008 = vadd.f32 0.0, %v1007
        %v1009 = vpop.f32.mrf.mxu0
        %v1010 = vadd.f32 0.0, %v1009
        %1011 = vmatmul.bf16.gmra.mxu0 %v760
        %v1012 = vpop.f32.mrf.mxu0
        %v1013 = vadd.f32 0.0, %v1012
        %v1014 = vpop.f32.mrf.mxu0
        %v1015 = vadd.f32 0.0, %v1014
        %1016 = vmatmul.bf16.gmra.mxu0 %v763
        %v1017 = vpop.f32.mrf.mxu0
        %v1018 = vadd.f32 0.0, %v1017
        %v1019 = vpop.f32.mrf.mxu0
        %v1020 = vadd.f32 0.0, %v1019
        %1021 = vmatmul.bf16.gmra.mxu0 %v766
        %v1022 = vpop.f32.mrf.mxu0
        %v1023 = vadd.f32 0.0, %v1022
        %v1024 = vpop.f32.mrf.mxu0
        %v1025 = vadd.f32 0.0, %v1024
        %1026 = vmatmul.bf16.gmra.mxu0 %v769
        %v1027 = vpop.f32.mrf.mxu0
        %v1028 = vadd.f32 0.0, %v1027
        %v1029 = vpop.f32.mrf.mxu0
        %v1030 = vadd.f32 0.0, %v1029
        %1031 = vmatmul.bf16.gmra.mxu0 %v772
        %v1032 = vpop.f32.mrf.mxu0
        %v1033 = vadd.f32 0.0, %v1032
        %v1034 = vpop.f32.mrf.mxu0
        %v1035 = vadd.f32 0.0, %v1034
        %1036 = vmatmul.bf16.gmra.mxu0 %v775
        %v1037 = vpop.f32.mrf.mxu0
        %v1038 = vadd.f32 0.0, %v1037
        %v1039 = vpop.f32.mrf.mxu0
        %v1040 = vadd.f32 0.0, %v1039
        %1041 = vmatmul.bf16.gmra.mxu0 %v778
        %v1042 = vpop.f32.mrf.mxu0
        %v1043 = vadd.f32 0.0, %v1042
        %v1044 = vpop.f32.mrf.mxu0
        %v1045 = vadd.f32 0.0, %v1044
        %1046 = vmatmul.bf16.gmra.mxu0 %v781
        %v1047 = vpop.f32.mrf.mxu0
        %v1048 = vadd.f32 0.0, %v1047
        %v1049 = vpop.f32.mrf.mxu0
        %v1050 = vadd.f32 0.0, %v1049
        %1051 = vmatmul.bf16.gmra.mxu0 %v784
        %v1052 = vpop.f32.mrf.mxu0
        %v1053 = vadd.f32 0.0, %v1052
        %v1054 = vpop.f32.mrf.mxu0
        %v1055 = vadd.f32 0.0, %v1054
        %1056 = vmatmul.bf16.gmra.mxu0 %v787
        %v1057 = vpop.f32.mrf.mxu0
        %v1058 = vadd.f32 0.0, %v1057
        %v1059 = vpop.f32.mrf.mxu0
        %v1060 = vadd.f32 0.0, %v1059
        %1061 = vmatmul.bf16.gmra.mxu0 %v790
        %v1062 = vpop.f32.mrf.mxu0
        %v1063 = vadd.f32 0.0, %v1062
        %v1064 = vpop.f32.mrf.mxu0
        %v1065 = vadd.f32 0.0, %v1064
        %1066 = vmatmul.bf16.gmra.mxu0 %v793
        %v1067 = vpop.f32.mrf.mxu0
        %v1068 = vadd.f32 0.0, %v1067
        %v1069 = vpop.f32.mrf.mxu0
        %v1070 = vadd.f32 0.0, %v1069
        %1071 = vmatmul.bf16.gmra.mxu0 %v796
        %v1072 = vpop.f32.mrf.mxu0
        %v1073 = vadd.f32 0.0, %v1072
        %v1074 = vpop.f32.mrf.mxu0
        %v1075 = vadd.f32 0.0, %v1074
        %1076 = vdwg.mxu0
        %1077 = vmatpush.bf16.msra.mxu0 %v918
        %1078 = vmatpush.bf16.msra.mxu0 %v917
        %1079 = vmatpush.bf16.msra.mxu0 %v916
        %1080 = vmatpush.bf16.msra.mxu0 %v915
        %1081 = vmatpush.bf16.msra.mxu0 %v914
        %1082 = vmatpush.bf16.msra.mxu0 %v913
        %1083 = vmatpush.bf16.msra.mxu0 %v912
        %1084 = vmatpush.bf16.msra.mxu0 %v911
        %1085 = vmatmul.bf16.gmra.mxu0 %v752
        %v1086 = vpop.f32.mrf.mxu0
        %v1087 = vadd.f32 %v998, %v1086
        %v1088 = vpop.f32.mrf.mxu0
        %v1089 = vadd.f32 %v1000, %v1088
        %1090 = vmatmul.bf16.gmra.mxu0 %v755
        %v1091 = vpop.f32.mrf.mxu0
        %v1092 = vadd.f32 %v1003, %v1091
        %v1093 = vpop.f32.mrf.mxu0
        %v1094 = vadd.f32 %v1005, %v1093
        %1095 = vmatmul.bf16.gmra.mxu0 %v758
        %v1096 = vpop.f32.mrf.mxu0
        %v1097 = vadd.f32 %v1008, %v1096
        %v1098 = vpop.f32.mrf.mxu0
        %v1099 = vadd.f32 %v1010, %v1098
        %1100 = vmatmul.bf16.gmra.mxu0 %v761
        %v1101 = vpop.f32.mrf.mxu0
        %v1102 = vadd.f32 %v1013, %v1101
        %v1103 = vpop.f32.mrf.mxu0
        %v1104 = vadd.f32 %v1015, %v1103
        %1105 = vmatmul.bf16.gmra.mxu0 %v764
        %v1106 = vpop.f32.mrf.mxu0
        %v1107 = vadd.f32 %v1018, %v1106
        %v1108 = vpop.f32.mrf.mxu0
        %v1109 = vadd.f32 %v1020, %v1108
        %1110 = vmatmul.bf16.gmra.mxu0 %v767
        %v1111 = vpop.f32.mrf.mxu0
        %v1112 = vadd.f32 %v1023, %v1111
        %v1113 = vpop.f32.mrf.mxu0
        %v1114 = vadd.f32 %v1025, %v1113
        %1115 = vmatmul.bf16.gmra.mxu0 %v770
        %v1116 = vpop.f32.mrf.mxu0
        %v1117 = vadd.f32 %v1028, %v1116
        %v1118 = vpop.f32.mrf.mxu0
        %v1119 = vadd.f32 %v1030, %v1118
        %1120 = vmatmul.bf16.gmra.mxu0 %v773
        %v1121 = vpop.f32.mrf.mxu0
        %v1122 = vadd.f32 %v1033, %v1121
        %v1123 = vpop.f32.mrf.mxu0
        %v1124 = vadd.f32 %v1035, %v1123
        %1125 = vmatmul.bf16.gmra.mxu0 %v776
        %v1126 = vpop.f32.mrf.mxu0
        %v1127 = vadd.f32 %v1038, %v1126
        %v1128 = vpop.f32.mrf.mxu0
        %v1129 = vadd.f32 %v1040, %v1128
        %1130 = vmatmul.bf16.gmra.mxu0 %v779
        %v1131 = vpop.f32.mrf.mxu0
        %v1132 = vadd.f32 %v1043, %v1131
        %v1133 = vpop.f32.mrf.mxu0
        %v1134 = vadd.f32 %v1045, %v1133
        %1135 = vmatmul.bf16.gmra.mxu0 %v782
        %v1136 = vpop.f32.mrf.mxu0
        %v1137 = vadd.f32 %v1048, %v1136
        %v1138 = vpop.f32.mrf.mxu0
        %v1139 = vadd.f32 %v1050, %v1138
        %1140 = vmatmul.bf16.gmra.mxu0 %v785
        %v1141 = vpop.f32.mrf.mxu0
        %v1142 = vadd.f32 %v1053, %v1141
        %v1143 = vpop.f32.mrf.mxu0
        %v1144 = vadd.f32 %v1055, %v1143
        %1145 = vmatmul.bf16.gmra.mxu0 %v788
        %v1146 = vpop.f32.mrf.mxu0
        %v1147 = vadd.f32 %v1058, %v1146
        %v1148 = vpop.f32.mrf.mxu0
        %v1149 = vadd.f32 %v1060, %v1148
        %1150 = vmatmul.bf16.gmra.mxu0 %v791
        %v1151 = vpop.f32.mrf.mxu0
        %v1152 = vadd.f32 %v1063, %v1151
        %v1153 = vpop.f32.mrf.mxu0
        %v1154 = vadd.f32 %v1065, %v1153
        %1155 = vmatmul.bf16.gmra.mxu0 %v794
        %v1156 = vpop.f32.mrf.mxu0
        %v1157 = vadd.f32 %v1068, %v1156
        %v1158 = vpop.f32.mrf.mxu0
        %v1159 = vadd.f32 %v1070, %v1158
        %1160 = vmatmul.bf16.gmra.mxu0 %v797
        %v1161 = vpop.f32.mrf.mxu0
        %v1162 = vadd.f32 %v1073, %v1161
        %v1163 = vpop.f32.mrf.mxu0
        %v1164 = vadd.f32 %v1075, %v1163
        %1165 = vdwg.mxu0
        %1166 = vmatpush.bf16.msra.mxu0 0
        %1167 = vmatpush.bf16.msra.mxu0 0
        %1168 = vmatpush.bf16.msra.mxu0 0
        %1169 = vmatpush.bf16.msra.mxu0 0
        %1170 = vmatpush.bf16.msra.mxu0 0
        %1171 = vmatpush.bf16.msra.mxu0 0
        %1172 = vmatpush.bf16.msra.mxu0 %v920
        %1173 = vmatpush.bf16.msra.mxu0 %v919
        %1174 = vmatmul.bf16.gmra.mxu0 %v941
        %v1175 = vpop.f32.mrf.mxu0
        %v1176 = vadd.f32 %v1087, %v1175
        %v1177 = vpop.f32.mrf.mxu0
        %v1178 = vadd.f32 %v1089, %v1177
        %1179 = vmatmul.bf16.gmra.mxu0 %v944
        %v1180 = vpop.f32.mrf.mxu0
        %v1181 = vadd.f32 %v1092, %v1180
        %v1182 = vpop.f32.mrf.mxu0
        %v1183 = vadd.f32 %v1094, %v1182
        %1184 = vmatmul.bf16.gmra.mxu0 %v947
        %v1185 = vpop.f32.mrf.mxu0
        %v1186 = vadd.f32 %v1097, %v1185
        %v1187 = vpop.f32.mrf.mxu0
        %v1188 = vadd.f32 %v1099, %v1187
        %1189 = vmatmul.bf16.gmra.mxu0 %v950
        %v1190 = vpop.f32.mrf.mxu0
        %v1191 = vadd.f32 %v1102, %v1190
        %v1192 = vpop.f32.mrf.mxu0
        %v1193 = vadd.f32 %v1104, %v1192
        %1194 = vmatmul.bf16.gmra.mxu0 %v953
        %v1195 = vpop.f32.mrf.mxu0
        %v1196 = vadd.f32 %v1107, %v1195
        %v1197 = vpop.f32.mrf.mxu0
        %v1198 = vadd.f32 %v1109, %v1197
        %1199 = vmatmul.bf16.gmra.mxu0 %v956
        %v1200 = vpop.f32.mrf.mxu0
        %v1201 = vadd.f32 %v1112, %v1200
        %v1202 = vpop.f32.mrf.mxu0
        %v1203 = vadd.f32 %v1114, %v1202
        %1204 = vmatmul.bf16.gmra.mxu0 %v959
        %v1205 = vpop.f32.mrf.mxu0
        %v1206 = vadd.f32 %v1117, %v1205
        %v1207 = vpop.f32.mrf.mxu0
        %v1208 = vadd.f32 %v1119, %v1207
        %1209 = vmatmul.bf16.gmra.mxu0 %v962
        %v1210 = vpop.f32.mrf.mxu0
        %v1211 = vadd.f32 %v1122, %v1210
        %v1212 = vpop.f32.mrf.mxu0
        %v1213 = vadd.f32 %v1124, %v1212
        %1214 = vmatmul.bf16.gmra.mxu0 %v965
        %v1215 = vpop.f32.mrf.mxu0
        %v1216 = vadd.f32 %v1127, %v1215
        %v1217 = vpop.f32.mrf.mxu0
        %v1218 = vadd.f32 %v1129, %v1217
        %1219 = vmatmul.bf16.gmra.mxu0 %v968
        %v1220 = vpop.f32.mrf.mxu0
        %v1221 = vadd.f32 %v1132, %v1220
        %v1222 = vpop.f32.mrf.mxu0
        %v1223 = vadd.f32 %v1134, %v1222
        %1224 = vmatmul.bf16.gmra.mxu0 %v971
        %v1225 = vpop.f32.mrf.mxu0
        %v1226 = vadd.f32 %v1137, %v1225
        %v1227 = vpop.f32.mrf.mxu0
        %v1228 = vadd.f32 %v1139, %v1227
        %1229 = vmatmul.bf16.gmra.mxu0 %v974
        %v1230 = vpop.f32.mrf.mxu0
        %v1231 = vadd.f32 %v1142, %v1230
        %v1232 = vpop.f32.mrf.mxu0
        %v1233 = vadd.f32 %v1144, %v1232
        %1234 = vmatmul.bf16.gmra.mxu0 %v977
        %v1235 = vpop.f32.mrf.mxu0
        %v1236 = vadd.f32 %v1147, %v1235
        %v1237 = vpop.f32.mrf.mxu0
        %v1238 = vadd.f32 %v1149, %v1237
        %1239 = vmatmul.bf16.gmra.mxu0 %v980
        %v1240 = vpop.f32.mrf.mxu0
        %v1241 = vadd.f32 %v1152, %v1240
        %v1242 = vpop.f32.mrf.mxu0
        %v1243 = vadd.f32 %v1154, %v1242
        %1244 = vmatmul.bf16.gmra.mxu0 %v983
        %v1245 = vpop.f32.mrf.mxu0
        %v1246 = vadd.f32 %v1157, %v1245
        %v1247 = vpop.f32.mrf.mxu0
        %v1248 = vadd.f32 %v1159, %v1247
        %1249 = vmatmul.bf16.gmra.mxu0 %v986
        %v1250 = vpop.f32.mrf.mxu0
        %v1251 = vadd.f32 %v1162, %v1250
        %v1252 = vpop.f32.mrf.mxu0
        %v1253 = vadd.f32 %v1164, %v1252
        %1254 = vdwg.mxu0
        %v1255 = vld [vmem:[%s5] sm:$0x1]
        %v1257 = vperm.slane %v1255, 0
        %v1259 = vmul.f32 %v1176, %v1257
        %v1260 = vmul.f32 %v1178, %v1257
        %v1261 = vmul.f32 %v1181, %v1257
        %v1262 = vmul.f32 %v1183, %v1257
        %v1263 = vmul.f32 %v1186, %v1257
        %v1264 = vmul.f32 %v1188, %v1257
        %v1265 = vmul.f32 %v1191, %v1257
        %v1266 = vmul.f32 %v1193, %v1257
        %v1267 = vmul.f32 %v1196, %v1257
        %v1268 = vmul.f32 %v1198, %v1257
        %v1269 = vmul.f32 %v1201, %v1257
        %v1270 = vmul.f32 %v1203, %v1257
        %v1271 = vmul.f32 %v1206, %v1257
        %v1272 = vmul.f32 %v1208, %v1257
        %v1273 = vmul.f32 %v1211, %v1257
        %v1274 = vmul.f32 %v1213, %v1257
        %v1275 = vmul.f32 %v1216, %v1257
        %v1276 = vmul.f32 %v1218, %v1257
        %v1277 = vmul.f32 %v1221, %v1257
        %v1278 = vmul.f32 %v1223, %v1257
        %v1279 = vmul.f32 %v1226, %v1257
        %v1280 = vmul.f32 %v1228, %v1257
        %v1281 = vmul.f32 %v1231, %v1257
        %v1282 = vmul.f32 %v1233, %v1257
        %v1283 = vmul.f32 %v1236, %v1257
        %v1284 = vmul.f32 %v1238, %v1257
        %v1285 = vmul.f32 %v1241, %v1257
        %v1286 = vmul.f32 %v1243, %v1257
        %v1287 = vmul.f32 %v1246, %v1257
        %v1288 = vmul.f32 %v1248, %v1257
        %v1289 = vmul.f32 %v1251, %v1257
        %v1290 = vmul.f32 %v1253, %v1257
        %v1291 = vld [vmem:[%s6] sm:$0x1]
        %v1293 = vperm.slane %v1291, 0
        %v1295 = vadd.f32 %v1259, %v1293
        %v1296 = vadd.f32 %v1260, %v1293
        %v1297 = vadd.f32 %v1261, %v1293
        %v1298 = vadd.f32 %v1262, %v1293
        %v1299 = vadd.f32 %v1263, %v1293
        %v1300 = vadd.f32 %v1264, %v1293
        %v1301 = vadd.f32 %v1265, %v1293
        %v1302 = vadd.f32 %v1266, %v1293
        %v1303 = vadd.f32 %v1267, %v1293
        %v1304 = vadd.f32 %v1268, %v1293
        %v1305 = vadd.f32 %v1269, %v1293
        %v1306 = vadd.f32 %v1270, %v1293
        %v1307 = vadd.f32 %v1271, %v1293
        %v1308 = vadd.f32 %v1272, %v1293
        %v1309 = vadd.f32 %v1273, %v1293
        %v1310 = vadd.f32 %v1274, %v1293
        %v1311 = vadd.f32 %v1275, %v1293
        %v1312 = vadd.f32 %v1276, %v1293
        %v1313 = vadd.f32 %v1277, %v1293
        %v1314 = vadd.f32 %v1278, %v1293
        %v1315 = vadd.f32 %v1279, %v1293
        %v1316 = vadd.f32 %v1280, %v1293
        %v1317 = vadd.f32 %v1281, %v1293
        %v1318 = vadd.f32 %v1282, %v1293
        %v1319 = vadd.f32 %v1283, %v1293
        %v1320 = vadd.f32 %v1284, %v1293
        %v1321 = vadd.f32 %v1285, %v1293
        %v1322 = vadd.f32 %v1286, %v1293
        %v1323 = vadd.f32 %v1287, %v1293
        %v1324 = vadd.f32 %v1288, %v1293
        %v1325 = vadd.f32 %v1289, %v1293
        %v1326 = vadd.f32 %v1290, %v1293
        %v1327 = vmax.f32 %v1295, 0.0
        %v1328 = vmax.f32 %v1296, 0.0
        %v1329 = vmax.f32 %v1297, 0.0
        %v1330 = vmax.f32 %v1298, 0.0
        %v1331 = vmax.f32 %v1299, 0.0
        %v1332 = vmax.f32 %v1300, 0.0
        %v1333 = vmax.f32 %v1301, 0.0
        %v1334 = vmax.f32 %v1302, 0.0
        %v1335 = vmax.f32 %v1303, 0.0
        %v1336 = vmax.f32 %v1304, 0.0
        %v1337 = vmax.f32 %v1305, 0.0
        %v1338 = vmax.f32 %v1306, 0.0
        %v1339 = vmax.f32 %v1307, 0.0
        %v1340 = vmax.f32 %v1308, 0.0
        %v1341 = vmax.f32 %v1309, 0.0
        %v1342 = vmax.f32 %v1310, 0.0
        %v1343 = vmax.f32 %v1311, 0.0
        %v1344 = vmax.f32 %v1312, 0.0
        %v1345 = vmax.f32 %v1313, 0.0
        %v1346 = vmax.f32 %v1314, 0.0
        %v1347 = vmax.f32 %v1315, 0.0
        %v1348 = vmax.f32 %v1316, 0.0
        %v1349 = vmax.f32 %v1317, 0.0
        %v1350 = vmax.f32 %v1318, 0.0
        %v1351 = vmax.f32 %v1319, 0.0
        %v1352 = vmax.f32 %v1320, 0.0
        %v1353 = vmax.f32 %v1321, 0.0
        %v1354 = vmax.f32 %v1322, 0.0
        %v1355 = vmax.f32 %v1323, 0.0
        %v1356 = vmax.f32 %v1324, 0.0
        %v1357 = vmax.f32 %v1325, 0.0
        %v1358 = vmax.f32 %v1326, 0.0
        %v1359 = vld [vmem:[%s474] sm:$0xff]
        %v1360 = vld [vmem:[%s474 + $0x8] sm:$0xff]
        %v1361 = vld [vmem:[%s474 + $0x10] sm:$0xff]
        %v1362 = vld [vmem:[%s474 + $0x18] sm:$0xff]
        %v1363 = vld [vmem:[%s474 + $0x20] sm:$0xff]
        %v1364 = vld [vmem:[%s474 + $0x28] sm:$0xff]
        %v1365 = vld [vmem:[%s474 + $0x30] sm:$0xff]
        %v1366 = vld [vmem:[%s474 + $0x38] sm:$0xff]
        %v1367 = vld [vmem:[%s474 + $0x40] sm:$0xff]
        %v1368 = vld [vmem:[%s474 + $0x48] sm:$0xff]
        %v1369 = vld [vmem:[%s474 + $0x50] sm:$0xff]
        %v1370 = vld [vmem:[%s474 + $0x58] sm:$0xff]
        %v1371 = vld [vmem:[%s474 + $0x60] sm:$0xff]
        %v1372 = vld [vmem:[%s474 + $0x68] sm:$0xff]
        %v1373 = vld [vmem:[%s474 + $0x70] sm:$0xff]
        %v1374 = vld [vmem:[%s474 + $0x78] sm:$0xff]
        %v1375 = vld [vmem:[%s474 + $0x80] sm:$0xff]
        %v1376 = vld [vmem:[%s474 + $0x88] sm:$0xff]
        %v1377 = vld [vmem:[%s474 + $0x90] sm:$0xff]
        %v1378 = vld [vmem:[%s474 + $0x98] sm:$0xff]
        %v1379 = vld [vmem:[%s474 + $0xa0] sm:$0xff]
        %v1380 = vld [vmem:[%s474 + $0xa8] sm:$0xff]
        %v1381 = vld [vmem:[%s474 + $0xb0] sm:$0xff]
        %v1382 = vld [vmem:[%s474 + $0xb8] sm:$0xff]
        %v1383 = vld [vmem:[%s474 + $0xc0] sm:$0xff]
        %v1384 = vld [vmem:[%s474 + $0xc8] sm:$0xff]
        %v1385 = vld [vmem:[%s474 + $0xd0] sm:$0xff]
        %v1386 = vld [vmem:[%s474 + $0xd8] sm:$0xff]
        %v1387 = vld [vmem:[%s474 + $0xe0] sm:$0xff]
        %v1388 = vld [vmem:[%s474 + $0xe8] sm:$0xff]
        %v1389 = vld [vmem:[%s474 + $0xf0] sm:$0xff]
        %v1390 = vld [vmem:[%s474 + $0xf8] sm:$0xff]
        %v1391 = vld [vmem:[%s474 + $0x100] sm:$0xff]
        %v1392 = vld [vmem:[%s474 + $0x108] sm:$0xff]
        %v1393 = vld [vmem:[%s474 + $0x110] sm:$0xff]
        %v1394 = vld [vmem:[%s474 + $0x118] sm:$0xff]
        %v1395 = vld [vmem:[%s474 + $0x120] sm:$0xff]
        %v1396 = vld [vmem:[%s474 + $0x128] sm:$0xff]
        %v1397 = vld [vmem:[%s474 + $0x130] sm:$0xff]
        %v1398 = vld [vmem:[%s474 + $0x138] sm:$0xff]
        %v1399 = vld [vmem:[%s474 + $0x140] sm:$0xff]
        %v1400 = vld [vmem:[%s474 + $0x148] sm:$0xff]
        %v1401 = vld [vmem:[%s474 + $0x150] sm:$0xff]
        %v1402 = vld [vmem:[%s474 + $0x158] sm:$0xff]
        %v1403 = vld [vmem:[%s474 + $0x160] sm:$0xff]
        %v1404 = vld [vmem:[%s474 + $0x168] sm:$0xff]
        %v1405 = vld [vmem:[%s474 + $0x170] sm:$0xff]
        %v1406 = vld [vmem:[%s474 + $0x178] sm:$0xff]
        %v1407 = vld [vmem:[%s474 + $0x180] sm:$0xff]
        %v1408 = vld [vmem:[%s474 + $0x188] sm:$0xff]
        %v1409 = vld [vmem:[%s474 + $0x190] sm:$0xff]
        %v1410 = vld [vmem:[%s474 + $0x198] sm:$0xff]
        %v1411 = vld [vmem:[%s474 + $0x1a0] sm:$0xff]
        %v1412 = vld [vmem:[%s474 + $0x1a8] sm:$0xff]
        %v1413 = vld [vmem:[%s474 + $0x1b0] sm:$0xff]
        %v1414 = vld [vmem:[%s474 + $0x1b8] sm:$0xff]
        %v1415 = vld [vmem:[%s474 + $0x1c0] sm:$0xff]
        %v1416 = vld [vmem:[%s474 + $0x1c8] sm:$0xff]
        %v1417 = vld [vmem:[%s474 + $0x1d0] sm:$0xff]
        %v1418 = vld [vmem:[%s474 + $0x1d8] sm:$0xff]
        %v1419 = vld [vmem:[%s474 + $0x1e0] sm:$0xff]
        %v1420 = vld [vmem:[%s474 + $0x1e8] sm:$0xff]
        %v1421 = vld [vmem:[%s474 + $0x1f0] sm:$0xff]
        %v1422 = vld [vmem:[%s474 + $0x1f8] sm:$0xff]
        %v1423 = vld [vmem:[%s7] sm:$0xf]
        %v1424 = vld [vmem:[%s7 + $0x4] sm:$0xf]
        %v1425 = vld [vmem:[%s7 + $0x8] sm:$0xf]
        %v1426 = vld [vmem:[%s7 + $0xc] sm:$0xf]
        %v1427 = vld [vmem:[%s7 + $0x10] sm:$0xf]
        %v1428 = vld [vmem:[%s7 + $0x14] sm:$0xf]
        %v1429 = vld [vmem:[%s7 + $0x18] sm:$0xf]
        %v1430 = vld [vmem:[%s7 + $0x1c] sm:$0xf]
        %v1431 = vld [vmem:[%s7 + $0x20] sm:$0xf]
        %v1432 = vld [vmem:[%s7 + $0x24] sm:$0xf]
        %v1433 = vld [vmem:[%s7 + $0x28] sm:$0xf]
        %v1434 = vld [vmem:[%s7 + $0x2c] sm:$0xf]
        %v1435 = vld [vmem:[%s7 + $0x30] sm:$0xf]
        %v1436 = vld [vmem:[%s7 + $0x34] sm:$0xf]
        %v1437 = vld [vmem:[%s7 + $0x38] sm:$0xf]
        %v1438 = vld [vmem:[%s7 + $0x3c] sm:$0xf]
        %v1439 = vld [vmem:[%s7 + $0x40] sm:$0xf]
        %v1440 = vld [vmem:[%s7 + $0x44] sm:$0xf]
        %v1441 = vld [vmem:[%s7 + $0x48] sm:$0xf]
        %v1442 = vld [vmem:[%s7 + $0x4c] sm:$0xf]
        %v1443 = vld [vmem:[%s7 + $0x50] sm:$0xf]
        %v1444 = vld [vmem:[%s7 + $0x54] sm:$0xf]
        %v1445 = vld [vmem:[%s7 + $0x58] sm:$0xf]
        %v1446 = vld [vmem:[%s7 + $0x5c] sm:$0xf]
        %v1447 = vld [vmem:[%s7 + $0x60] sm:$0xf]
        %v1448 = vld [vmem:[%s7 + $0x64] sm:$0xf]
        %v1449 = vld [vmem:[%s7 + $0x68] sm:$0xf]
        %v1450 = vld [vmem:[%s7 + $0x6c] sm:$0xf]
        %v1451 = vld [vmem:[%s7 + $0x70] sm:$0xf]
        %v1452 = vld [vmem:[%s7 + $0x74] sm:$0xf]
        %v1453 = vld [vmem:[%s7 + $0x78] sm:$0xf]
        %v1454 = vld [vmem:[%s7 + $0x7c] sm:$0xf]
        %v1455 = vld [vmem:[%s7 + $0x80] sm:$0xf]
        %v1456 = vld [vmem:[%s7 + $0x84] sm:$0xf]
        %v1457 = vld [vmem:[%s7 + $0x88] sm:$0xf]
        %v1458 = vld [vmem:[%s7 + $0x8c] sm:$0xf]
        %v1459 = vld [vmem:[%s7 + $0x90] sm:$0xf]
        %v1460 = vld [vmem:[%s7 + $0x94] sm:$0xf]
        %v1461 = vld [vmem:[%s7 + $0x98] sm:$0xf]
        %v1462 = vld [vmem:[%s7 + $0x9c] sm:$0xf]
        %v1463 = vld [vmem:[%s7 + $0xa0] sm:$0xf]
        %v1464 = vld [vmem:[%s7 + $0xa4] sm:$0xf]
        %v1465 = vld [vmem:[%s7 + $0xa8] sm:$0xf]
        %v1466 = vld [vmem:[%s7 + $0xac] sm:$0xf]
        %v1467 = vld [vmem:[%s7 + $0xb0] sm:$0xf]
        %v1468 = vld [vmem:[%s7 + $0xb4] sm:$0xf]
        %v1469 = vld [vmem:[%s7 + $0xb8] sm:$0xf]
        %v1470 = vld [vmem:[%s7 + $0xbc] sm:$0xf]
        %v1471 = vld [vmem:[%s7 + $0xc0] sm:$0xf]
        %v1472 = vld [vmem:[%s7 + $0xc4] sm:$0xf]
        %v1473 = vld [vmem:[%s7 + $0xc8] sm:$0xf]
        %v1474 = vld [vmem:[%s7 + $0xcc] sm:$0xf]
        %v1475 = vld [vmem:[%s7 + $0xd0] sm:$0xf]
        %v1476 = vld [vmem:[%s7 + $0xd4] sm:$0xf]
        %v1541 = vunpack.c.l.b16 %v1359
        %v1542 = vunpack.c.h.b16 %v1359
        %v1543 = vunpack.c.l.b16 %v1360
        %v1544 = vunpack.c.h.b16 %v1360
        %v1545 = vunpack.c.l.b16 %v1361
        %v1546 = vunpack.c.h.b16 %v1361
        %v1547 = vunpack.c.l.b16 %v1362
        %v1548 = vunpack.c.h.b16 %v1362
        %v1549 = vunpack.c.l.b16 %v1363
        %v1550 = vunpack.c.h.b16 %v1363
        %v1551 = vunpack.c.l.b16 %v1364
        %v1552 = vunpack.c.h.b16 %v1364
        %v1553 = vunpack.c.l.b16 %v1365
        %v1554 = vunpack.c.h.b16 %v1365
        %v1555 = vunpack.c.l.b16 %v1366
        %v1556 = vunpack.c.h.b16 %v1366
        %v1557 = vunpack.c.l.b16 %v1367
        %v1558 = vunpack.c.h.b16 %v1367
        %v1559 = vunpack.c.l.b16 %v1368
        %v1560 = vunpack.c.h.b16 %v1368
        %v1561 = vunpack.c.l.b16 %v1369
        %v1562 = vunpack.c.h.b16 %v1369
        %v1563 = vunpack.c.l.b16 %v1370
        %v1564 = vunpack.c.h.b16 %v1370
        %v1565 = vunpack.c.l.b16 %v1371
        %v1566 = vunpack.c.h.b16 %v1371
        %v1567 = vunpack.c.l.b16 %v1372
        %v1568 = vunpack.c.h.b16 %v1372
        %v1569 = vunpack.c.l.b16 %v1373
        %v1570 = vunpack.c.h.b16 %v1373
        %v1571 = vunpack.c.l.b16 %v1374
        %v1572 = vunpack.c.h.b16 %v1374
        %v1573 = vunpack.c.l.b16 %v1375
        %v1574 = vunpack.c.h.b16 %v1375
        %v1575 = vunpack.c.l.b16 %v1376
        %v1576 = vunpack.c.h.b16 %v1376
        %v1577 = vunpack.c.l.b16 %v1377
        %v1578 = vunpack.c.h.b16 %v1377
        %v1579 = vunpack.c.l.b16 %v1378
        %v1580 = vunpack.c.h.b16 %v1378
        %v1581 = vunpack.c.l.b16 %v1379
        %v1582 = vunpack.c.h.b16 %v1379
        %v1583 = vunpack.c.l.b16 %v1380
        %v1584 = vunpack.c.h.b16 %v1380
        %v1585 = vunpack.c.l.b16 %v1381
        %v1586 = vunpack.c.h.b16 %v1381
        %v1587 = vunpack.c.l.b16 %v1382
        %v1588 = vunpack.c.h.b16 %v1382
        %v1589 = vunpack.c.l.b16 %v1383
        %v1590 = vunpack.c.h.b16 %v1383
        %v1591 = vunpack.c.l.b16 %v1384
        %v1592 = vunpack.c.h.b16 %v1384
        %v1593 = vunpack.c.l.b16 %v1385
        %v1594 = vunpack.c.h.b16 %v1385
        %v1595 = vunpack.c.l.b16 %v1386
        %v1596 = vunpack.c.h.b16 %v1386
        %v1597 = vunpack.c.l.b16 %v1387
        %v1598 = vunpack.c.h.b16 %v1387
        %v1599 = vunpack.c.l.b16 %v1388
        %v1600 = vunpack.c.h.b16 %v1388
        %v1601 = vunpack.c.l.b16 %v1389
        %v1602 = vunpack.c.h.b16 %v1389
        %v1603 = vunpack.c.l.b16 %v1390
        %v1604 = vunpack.c.h.b16 %v1390
        %v1605 = vunpack.c.l.b16 %v1391
        %v1606 = vunpack.c.h.b16 %v1391
        %v1607 = vunpack.c.l.b16 %v1392
        %v1608 = vunpack.c.h.b16 %v1392
        %v1609 = vunpack.c.l.b16 %v1393
        %v1610 = vunpack.c.h.b16 %v1393
        %v1611 = vunpack.c.l.b16 %v1394
        %v1612 = vunpack.c.h.b16 %v1394
        %v1613 = vunpack.c.l.b16 %v1395
        %v1614 = vunpack.c.h.b16 %v1395
        %v1615 = vunpack.c.l.b16 %v1396
        %v1616 = vunpack.c.h.b16 %v1396
        %v1617 = vunpack.c.l.b16 %v1397
        %v1618 = vunpack.c.h.b16 %v1397
        %v1619 = vunpack.c.l.b16 %v1398
        %v1620 = vunpack.c.h.b16 %v1398
        %v1621 = vunpack.c.l.b16 %v1399
        %v1622 = vunpack.c.h.b16 %v1399
        %v1623 = vunpack.c.l.b16 %v1400
        %v1624 = vunpack.c.h.b16 %v1400
        %v1625 = vunpack.c.l.b16 %v1401
        %v1626 = vunpack.c.h.b16 %v1401
        %v1627 = vunpack.c.l.b16 %v1402
        %v1628 = vunpack.c.h.b16 %v1402
        %v1629 = vunpack.c.l.b16 %v1403
        %v1630 = vunpack.c.h.b16 %v1403
        %v1631 = vunpack.c.l.b16 %v1404
        %v1632 = vunpack.c.h.b16 %v1404
        %v1633 = vunpack.c.l.b16 %v1405
        %v1634 = vunpack.c.h.b16 %v1405
        %v1635 = vunpack.c.l.b16 %v1406
        %v1636 = vunpack.c.h.b16 %v1406
        %v1637 = vunpack.c.l.b16 %v1407
        %v1638 = vunpack.c.h.b16 %v1407
        %v1639 = vunpack.c.l.b16 %v1408
        %v1640 = vunpack.c.h.b16 %v1408
        %v1641 = vunpack.c.l.b16 %v1409
        %v1642 = vunpack.c.h.b16 %v1409
        %v1643 = vunpack.c.l.b16 %v1410
        %v1644 = vunpack.c.h.b16 %v1410
        %v1645 = vunpack.c.l.b16 %v1411
        %v1646 = vunpack.c.h.b16 %v1411
        %v1647 = vunpack.c.l.b16 %v1412
        %v1648 = vunpack.c.h.b16 %v1412
        %v1649 = vunpack.c.l.b16 %v1413
        %v1650 = vunpack.c.h.b16 %v1413
        %v1651 = vunpack.c.l.b16 %v1414
        %v1652 = vunpack.c.h.b16 %v1414
        %v1653 = vunpack.c.l.b16 %v1415
        %v1654 = vunpack.c.h.b16 %v1415
        %v1655 = vunpack.c.l.b16 %v1416
        %v1656 = vunpack.c.h.b16 %v1416
        %v1657 = vunpack.c.l.b16 %v1417
        %v1658 = vunpack.c.h.b16 %v1417
        %v1659 = vunpack.c.l.b16 %v1418
        %v1660 = vunpack.c.h.b16 %v1418
        %v1661 = vunpack.c.l.b16 %v1419
        %v1662 = vunpack.c.h.b16 %v1419
        %v1663 = vunpack.c.l.b16 %v1420
        %v1664 = vunpack.c.h.b16 %v1420
        %v1665 = vunpack.c.l.b16 %v1421
        %v1666 = vunpack.c.h.b16 %v1421
        %v1667 = vunpack.c.l.b16 %v1422
        %v1668 = vunpack.c.h.b16 %v1422
        %v1669 = vpack.c.b16 %v1545, %v1541
        %v1670 = vpack.c.b16 %v1546, %v1542
        %v1671 = vpack.c.b16 %v1547, %v1543
        %v1672 = vpack.c.b16 %v1548, %v1544
        %v1673 = vpack.c.b16 %v1553, %v1549
        %v1674 = vpack.c.b16 %v1554, %v1550
        %v1675 = vpack.c.b16 %v1555, %v1551
        %v1676 = vpack.c.b16 %v1556, %v1552
        %v1677 = vpack.c.b16 %v1561, %v1557
        %v1678 = vpack.c.b16 %v1562, %v1558
        %v1679 = vpack.c.b16 %v1563, %v1559
        %v1680 = vpack.c.b16 %v1564, %v1560
        %v1681 = vpack.c.b16 %v1569, %v1565
        %v1682 = vpack.c.b16 %v1570, %v1566
        %v1683 = vpack.c.b16 %v1571, %v1567
        %v1684 = vpack.c.b16 %v1572, %v1568
        %v1685 = vpack.c.b16 %v1577, %v1573
        %v1686 = vpack.c.b16 %v1578, %v1574
        %v1687 = vpack.c.b16 %v1579, %v1575
        %v1688 = vpack.c.b16 %v1580, %v1576
        %v1689 = vpack.c.b16 %v1585, %v1581
        %v1690 = vpack.c.b16 %v1586, %v1582
        %v1691 = vpack.c.b16 %v1587, %v1583
        %v1692 = vpack.c.b16 %v1588, %v1584
        %v1693 = vpack.c.b16 %v1593, %v1589
        %v1694 = vpack.c.b16 %v1594, %v1590
        %v1695 = vpack.c.b16 %v1595, %v1591
        %v1696 = vpack.c.b16 %v1596, %v1592
        %v1697 = vpack.c.b16 %v1601, %v1597
        %v1698 = vpack.c.b16 %v1602, %v1598
        %v1699 = vpack.c.b16 %v1603, %v1599
        %v1700 = vpack.c.b16 %v1604, %v1600
        %v1701 = vpack.c.b16 %v1609, %v1605
        %v1702 = vpack.c.b16 %v1610, %v1606
        %v1703 = vpack.c.b16 %v1611, %v1607
        %v1704 = vpack.c.b16 %v1612, %v1608
        %v1705 = vpack.c.b16 %v1617, %v1613
        %v1706 = vpack.c.b16 %v1618, %v1614
        %v1707 = vpack.c.b16 %v1619, %v1615
        %v1708 = vpack.c.b16 %v1620, %v1616
        %v1709 = vpack.c.b16 %v1625, %v1621
        %v1710 = vpack.c.b16 %v1626, %v1622
        %v1711 = vpack.c.b16 %v1627, %v1623
        %v1712 = vpack.c.b16 %v1628, %v1624
        %v1713 = vpack.c.b16 %v1633, %v1629
        %v1714 = vpack.c.b16 %v1634, %v1630
        %v1715 = vpack.c.b16 %v1635, %v1631
        %v1716 = vpack.c.b16 %v1636, %v1632
        %v1717 = vpack.c.b16 %v1641, %v1637
        %v1718 = vpack.c.b16 %v1642, %v1638
        %v1719 = vpack.c.b16 %v1643, %v1639
        %v1720 = vpack.c.b16 %v1644, %v1640
        %v1721 = vpack.c.b16 %v1649, %v1645
        %v1722 = vpack.c.b16 %v1650, %v1646
        %v1723 = vpack.c.b16 %v1651, %v1647
        %v1724 = vpack.c.b16 %v1652, %v1648
        %v1725 = vpack.c.b16 %v1657, %v1653
        %v1726 = vpack.c.b16 %v1658, %v1654
        %v1727 = vpack.c.b16 %v1659, %v1655
        %v1728 = vpack.c.b16 %v1660, %v1656
        %v1729 = vpack.c.b16 %v1665, %v1661
        %v1730 = vpack.c.b16 %v1666, %v1662
        %v1731 = vpack.c.b16 %v1667, %v1663
        %v1732 = vpack.c.b16 %v1668, %v1664
        %v1835 = vunpack.c.l.b16 %v1423
        %v1836 = vunpack.c.l.b16 %v1424
        %v1837 = vunpack.c.l.b16 %v1425
        %v1838 = vunpack.c.l.b16 %v1426
        %v1839 = vunpack.c.l.b16 %v1427
        %v1840 = vunpack.c.l.b16 %v1428
        %v1841 = vunpack.c.l.b16 %v1429
        %v1842 = vunpack.c.l.b16 %v1430
        %v1843 = vunpack.c.l.b16 %v1431
        %v1844 = vunpack.c.l.b16 %v1432
        %v1845 = vunpack.c.l.b16 %v1433
        %v1846 = vunpack.c.l.b16 %v1434
        %v1847 = vunpack.c.l.b16 %v1435
        %v1848 = vunpack.c.l.b16 %v1436
        %v1849 = vunpack.c.l.b16 %v1437
        %v1850 = vunpack.c.l.b16 %v1438
        %v1851 = vunpack.c.l.b16 %v1439
        %v1852 = vunpack.c.l.b16 %v1440
        %v1853 = vunpack.c.l.b16 %v1441
        %v1854 = vunpack.c.l.b16 %v1442
        %v1855 = vunpack.c.l.b16 %v1443
        %v1856 = vunpack.c.l.b16 %v1444
        %v1857 = vunpack.c.l.b16 %v1445
        %v1858 = vunpack.c.l.b16 %v1446
        %v1859 = vunpack.c.l.b16 %v1447
        %v1860 = vunpack.c.l.b16 %v1448
        %v1861 = vunpack.c.l.b16 %v1449
        %v1862 = vunpack.c.l.b16 %v1450
        %v1863 = vunpack.c.l.b16 %v1451
        %v1864 = vunpack.c.l.b16 %v1452
        %v1865 = vunpack.c.l.b16 %v1453
        %v1866 = vunpack.c.l.b16 %v1454
        %v1867 = vunpack.c.l.b16 %v1455
        %v1868 = vunpack.c.l.b16 %v1456
        %v1869 = vunpack.c.l.b16 %v1457
        %v1870 = vunpack.c.l.b16 %v1458
        %v1871 = vunpack.c.l.b16 %v1459
        %v1872 = vunpack.c.l.b16 %v1460
        %v1873 = vunpack.c.l.b16 %v1461
        %v1874 = vunpack.c.l.b16 %v1462
        %v1875 = vunpack.c.l.b16 %v1463
        %v1876 = vunpack.c.l.b16 %v1464
        %v1877 = vunpack.c.l.b16 %v1465
        %v1878 = vunpack.c.l.b16 %v1466
        %v1879 = vunpack.c.l.b16 %v1467
        %v1880 = vunpack.c.l.b16 %v1468
        %v1881 = vunpack.c.l.b16 %v1469
        %v1882 = vunpack.c.l.b16 %v1470
        %v1883 = vunpack.c.l.b16 %v1471
        %v1884 = vunpack.c.l.b16 %v1472
        %v1885 = vunpack.c.l.b16 %v1473
        %v1886 = vunpack.c.l.b16 %v1474
        %v1887 = vunpack.c.l.b16 %v1475
        %v1888 = vunpack.c.l.b16 %v1476
        %v1889 = vpack.c.b16 %v1836, %v1835
        %v1890 = vpack.c.b16 %v1838, %v1837
        %v1891 = vpack.c.b16 %v1840, %v1839
        %v1892 = vpack.c.b16 %v1842, %v1841
        %v1893 = vpack.c.b16 %v1844, %v1843
        %v1894 = vpack.c.b16 %v1846, %v1845
        %v1895 = vpack.c.b16 %v1848, %v1847
        %v1896 = vpack.c.b16 %v1850, %v1849
        %v1897 = vpack.c.b16 %v1852, %v1851
        %v1898 = vpack.c.b16 %v1854, %v1853
        %v1899 = vpack.c.b16 %v1856, %v1855
        %v1900 = vpack.c.b16 %v1858, %v1857
        %v1901 = vpack.c.b16 %v1860, %v1859
        %v1902 = vpack.c.b16 %v1862, %v1861
        %v1903 = vpack.c.b16 %v1864, %v1863
        %v1904 = vpack.c.b16 %v1866, %v1865
        %v1905 = vpack.c.b16 %v1868, %v1867
        %v1906 = vpack.c.b16 %v1870, %v1869
        %v1907 = vpack.c.b16 %v1872, %v1871
        %v1908 = vpack.c.b16 %v1874, %v1873
        %v1909 = vpack.c.b16 %v1876, %v1875
        %v1910 = vpack.c.b16 %v1878, %v1877
        %v1911 = vpack.c.b16 %v1880, %v1879
        %v1912 = vpack.c.b16 %v1882, %v1881
        %v1913 = vpack.c.b16 %v1884, %v1883
        %v1914 = vpack.c.b16 %v1886, %v1885
        %v1915 = vpack.c.b16 %v1888, %v1887
        %vm1943 = vcmask 392192
        %v1945 = vsel %vm1943, %v1672, 0
        %v1948 = vsel %vm1943, %v1676, 0
        %v1951 = vsel %vm1943, %v1680, 0
        %v1954 = vsel %vm1943, %v1684, 0
        %v1957 = vsel %vm1943, %v1688, 0
        %v1960 = vsel %vm1943, %v1692, 0
        %v1963 = vsel %vm1943, %v1696, 0
        %v1966 = vsel %vm1943, %v1700, 0
        %v1969 = vsel %vm1943, %v1704, 0
        %v1972 = vsel %vm1943, %v1708, 0
        %v1975 = vsel %vm1943, %v1712, 0
        %v1978 = vsel %vm1943, %v1716, 0
        %v1981 = vsel %vm1943, %v1720, 0
        %v1984 = vsel %vm1943, %v1724, 0
        %v1987 = vsel %vm1943, %v1728, 0
        %v1990 = vsel %vm1943, %v1732, 0
        %1992 = vmatpush.bf16.msra.mxu0 %v1896
        %1993 = vmatpush.bf16.msra.mxu0 %v1895
        %1994 = vmatpush.bf16.msra.mxu0 %v1894
        %1995 = vmatpush.bf16.msra.mxu0 %v1893
        %1996 = vmatpush.bf16.msra.mxu0 %v1892
        %1997 = vmatpush.bf16.msra.mxu0 %v1891
        %1998 = vmatpush.bf16.msra.mxu0 %v1890
        %1999 = vmatpush.bf16.msra.mxu0 %v1889
        %2000 = vmatmul.bf16.gmra.mxu0 %v1669
        %v2001 = vpop.f32.mrf.mxu0
        %v2002 = vadd.f32 0.0, %v2001
        %v2003 = vpop.f32.mrf.mxu0
        %v2004 = vadd.f32 0.0, %v2003
        %2005 = vmatmul.bf16.gmra.mxu0 %v1673
        %v2006 = vpop.f32.mrf.mxu0
        %v2007 = vadd.f32 0.0, %v2006
        %v2008 = vpop.f32.mrf.mxu0
        %v2009 = vadd.f32 0.0, %v2008
        %2010 = vmatmul.bf16.gmra.mxu0 %v1677
        %v2011 = vpop.f32.mrf.mxu0
        %v2012 = vadd.f32 0.0, %v2011
        %v2013 = vpop.f32.mrf.mxu0
        %v2014 = vadd.f32 0.0, %v2013
        %2015 = vmatmul.bf16.gmra.mxu0 %v1681
        %v2016 = vpop.f32.mrf.mxu0
        %v2017 = vadd.f32 0.0, %v2016
        %v2018 = vpop.f32.mrf.mxu0
        %v2019 = vadd.f32 0.0, %v2018
        %2020 = vmatmul.bf16.gmra.mxu0 %v1685
        %v2021 = vpop.f32.mrf.mxu0
        %v2022 = vadd.f32 0.0, %v2021
        %v2023 = vpop.f32.mrf.mxu0
        %v2024 = vadd.f32 0.0, %v2023
        %2025 = vmatmul.bf16.gmra.mxu0 %v1689
        %v2026 = vpop.f32.mrf.mxu0
        %v2027 = vadd.f32 0.0, %v2026
        %v2028 = vpop.f32.mrf.mxu0
        %v2029 = vadd.f32 0.0, %v2028
        %2030 = vmatmul.bf16.gmra.mxu0 %v1693
        %v2031 = vpop.f32.mrf.mxu0
        %v2032 = vadd.f32 0.0, %v2031
        %v2033 = vpop.f32.mrf.mxu0
        %v2034 = vadd.f32 0.0, %v2033
        %2035 = vmatmul.bf16.gmra.mxu0 %v1697
        %v2036 = vpop.f32.mrf.mxu0
        %v2037 = vadd.f32 0.0, %v2036
        %v2038 = vpop.f32.mrf.mxu0
        %v2039 = vadd.f32 0.0, %v2038
        %2040 = vmatmul.bf16.gmra.mxu0 %v1701
        %v2041 = vpop.f32.mrf.mxu0
        %v2042 = vadd.f32 0.0, %v2041
        %v2043 = vpop.f32.mrf.mxu0
        %v2044 = vadd.f32 0.0, %v2043
        %2045 = vmatmul.bf16.gmra.mxu0 %v1705
        %v2046 = vpop.f32.mrf.mxu0
        %v2047 = vadd.f32 0.0, %v2046
        %v2048 = vpop.f32.mrf.mxu0
        %v2049 = vadd.f32 0.0, %v2048
        %2050 = vmatmul.bf16.gmra.mxu0 %v1709
        %v2051 = vpop.f32.mrf.mxu0
        %v2052 = vadd.f32 0.0, %v2051
        %v2053 = vpop.f32.mrf.mxu0
        %v2054 = vadd.f32 0.0, %v2053
        %2055 = vmatmul.bf16.gmra.mxu0 %v1713
        %v2056 = vpop.f32.mrf.mxu0
        %v2057 = vadd.f32 0.0, %v2056
        %v2058 = vpop.f32.mrf.mxu0
        %v2059 = vadd.f32 0.0, %v2058
        %2060 = vmatmul.bf16.gmra.mxu0 %v1717
        %v2061 = vpop.f32.mrf.mxu0
        %v2062 = vadd.f32 0.0, %v2061
        %v2063 = vpop.f32.mrf.mxu0
        %v2064 = vadd.f32 0.0, %v2063
        %2065 = vmatmul.bf16.gmra.mxu0 %v1721
        %v2066 = vpop.f32.mrf.mxu0
        %v2067 = vadd.f32 0.0, %v2066
        %v2068 = vpop.f32.mrf.mxu0
        %v2069 = vadd.f32 0.0, %v2068
        %2070 = vmatmul.bf16.gmra.mxu0 %v1725
        %v2071 = vpop.f32.mrf.mxu0
        %v2072 = vadd.f32 0.0, %v2071
        %v2073 = vpop.f32.mrf.mxu0
        %v2074 = vadd.f32 0.0, %v2073
        %2075 = vmatmul.bf16.gmra.mxu0 %v1729
        %v2076 = vpop.f32.mrf.mxu0
        %v2077 = vadd.f32 0.0, %v2076
        %v2078 = vpop.f32.mrf.mxu0
        %v2079 = vadd.f32 0.0, %v2078
        %2080 = vdwg.mxu0
        %2081 = vmatpush.bf16.msra.mxu0 %v1904
        %2082 = vmatpush.bf16.msra.mxu0 %v1903
        %2083 = vmatpush.bf16.msra.mxu0 %v1902
        %2084 = vmatpush.bf16.msra.mxu0 %v1901
        %2085 = vmatpush.bf16.msra.mxu0 %v1900
        %2086 = vmatpush.bf16.msra.mxu0 %v1899
        %2087 = vmatpush.bf16.msra.mxu0 %v1898
        %2088 = vmatpush.bf16.msra.mxu0 %v1897
        %2089 = vmatmul.bf16.gmra.mxu0 %v1670
        %v2090 = vpop.f32.mrf.mxu0
        %v2091 = vadd.f32 %v2002, %v2090
        %v2092 = vpop.f32.mrf.mxu0
        %v2093 = vadd.f32 %v2004, %v2092
        %2094 = vmatmul.bf16.gmra.mxu0 %v1674
        %v2095 = vpop.f32.mrf.mxu0
        %v2096 = vadd.f32 %v2007, %v2095
        %v2097 = vpop.f32.mrf.mxu0
        %v2098 = vadd.f32 %v2009, %v2097
        %2099 = vmatmul.bf16.gmra.mxu0 %v1678
        %v2100 = vpop.f32.mrf.mxu0
        %v2101 = vadd.f32 %v2012, %v2100
        %v2102 = vpop.f32.mrf.mxu0
        %v2103 = vadd.f32 %v2014, %v2102
        %2104 = vmatmul.bf16.gmra.mxu0 %v1682
        %v2105 = vpop.f32.mrf.mxu0
        %v2106 = vadd.f32 %v2017, %v2105
        %v2107 = vpop.f32.mrf.mxu0
        %v2108 = vadd.f32 %v2019, %v2107
        %2109 = vmatmul.bf16.gmra.mxu0 %v1686
        %v2110 = vpop.f32.mrf.mxu0
        %v2111 = vadd.f32 %v2022, %v2110
        %v2112 = vpop.f32.mrf.mxu0
        %v2113 = vadd.f32 %v2024, %v2112
        %2114 = vmatmul.bf16.gmra.mxu0 %v1690
        %v2115 = vpop.f32.mrf.mxu0
        %v2116 = vadd.f32 %v2027, %v2115
        %v2117 = vpop.f32.mrf.mxu0
        %v2118 = vadd.f32 %v2029, %v2117
        %2119 = vmatmul.bf16.gmra.mxu0 %v1694
        %v2120 = vpop.f32.mrf.mxu0
        %v2121 = vadd.f32 %v2032, %v2120
        %v2122 = vpop.f32.mrf.mxu0
        %v2123 = vadd.f32 %v2034, %v2122
        %2124 = vmatmul.bf16.gmra.mxu0 %v1698
        %v2125 = vpop.f32.mrf.mxu0
        %v2126 = vadd.f32 %v2037, %v2125
        %v2127 = vpop.f32.mrf.mxu0
        %v2128 = vadd.f32 %v2039, %v2127
        %2129 = vmatmul.bf16.gmra.mxu0 %v1702
        %v2130 = vpop.f32.mrf.mxu0
        %v2131 = vadd.f32 %v2042, %v2130
        %v2132 = vpop.f32.mrf.mxu0
        %v2133 = vadd.f32 %v2044, %v2132
        %2134 = vmatmul.bf16.gmra.mxu0 %v1706
        %v2135 = vpop.f32.mrf.mxu0
        %v2136 = vadd.f32 %v2047, %v2135
        %v2137 = vpop.f32.mrf.mxu0
        %v2138 = vadd.f32 %v2049, %v2137
        %2139 = vmatmul.bf16.gmra.mxu0 %v1710
        %v2140 = vpop.f32.mrf.mxu0
        %v2141 = vadd.f32 %v2052, %v2140
        %v2142 = vpop.f32.mrf.mxu0
        %v2143 = vadd.f32 %v2054, %v2142
        %2144 = vmatmul.bf16.gmra.mxu0 %v1714
        %v2145 = vpop.f32.mrf.mxu0
        %v2146 = vadd.f32 %v2057, %v2145
        %v2147 = vpop.f32.mrf.mxu0
        %v2148 = vadd.f32 %v2059, %v2147
        %2149 = vmatmul.bf16.gmra.mxu0 %v1718
        %v2150 = vpop.f32.mrf.mxu0
        %v2151 = vadd.f32 %v2062, %v2150
        %v2152 = vpop.f32.mrf.mxu0
        %v2153 = vadd.f32 %v2064, %v2152
        %2154 = vmatmul.bf16.gmra.mxu0 %v1722
        %v2155 = vpop.f32.mrf.mxu0
        %v2156 = vadd.f32 %v2067, %v2155
        %v2157 = vpop.f32.mrf.mxu0
        %v2158 = vadd.f32 %v2069, %v2157
        %2159 = vmatmul.bf16.gmra.mxu0 %v1726
        %v2160 = vpop.f32.mrf.mxu0
        %v2161 = vadd.f32 %v2072, %v2160
        %v2162 = vpop.f32.mrf.mxu0
        %v2163 = vadd.f32 %v2074, %v2162
        %2164 = vmatmul.bf16.gmra.mxu0 %v1730
        %v2165 = vpop.f32.mrf.mxu0
        %v2166 = vadd.f32 %v2077, %v2165
        %v2167 = vpop.f32.mrf.mxu0
        %v2168 = vadd.f32 %v2079, %v2167
        %2169 = vdwg.mxu0
        %2170 = vmatpush.bf16.msra.mxu0 %v1912
        %2171 = vmatpush.bf16.msra.mxu0 %v1911
        %2172 = vmatpush.bf16.msra.mxu0 %v1910
        %2173 = vmatpush.bf16.msra.mxu0 %v1909
        %2174 = vmatpush.bf16.msra.mxu0 %v1908
        %2175 = vmatpush.bf16.msra.mxu0 %v1907
        %2176 = vmatpush.bf16.msra.mxu0 %v1906
        %2177 = vmatpush.bf16.msra.mxu0 %v1905
        %2178 = vmatmul.bf16.gmra.mxu0 %v1671
        %v2179 = vpop.f32.mrf.mxu0
        %v2180 = vadd.f32 %v2091, %v2179
        %v2181 = vpop.f32.mrf.mxu0
        %v2182 = vadd.f32 %v2093, %v2181
        %2183 = vmatmul.bf16.gmra.mxu0 %v1675
        %v2184 = vpop.f32.mrf.mxu0
        %v2185 = vadd.f32 %v2096, %v2184
        %v2186 = vpop.f32.mrf.mxu0
        %v2187 = vadd.f32 %v2098, %v2186
        %2188 = vmatmul.bf16.gmra.mxu0 %v1679
        %v2189 = vpop.f32.mrf.mxu0
        %v2190 = vadd.f32 %v2101, %v2189
        %v2191 = vpop.f32.mrf.mxu0
        %v2192 = vadd.f32 %v2103, %v2191
        %2193 = vmatmul.bf16.gmra.mxu0 %v1683
        %v2194 = vpop.f32.mrf.mxu0
        %v2195 = vadd.f32 %v2106, %v2194
        %v2196 = vpop.f32.mrf.mxu0
        %v2197 = vadd.f32 %v2108, %v2196
        %2198 = vmatmul.bf16.gmra.mxu0 %v1687
        %v2199 = vpop.f32.mrf.mxu0
        %v2200 = vadd.f32 %v2111, %v2199
        %v2201 = vpop.f32.mrf.mxu0
        %v2202 = vadd.f32 %v2113, %v2201
        %2203 = vmatmul.bf16.gmra.mxu0 %v1691
        %v2204 = vpop.f32.mrf.mxu0
        %v2205 = vadd.f32 %v2116, %v2204
        %v2206 = vpop.f32.mrf.mxu0
        %v2207 = vadd.f32 %v2118, %v2206
        %2208 = vmatmul.bf16.gmra.mxu0 %v1695
        %v2209 = vpop.f32.mrf.mxu0
        %v2210 = vadd.f32 %v2121, %v2209
        %v2211 = vpop.f32.mrf.mxu0
        %v2212 = vadd.f32 %v2123, %v2211
        %2213 = vmatmul.bf16.gmra.mxu0 %v1699
        %v2214 = vpop.f32.mrf.mxu0
        %v2215 = vadd.f32 %v2126, %v2214
        %v2216 = vpop.f32.mrf.mxu0
        %v2217 = vadd.f32 %v2128, %v2216
        %2218 = vmatmul.bf16.gmra.mxu0 %v1703
        %v2219 = vpop.f32.mrf.mxu0
        %v2220 = vadd.f32 %v2131, %v2219
        %v2221 = vpop.f32.mrf.mxu0
        %v2222 = vadd.f32 %v2133, %v2221
        %2223 = vmatmul.bf16.gmra.mxu0 %v1707
        %v2224 = vpop.f32.mrf.mxu0
        %v2225 = vadd.f32 %v2136, %v2224
        %v2226 = vpop.f32.mrf.mxu0
        %v2227 = vadd.f32 %v2138, %v2226
        %2228 = vmatmul.bf16.gmra.mxu0 %v1711
        %v2229 = vpop.f32.mrf.mxu0
        %v2230 = vadd.f32 %v2141, %v2229
        %v2231 = vpop.f32.mrf.mxu0
        %v2232 = vadd.f32 %v2143, %v2231
        %2233 = vmatmul.bf16.gmra.mxu0 %v1715
        %v2234 = vpop.f32.mrf.mxu0
        %v2235 = vadd.f32 %v2146, %v2234
        %v2236 = vpop.f32.mrf.mxu0
        %v2237 = vadd.f32 %v2148, %v2236
        %2238 = vmatmul.bf16.gmra.mxu0 %v1719
        %v2239 = vpop.f32.mrf.mxu0
        %v2240 = vadd.f32 %v2151, %v2239
        %v2241 = vpop.f32.mrf.mxu0
        %v2242 = vadd.f32 %v2153, %v2241
        %2243 = vmatmul.bf16.gmra.mxu0 %v1723
        %v2244 = vpop.f32.mrf.mxu0
        %v2245 = vadd.f32 %v2156, %v2244
        %v2246 = vpop.f32.mrf.mxu0
        %v2247 = vadd.f32 %v2158, %v2246
        %2248 = vmatmul.bf16.gmra.mxu0 %v1727
        %v2249 = vpop.f32.mrf.mxu0
        %v2250 = vadd.f32 %v2161, %v2249
        %v2251 = vpop.f32.mrf.mxu0
        %v2252 = vadd.f32 %v2163, %v2251
        %2253 = vmatmul.bf16.gmra.mxu0 %v1731
        %v2254 = vpop.f32.mrf.mxu0
        %v2255 = vadd.f32 %v2166, %v2254
        %v2256 = vpop.f32.mrf.mxu0
        %v2257 = vadd.f32 %v2168, %v2256
        %2258 = vdwg.mxu0
        %2259 = vmatpush.bf16.msra.mxu0 0
        %2260 = vmatpush.bf16.msra.mxu0 0
        %2261 = vmatpush.bf16.msra.mxu0 0
        %2262 = vmatpush.bf16.msra.mxu0 0
        %2263 = vmatpush.bf16.msra.mxu0 0
        %2264 = vmatpush.bf16.msra.mxu0 %v1915
        %2265 = vmatpush.bf16.msra.mxu0 %v1914
        %2266 = vmatpush.bf16.msra.mxu0 %v1913
        %2267 = vmatmul.bf16.gmra.mxu0 %v1945
        %v2268 = vpop.f32.mrf.mxu0
        %v2269 = vadd.f32 %v2180, %v2268
        %v2270 = vpop.f32.mrf.mxu0
        %v2271 = vadd.f32 %v2182, %v2270
        %2272 = vmatmul.bf16.gmra.mxu0 %v1948
        %v2273 = vpop.f32.mrf.mxu0
        %v2274 = vadd.f32 %v2185, %v2273
        %v2275 = vpop.f32.mrf.mxu0
        %v2276 = vadd.f32 %v2187, %v2275
        %2277 = vmatmul.bf16.gmra.mxu0 %v1951
        %v2278 = vpop.f32.mrf.mxu0
        %v2279 = vadd.f32 %v2190, %v2278
        %v2280 = vpop.f32.mrf.mxu0
        %v2281 = vadd.f32 %v2192, %v2280
        %2282 = vmatmul.bf16.gmra.mxu0 %v1954
        %v2283 = vpop.f32.mrf.mxu0
        %v2284 = vadd.f32 %v2195, %v2283
        %v2285 = vpop.f32.mrf.mxu0
        %v2286 = vadd.f32 %v2197, %v2285
        %2287 = vmatmul.bf16.gmra.mxu0 %v1957
        %v2288 = vpop.f32.mrf.mxu0
        %v2289 = vadd.f32 %v2200, %v2288
        %v2290 = vpop.f32.mrf.mxu0
        %v2291 = vadd.f32 %v2202, %v2290
        %2292 = vmatmul.bf16.gmra.mxu0 %v1960
        %v2293 = vpop.f32.mrf.mxu0
        %v2294 = vadd.f32 %v2205, %v2293
        %v2295 = vpop.f32.mrf.mxu0
        %v2296 = vadd.f32 %v2207, %v2295
        %2297 = vmatmul.bf16.gmra.mxu0 %v1963
        %v2298 = vpop.f32.mrf.mxu0
        %v2299 = vadd.f32 %v2210, %v2298
        %v2300 = vpop.f32.mrf.mxu0
        %v2301 = vadd.f32 %v2212, %v2300
        %2302 = vmatmul.bf16.gmra.mxu0 %v1966
        %v2303 = vpop.f32.mrf.mxu0
        %v2304 = vadd.f32 %v2215, %v2303
        %v2305 = vpop.f32.mrf.mxu0
        %v2306 = vadd.f32 %v2217, %v2305
        %2307 = vmatmul.bf16.gmra.mxu0 %v1969
        %v2308 = vpop.f32.mrf.mxu0
        %v2309 = vadd.f32 %v2220, %v2308
        %v2310 = vpop.f32.mrf.mxu0
        %v2311 = vadd.f32 %v2222, %v2310
        %2312 = vmatmul.bf16.gmra.mxu0 %v1972
        %v2313 = vpop.f32.mrf.mxu0
        %v2314 = vadd.f32 %v2225, %v2313
        %v2315 = vpop.f32.mrf.mxu0
        %v2316 = vadd.f32 %v2227, %v2315
        %2317 = vmatmul.bf16.gmra.mxu0 %v1975
        %v2318 = vpop.f32.mrf.mxu0
        %v2319 = vadd.f32 %v2230, %v2318
        %v2320 = vpop.f32.mrf.mxu0
        %v2321 = vadd.f32 %v2232, %v2320
        %2322 = vmatmul.bf16.gmra.mxu0 %v1978
        %v2323 = vpop.f32.mrf.mxu0
        %v2324 = vadd.f32 %v2235, %v2323
        %v2325 = vpop.f32.mrf.mxu0
        %v2326 = vadd.f32 %v2237, %v2325
        %2327 = vmatmul.bf16.gmra.mxu0 %v1981
        %v2328 = vpop.f32.mrf.mxu0
        %v2329 = vadd.f32 %v2240, %v2328
        %v2330 = vpop.f32.mrf.mxu0
        %v2331 = vadd.f32 %v2242, %v2330
        %2332 = vmatmul.bf16.gmra.mxu0 %v1984
        %v2333 = vpop.f32.mrf.mxu0
        %v2334 = vadd.f32 %v2245, %v2333
        %v2335 = vpop.f32.mrf.mxu0
        %v2336 = vadd.f32 %v2247, %v2335
        %2337 = vmatmul.bf16.gmra.mxu0 %v1987
        %v2338 = vpop.f32.mrf.mxu0
        %v2339 = vadd.f32 %v2250, %v2338
        %v2340 = vpop.f32.mrf.mxu0
        %v2341 = vadd.f32 %v2252, %v2340
        %2342 = vmatmul.bf16.gmra.mxu0 %v1990
        %v2343 = vpop.f32.mrf.mxu0
        %v2344 = vadd.f32 %v2255, %v2343
        %v2345 = vpop.f32.mrf.mxu0
        %v2346 = vadd.f32 %v2257, %v2345
        %2347 = vdwg.mxu0
        %v2348 = vld [vmem:[%s8] sm:$0x1]
        %v2350 = vperm.slane %v2348, 0
        %v2352 = vmul.f32 %v2269, %v2350
        %v2353 = vmul.f32 %v2271, %v2350
        %v2354 = vmul.f32 %v2274, %v2350
        %v2355 = vmul.f32 %v2276, %v2350
        %v2356 = vmul.f32 %v2279, %v2350
        %v2357 = vmul.f32 %v2281, %v2350
        %v2358 = vmul.f32 %v2284, %v2350
        %v2359 = vmul.f32 %v2286, %v2350
        %v2360 = vmul.f32 %v2289, %v2350
        %v2361 = vmul.f32 %v2291, %v2350
        %v2362 = vmul.f32 %v2294, %v2350
        %v2363 = vmul.f32 %v2296, %v2350
        %v2364 = vmul.f32 %v2299, %v2350
        %v2365 = vmul.f32 %v2301, %v2350
        %v2366 = vmul.f32 %v2304, %v2350
        %v2367 = vmul.f32 %v2306, %v2350
        %v2368 = vmul.f32 %v2309, %v2350
        %v2369 = vmul.f32 %v2311, %v2350
        %v2370 = vmul.f32 %v2314, %v2350
        %v2371 = vmul.f32 %v2316, %v2350
        %v2372 = vmul.f32 %v2319, %v2350
        %v2373 = vmul.f32 %v2321, %v2350
        %v2374 = vmul.f32 %v2324, %v2350
        %v2375 = vmul.f32 %v2326, %v2350
        %v2376 = vmul.f32 %v2329, %v2350
        %v2377 = vmul.f32 %v2331, %v2350
        %v2378 = vmul.f32 %v2334, %v2350
        %v2379 = vmul.f32 %v2336, %v2350
        %v2380 = vmul.f32 %v2339, %v2350
        %v2381 = vmul.f32 %v2341, %v2350
        %v2382 = vmul.f32 %v2344, %v2350
        %v2383 = vmul.f32 %v2346, %v2350
        %v2384 = vld [vmem:[%s9] sm:$0x1]
        %v2386 = vperm.slane %v2384, 0
        %v2388 = vadd.f32 %v2352, %v2386
        %v2389 = vadd.f32 %v2353, %v2386
        %v2390 = vadd.f32 %v2354, %v2386
        %v2391 = vadd.f32 %v2355, %v2386
        %v2392 = vadd.f32 %v2356, %v2386
        %v2393 = vadd.f32 %v2357, %v2386
        %v2394 = vadd.f32 %v2358, %v2386
        %v2395 = vadd.f32 %v2359, %v2386
        %v2396 = vadd.f32 %v2360, %v2386
        %v2397 = vadd.f32 %v2361, %v2386
        %v2398 = vadd.f32 %v2362, %v2386
        %v2399 = vadd.f32 %v2363, %v2386
        %v2400 = vadd.f32 %v2364, %v2386
        %v2401 = vadd.f32 %v2365, %v2386
        %v2402 = vadd.f32 %v2366, %v2386
        %v2403 = vadd.f32 %v2367, %v2386
        %v2404 = vadd.f32 %v2368, %v2386
        %v2405 = vadd.f32 %v2369, %v2386
        %v2406 = vadd.f32 %v2370, %v2386
        %v2407 = vadd.f32 %v2371, %v2386
        %v2408 = vadd.f32 %v2372, %v2386
        %v2409 = vadd.f32 %v2373, %v2386
        %v2410 = vadd.f32 %v2374, %v2386
        %v2411 = vadd.f32 %v2375, %v2386
        %v2412 = vadd.f32 %v2376, %v2386
        %v2413 = vadd.f32 %v2377, %v2386
        %v2414 = vadd.f32 %v2378, %v2386
        %v2415 = vadd.f32 %v2379, %v2386
        %v2416 = vadd.f32 %v2380, %v2386
        %v2417 = vadd.f32 %v2381, %v2386
        %v2418 = vadd.f32 %v2382, %v2386
        %v2419 = vadd.f32 %v2383, %v2386
        %v2420 = vmax.f32 %v2388, 0.0
        %v2421 = vmax.f32 %v2389, 0.0
        %v2422 = vmax.f32 %v2390, 0.0
        %v2423 = vmax.f32 %v2391, 0.0
        %v2424 = vmax.f32 %v2392, 0.0
        %v2425 = vmax.f32 %v2393, 0.0
        %v2426 = vmax.f32 %v2394, 0.0
        %v2427 = vmax.f32 %v2395, 0.0
        %v2428 = vmax.f32 %v2396, 0.0
        %v2429 = vmax.f32 %v2397, 0.0
        %v2430 = vmax.f32 %v2398, 0.0
        %v2431 = vmax.f32 %v2399, 0.0
        %v2432 = vmax.f32 %v2400, 0.0
        %v2433 = vmax.f32 %v2401, 0.0
        %v2434 = vmax.f32 %v2402, 0.0
        %v2435 = vmax.f32 %v2403, 0.0
        %v2436 = vmax.f32 %v2404, 0.0
        %v2437 = vmax.f32 %v2405, 0.0
        %v2438 = vmax.f32 %v2406, 0.0
        %v2439 = vmax.f32 %v2407, 0.0
        %v2440 = vmax.f32 %v2408, 0.0
        %v2441 = vmax.f32 %v2409, 0.0
        %v2442 = vmax.f32 %v2410, 0.0
        %v2443 = vmax.f32 %v2411, 0.0
        %v2444 = vmax.f32 %v2412, 0.0
        %v2445 = vmax.f32 %v2413, 0.0
        %v2446 = vmax.f32 %v2414, 0.0
        %v2447 = vmax.f32 %v2415, 0.0
        %v2448 = vmax.f32 %v2416, 0.0
        %v2449 = vmax.f32 %v2417, 0.0
        %v2450 = vmax.f32 %v2418, 0.0
        %v2451 = vmax.f32 %v2419, 0.0
        %v2452 = vld [vmem:[%s480] sm:$0xf]
        %v2453 = vld [vmem:[%s480 + $0x4] sm:$0xf]
        %v2454 = vld [vmem:[%s480 + $0x8] sm:$0xf]
        %v2455 = vld [vmem:[%s480 + $0xc] sm:$0xf]
        %v2456 = vld [vmem:[%s480 + $0x10] sm:$0xf]
        %v2457 = vld [vmem:[%s480 + $0x14] sm:$0xf]
        %v2458 = vld [vmem:[%s480 + $0x18] sm:$0xf]
        %v2459 = vld [vmem:[%s480 + $0x1c] sm:$0xf]
        %v2460 = vld [vmem:[%s480 + $0x20] sm:$0xf]
        %v2461 = vld [vmem:[%s480 + $0x24] sm:$0xf]
        %v2462 = vld [vmem:[%s480 + $0x28] sm:$0xf]
        %v2463 = vld [vmem:[%s480 + $0x2c] sm:$0xf]
        %v2464 = vld [vmem:[%s480 + $0x30] sm:$0xf]
        %v2465 = vld [vmem:[%s480 + $0x34] sm:$0xf]
        %v2466 = vld [vmem:[%s480 + $0x38] sm:$0xf]
        %v2467 = vld [vmem:[%s480 + $0x3c] sm:$0xf]
        %v2468 = vld [vmem:[%s480 + $0x40] sm:$0xf]
        %v2469 = vld [vmem:[%s480 + $0x44] sm:$0xf]
        %v2470 = vld [vmem:[%s480 + $0x48] sm:$0xf]
        %v2471 = vld [vmem:[%s480 + $0x4c] sm:$0xf]
        %v2472 = vld [vmem:[%s480 + $0x50] sm:$0xf]
        %v2473 = vld [vmem:[%s480 + $0x54] sm:$0xf]
        %v2474 = vld [vmem:[%s480 + $0x58] sm:$0xf]
        %v2475 = vld [vmem:[%s480 + $0x5c] sm:$0xf]
        %v2476 = vld [vmem:[%s480 + $0x60] sm:$0xf]
        %v2477 = vld [vmem:[%s480 + $0x64] sm:$0xf]
        %v2478 = vld [vmem:[%s480 + $0x68] sm:$0xf]
        %v2479 = vld [vmem:[%s480 + $0x6c] sm:$0xf]
        %v2480 = vld [vmem:[%s480 + $0x70] sm:$0xf]
        %v2481 = vld [vmem:[%s480 + $0x74] sm:$0xf]
        %v2482 = vld [vmem:[%s480 + $0x78] sm:$0xf]
        %v2483 = vld [vmem:[%s480 + $0x7c] sm:$0xf]
        %v2484 = vld [vmem:[%s10] sm:$0xff]
        %v2485 = vld [vmem:[%s10 + $0x8] sm:$0xf]
        %v2486 = vld [vmem:[%s10 + $0xc] sm:$0xff]
        %v2487 = vld [vmem:[%s10 + $0x14] sm:$0xf]
        %v2488 = vld [vmem:[%s10 + $0x18] sm:$0xff]
        %v2489 = vld [vmem:[%s10 + $0x20] sm:$0xf]
        %v2490 = vld [vmem:[%s10 + $0x24] sm:$0xff]
        %v2491 = vld [vmem:[%s10 + $0x2c] sm:$0xf]
        %v2492 = vpack.c.bf16 %v1328, %v1327
        %v2493 = vpack.c.bf16 %v1330, %v1329
        %v2494 = vpack.c.bf16 %v1332, %v1331
        %v2495 = vpack.c.bf16 %v1334, %v1333
        %v2496 = vpack.c.bf16 %v1336, %v1335
        %v2497 = vpack.c.bf16 %v1338, %v1337
        %v2498 = vpack.c.bf16 %v1340, %v1339
        %v2499 = vpack.c.bf16 %v1342, %v1341
        %v2500 = vpack.c.bf16 %v1344, %v1343
        %v2501 = vpack.c.bf16 %v1346, %v1345
        %v2502 = vpack.c.bf16 %v1348, %v1347
        %v2503 = vpack.c.bf16 %v1350, %v1349
        %v2504 = vpack.c.bf16 %v1352, %v1351
        %v2505 = vpack.c.bf16 %v1354, %v1353
        %v2506 = vpack.c.bf16 %v1356, %v1355
        %v2507 = vpack.c.bf16 %v1358, %v1357
        %v2508 = vld [vmem:[%s10 + $0x30] sm:$0xff]
        %v2509 = vld [vmem:[%s10 + $0x38] sm:$0xf]
        %v2510 = vld [vmem:[%s10 + $0x3c] sm:$0xff]
        %v2511 = vld [vmem:[%s10 + $0x44] sm:$0xf]
        %v2512 = vld [vmem:[%s10 + $0x48] sm:$0xff]
        %v2513 = vld [vmem:[%s10 + $0x50] sm:$0xf]
        %v2514 = vld [vmem:[%s10 + $0x54] sm:$0xff]
        %v2515 = vld [vmem:[%s10 + $0x5c] sm:$0xf]
        %v2524 = vunpack.c.l.b16 %v2508
        %v2525 = vunpack.c.h.b16 %v2508
        %v2526 = vunpack.c.l.b16 %v2509
        %v2527 = vunpack.c.l.b16 %v2510
        %v2528 = vunpack.c.h.b16 %v2510
        %v2529 = vunpack.c.l.b16 %v2511
        %v2530 = vunpack.c.l.b16 %v2512
        %v2531 = vunpack.c.h.b16 %v2512
        %v2532 = vunpack.c.l.b16 %v2513
        %v2533 = vunpack.c.l.b16 %v2514
        %v2534 = vunpack.c.h.b16 %v2514
        %v2535 = vunpack.c.l.b16 %v2515
        %v2536 = vpack.c.b16 %v2527, %v2524
        %v2537 = vpack.c.b16 %v2528, %v2525
        %v2538 = vpack.c.b16 %v2529, %v2526
        %v2539 = vpack.c.b16 %v2533, %v2530
        %v2540 = vpack.c.b16 %v2534, %v2531
        %v2541 = vpack.c.b16 %v2535, %v2532
        %v2549 = vsel %vm939, %v2492, 0
        %v2552 = vsel %vm939, %v2493, 0
        %v2555 = vsel %vm939, %v2494, 0
        %v2558 = vsel %vm939, %v2495, 0
        %v2561 = vsel %vm939, %v2496, 0
        %v2564 = vsel %vm939, %v2497, 0
        %v2567 = vsel %vm939, %v2498, 0
        %v2570 = vsel %vm939, %v2499, 0
        %v2573 = vsel %vm939, %v2500, 0
        %v2576 = vsel %vm939, %v2501, 0
        %v2579 = vsel %vm939, %v2502, 0
        %v2582 = vsel %vm939, %v2503, 0
        %v2585 = vsel %vm939, %v2504, 0
        %v2588 = vsel %vm939, %v2505, 0
        %v2591 = vsel %vm939, %v2506, 0
        %v2594 = vsel %vm939, %v2507, 0
        %2596 = vmatpush.bf16.msra.mxu0 0
        %2597 = vmatpush.bf16.msra.mxu0 0
        %2598 = vmatpush.bf16.msra.mxu0 0
        %2599 = vmatpush.bf16.msra.mxu0 0
        %2600 = vmatpush.bf16.msra.mxu0 0
        %2601 = vmatpush.bf16.msra.mxu0 0
        %2602 = vmatpush.bf16.msra.mxu0 %v2539
        %2603 = vmatpush.bf16.msra.mxu0 %v2536
        %2604 = vmatmul.bf16.gmra.mxu0 %v2549
        %v2605 = vpop.f32.mrf.mxu0
        %v2606 = vadd.f32 0.0, %v2605
        %v2607 = vpop.f32.mrf.mxu0
        %v2608 = vadd.f32 0.0, %v2607
        %2609 = vmatmul.bf16.gmra.mxu0 %v2552
        %v2610 = vpop.f32.mrf.mxu0
        %v2611 = vadd.f32 0.0, %v2610
        %v2612 = vpop.f32.mrf.mxu0
        %v2613 = vadd.f32 0.0, %v2612
        %2614 = vmatmul.bf16.gmra.mxu0 %v2555
        %v2615 = vpop.f32.mrf.mxu0
        %v2616 = vadd.f32 0.0, %v2615
        %v2617 = vpop.f32.mrf.mxu0
        %v2618 = vadd.f32 0.0, %v2617
        %2619 = vmatmul.bf16.gmra.mxu0 %v2558
        %v2620 = vpop.f32.mrf.mxu0
        %v2621 = vadd.f32 0.0, %v2620
        %v2622 = vpop.f32.mrf.mxu0
        %v2623 = vadd.f32 0.0, %v2622
        %2624 = vmatmul.bf16.gmra.mxu0 %v2561
        %v2625 = vpop.f32.mrf.mxu0
        %v2626 = vadd.f32 0.0, %v2625
        %v2627 = vpop.f32.mrf.mxu0
        %v2628 = vadd.f32 0.0, %v2627
        %2629 = vmatmul.bf16.gmra.mxu0 %v2564
        %v2630 = vpop.f32.mrf.mxu0
        %v2631 = vadd.f32 0.0, %v2630
        %v2632 = vpop.f32.mrf.mxu0
        %v2633 = vadd.f32 0.0, %v2632
        %2634 = vmatmul.bf16.gmra.mxu0 %v2567
        %v2635 = vpop.f32.mrf.mxu0
        %v2636 = vadd.f32 0.0, %v2635
        %v2637 = vpop.f32.mrf.mxu0
        %v2638 = vadd.f32 0.0, %v2637
        %2639 = vmatmul.bf16.gmra.mxu0 %v2570
        %v2640 = vpop.f32.mrf.mxu0
        %v2641 = vadd.f32 0.0, %v2640
        %v2642 = vpop.f32.mrf.mxu0
        %v2643 = vadd.f32 0.0, %v2642
        %2644 = vmatmul.bf16.gmra.mxu0 %v2573
        %v2645 = vpop.f32.mrf.mxu0
        %v2646 = vadd.f32 0.0, %v2645
        %v2647 = vpop.f32.mrf.mxu0
        %v2648 = vadd.f32 0.0, %v2647
        %2649 = vmatmul.bf16.gmra.mxu0 %v2576
        %v2650 = vpop.f32.mrf.mxu0
        %v2651 = vadd.f32 0.0, %v2650
        %v2652 = vpop.f32.mrf.mxu0
        %v2653 = vadd.f32 0.0, %v2652
        %2654 = vmatmul.bf16.gmra.mxu0 %v2579
        %v2655 = vpop.f32.mrf.mxu0
        %v2656 = vadd.f32 0.0, %v2655
        %v2657 = vpop.f32.mrf.mxu0
        %v2658 = vadd.f32 0.0, %v2657
        %2659 = vmatmul.bf16.gmra.mxu0 %v2582
        %v2660 = vpop.f32.mrf.mxu0
        %v2661 = vadd.f32 0.0, %v2660
        %v2662 = vpop.f32.mrf.mxu0
        %v2663 = vadd.f32 0.0, %v2662
        %2664 = vmatmul.bf16.gmra.mxu0 %v2585
        %v2665 = vpop.f32.mrf.mxu0
        %v2666 = vadd.f32 0.0, %v2665
        %v2667 = vpop.f32.mrf.mxu0
        %v2668 = vadd.f32 0.0, %v2667
        %2669 = vmatmul.bf16.gmra.mxu0 %v2588
        %v2670 = vpop.f32.mrf.mxu0
        %v2671 = vadd.f32 0.0, %v2670
        %v2672 = vpop.f32.mrf.mxu0
        %v2673 = vadd.f32 0.0, %v2672
        %2674 = vmatmul.bf16.gmra.mxu0 %v2591
        %v2675 = vpop.f32.mrf.mxu0
        %v2676 = vadd.f32 0.0, %v2675
        %v2677 = vpop.f32.mrf.mxu0
        %v2678 = vadd.f32 0.0, %v2677
        %2679 = vmatmul.bf16.gmra.mxu0 %v2594
        %v2680 = vpop.f32.mrf.mxu0
        %v2681 = vadd.f32 0.0, %v2680
        %v2682 = vpop.f32.mrf.mxu0
        %v2683 = vadd.f32 0.0, %v2682
        %2684 = vdwg.mxu0
        %2685 = vmatpush.bf16.msra.mxu0 0
        %2686 = vmatpush.bf16.msra.mxu0 0
        %2687 = vmatpush.bf16.msra.mxu0 0
        %2688 = vmatpush.bf16.msra.mxu0 0
        %2689 = vmatpush.bf16.msra.mxu0 0
        %2690 = vmatpush.bf16.msra.mxu0 0
        %2691 = vmatpush.bf16.msra.mxu0 %v2540
        %2692 = vmatpush.bf16.msra.mxu0 %v2537
        %2693 = vmatmul.bf16.gmra.mxu0 %v2549
        %v2694 = vpop.f32.mrf.mxu0
        %v2695 = vadd.f32 0.0, %v2694
        %v2696 = vpop.f32.mrf.mxu0
        %v2697 = vadd.f32 0.0, %v2696
        %2698 = vmatmul.bf16.gmra.mxu0 %v2552
        %v2699 = vpop.f32.mrf.mxu0
        %v2700 = vadd.f32 0.0, %v2699
        %v2701 = vpop.f32.mrf.mxu0
        %v2702 = vadd.f32 0.0, %v2701
        %2703 = vmatmul.bf16.gmra.mxu0 %v2555
        %v2704 = vpop.f32.mrf.mxu0
        %v2705 = vadd.f32 0.0, %v2704
        %v2706 = vpop.f32.mrf.mxu0
        %v2707 = vadd.f32 0.0, %v2706
        %2708 = vmatmul.bf16.gmra.mxu0 %v2558
        %v2709 = vpop.f32.mrf.mxu0
        %v2710 = vadd.f32 0.0, %v2709
        %v2711 = vpop.f32.mrf.mxu0
        %v2712 = vadd.f32 0.0, %v2711
        %2713 = vmatmul.bf16.gmra.mxu0 %v2561
        %v2714 = vpop.f32.mrf.mxu0
        %v2715 = vadd.f32 0.0, %v2714
        %v2716 = vpop.f32.mrf.mxu0
        %v2717 = vadd.f32 0.0, %v2716
        %2718 = vmatmul.bf16.gmra.mxu0 %v2564
        %v2719 = vpop.f32.mrf.mxu0
        %v2720 = vadd.f32 0.0, %v2719
        %v2721 = vpop.f32.mrf.mxu0
        %v2722 = vadd.f32 0.0, %v2721
        %2723 = vmatmul.bf16.gmra.mxu0 %v2567
        %v2724 = vpop.f32.mrf.mxu0
        %v2725 = vadd.f32 0.0, %v2724
        %v2726 = vpop.f32.mrf.mxu0
        %v2727 = vadd.f32 0.0, %v2726
        %2728 = vmatmul.bf16.gmra.mxu0 %v2570
        %v2729 = vpop.f32.mrf.mxu0
        %v2730 = vadd.f32 0.0, %v2729
        %v2731 = vpop.f32.mrf.mxu0
        %v2732 = vadd.f32 0.0, %v2731
        %2733 = vmatmul.bf16.gmra.mxu0 %v2573
        %v2734 = vpop.f32.mrf.mxu0
        %v2735 = vadd.f32 0.0, %v2734
        %v2736 = vpop.f32.mrf.mxu0
        %v2737 = vadd.f32 0.0, %v2736
        %2738 = vmatmul.bf16.gmra.mxu0 %v2576
        %v2739 = vpop.f32.mrf.mxu0
        %v2740 = vadd.f32 0.0, %v2739
        %v2741 = vpop.f32.mrf.mxu0
        %v2742 = vadd.f32 0.0, %v2741
        %2743 = vmatmul.bf16.gmra.mxu0 %v2579
        %v2744 = vpop.f32.mrf.mxu0
        %v2745 = vadd.f32 0.0, %v2744
        %v2746 = vpop.f32.mrf.mxu0
        %v2747 = vadd.f32 0.0, %v2746
        %2748 = vmatmul.bf16.gmra.mxu0 %v2582
        %v2749 = vpop.f32.mrf.mxu0
        %v2750 = vadd.f32 0.0, %v2749
        %v2751 = vpop.f32.mrf.mxu0
        %v2752 = vadd.f32 0.0, %v2751
        %2753 = vmatmul.bf16.gmra.mxu0 %v2585
        %v2754 = vpop.f32.mrf.mxu0
        %v2755 = vadd.f32 0.0, %v2754
        %v2756 = vpop.f32.mrf.mxu0
        %v2757 = vadd.f32 0.0, %v2756
        %2758 = vmatmul.bf16.gmra.mxu0 %v2588
        %v2759 = vpop.f32.mrf.mxu0
        %v2760 = vadd.f32 0.0, %v2759
        %v2761 = vpop.f32.mrf.mxu0
        %v2762 = vadd.f32 0.0, %v2761
        %2763 = vmatmul.bf16.gmra.mxu0 %v2591
        %v2764 = vpop.f32.mrf.mxu0
        %v2765 = vadd.f32 0.0, %v2764
        %v2766 = vpop.f32.mrf.mxu0
        %v2767 = vadd.f32 0.0, %v2766
        %2768 = vmatmul.bf16.gmra.mxu0 %v2594
        %v2769 = vpop.f32.mrf.mxu0
        %v2770 = vadd.f32 0.0, %v2769
        %v2771 = vpop.f32.mrf.mxu0
        %v2772 = vadd.f32 0.0, %v2771
        %2773 = vdwg.mxu0
        %2774 = vmatpush.bf16.msra.mxu0 0
        %2775 = vmatpush.bf16.msra.mxu0 0
        %2776 = vmatpush.bf16.msra.mxu0 0
        %2777 = vmatpush.bf16.msra.mxu0 0
        %2778 = vmatpush.bf16.msra.mxu0 0
        %2779 = vmatpush.bf16.msra.mxu0 0
        %2780 = vmatpush.bf16.msra.mxu0 %v2541
        %2781 = vmatpush.bf16.msra.mxu0 %v2538
        %2782 = vmatmul.bf16.gmra.mxu0 %v2549
        %v2783 = vpop.f32.mrf.mxu0
        %v2784 = vadd.f32 0.0, %v2783
        %v2785 = vpop.f32.mrf.mxu0
        %v2786 = vadd.f32 0.0, %v2785
        %2787 = vmatmul.bf16.gmra.mxu0 %v2552
        %v2788 = vpop.f32.mrf.mxu0
        %v2789 = vadd.f32 0.0, %v2788
        %v2790 = vpop.f32.mrf.mxu0
        %v2791 = vadd.f32 0.0, %v2790
        %2792 = vmatmul.bf16.gmra.mxu0 %v2555
        %v2793 = vpop.f32.mrf.mxu0
        %v2794 = vadd.f32 0.0, %v2793
        %v2795 = vpop.f32.mrf.mxu0
        %v2796 = vadd.f32 0.0, %v2795
        %2797 = vmatmul.bf16.gmra.mxu0 %v2558
        %v2798 = vpop.f32.mrf.mxu0
        %v2799 = vadd.f32 0.0, %v2798
        %v2800 = vpop.f32.mrf.mxu0
        %v2801 = vadd.f32 0.0, %v2800
        %2802 = vmatmul.bf16.gmra.mxu0 %v2561
        %v2803 = vpop.f32.mrf.mxu0
        %v2804 = vadd.f32 0.0, %v2803
        %v2805 = vpop.f32.mrf.mxu0
        %v2806 = vadd.f32 0.0, %v2805
        %2807 = vmatmul.bf16.gmra.mxu0 %v2564
        %v2808 = vpop.f32.mrf.mxu0
        %v2809 = vadd.f32 0.0, %v2808
        %v2810 = vpop.f32.mrf.mxu0
        %v2811 = vadd.f32 0.0, %v2810
        %2812 = vmatmul.bf16.gmra.mxu0 %v2567
        %v2813 = vpop.f32.mrf.mxu0
        %v2814 = vadd.f32 0.0, %v2813
        %v2815 = vpop.f32.mrf.mxu0
        %v2816 = vadd.f32 0.0, %v2815
        %2817 = vmatmul.bf16.gmra.mxu0 %v2570
        %v2818 = vpop.f32.mrf.mxu0
        %v2819 = vadd.f32 0.0, %v2818
        %v2820 = vpop.f32.mrf.mxu0
        %v2821 = vadd.f32 0.0, %v2820
        %2822 = vmatmul.bf16.gmra.mxu0 %v2573
        %v2823 = vpop.f32.mrf.mxu0
        %v2824 = vadd.f32 0.0, %v2823
        %v2825 = vpop.f32.mrf.mxu0
        %v2826 = vadd.f32 0.0, %v2825
        %2827 = vmatmul.bf16.gmra.mxu0 %v2576
        %v2828 = vpop.f32.mrf.mxu0
        %v2829 = vadd.f32 0.0, %v2828
        %v2830 = vpop.f32.mrf.mxu0
        %v2831 = vadd.f32 0.0, %v2830
        %2832 = vmatmul.bf16.gmra.mxu0 %v2579
        %v2833 = vpop.f32.mrf.mxu0
        %v2834 = vadd.f32 0.0, %v2833
        %v2835 = vpop.f32.mrf.mxu0
        %v2836 = vadd.f32 0.0, %v2835
        %2837 = vmatmul.bf16.gmra.mxu0 %v2582
        %v2838 = vpop.f32.mrf.mxu0
        %v2839 = vadd.f32 0.0, %v2838
        %v2840 = vpop.f32.mrf.mxu0
        %v2841 = vadd.f32 0.0, %v2840
        %2842 = vmatmul.bf16.gmra.mxu0 %v2585
        %v2843 = vpop.f32.mrf.mxu0
        %v2844 = vadd.f32 0.0, %v2843
        %v2845 = vpop.f32.mrf.mxu0
        %v2846 = vadd.f32 0.0, %v2845
        %2847 = vmatmul.bf16.gmra.mxu0 %v2588
        %v2848 = vpop.f32.mrf.mxu0
        %v2849 = vadd.f32 0.0, %v2848
        %v2850 = vpop.f32.mrf.mxu0
        %v2851 = vadd.f32 0.0, %v2850
        %2852 = vmatmul.bf16.gmra.mxu0 %v2591
        %v2853 = vpop.f32.mrf.mxu0
        %v2854 = vadd.f32 0.0, %v2853
        %v2855 = vpop.f32.mrf.mxu0
        %v2856 = vadd.f32 0.0, %v2855
        %2857 = vmatmul.bf16.gmra.mxu0 %v2594
        %v2858 = vpop.f32.mrf.mxu0
        %v2859 = vadd.f32 0.0, %v2858
        %v2860 = vpop.f32.mrf.mxu0
        %v2861 = vadd.f32 0.0, %v2860
        %2862 = vdwg.mxu0
        %v2895 = vunpack.c.l.b16 %v2452
        %v2896 = vunpack.c.l.b16 %v2453
        %v2897 = vunpack.c.l.b16 %v2454
        %v2898 = vunpack.c.l.b16 %v2455
        %v2899 = vunpack.c.l.b16 %v2456
        %v2900 = vunpack.c.l.b16 %v2457
        %v2901 = vunpack.c.l.b16 %v2458
        %v2902 = vunpack.c.l.b16 %v2459
        %v2903 = vunpack.c.l.b16 %v2460
        %v2904 = vunpack.c.l.b16 %v2461
        %v2905 = vunpack.c.l.b16 %v2462
        %v2906 = vunpack.c.l.b16 %v2463
        %v2907 = vunpack.c.l.b16 %v2464
        %v2908 = vunpack.c.l.b16 %v2465
        %v2909 = vunpack.c.l.b16 %v2466
        %v2910 = vunpack.c.l.b16 %v2467
        %v2911 = vunpack.c.l.b16 %v2468
        %v2912 = vunpack.c.l.b16 %v2469
        %v2913 = vunpack.c.l.b16 %v2470
        %v2914 = vunpack.c.l.b16 %v2471
        %v2915 = vunpack.c.l.b16 %v2472
        %v2916 = vunpack.c.l.b16 %v2473
        %v2917 = vunpack.c.l.b16 %v2474
        %v2918 = vunpack.c.l.b16 %v2475
        %v2919 = vunpack.c.l.b16 %v2476
        %v2920 = vunpack.c.l.b16 %v2477
        %v2921 = vunpack.c.l.b16 %v2478
        %v2922 = vunpack.c.l.b16 %v2479
        %v2923 = vunpack.c.l.b16 %v2480
        %v2924 = vunpack.c.l.b16 %v2481
        %v2925 = vunpack.c.l.b16 %v2482
        %v2926 = vunpack.c.l.b16 %v2483
        %v2927 = vpack.c.b16 %v2896, %v2895
        %v2928 = vpack.c.b16 %v2898, %v2897
        %v2929 = vpack.c.b16 %v2900, %v2899
        %v2930 = vpack.c.b16 %v2902, %v2901
        %v2931 = vpack.c.b16 %v2904, %v2903
        %v2932 = vpack.c.b16 %v2906, %v2905
        %v2933 = vpack.c.b16 %v2908, %v2907
        %v2934 = vpack.c.b16 %v2910, %v2909
        %v2935 = vpack.c.b16 %v2912, %v2911
        %v2936 = vpack.c.b16 %v2914, %v2913
        %v2937 = vpack.c.b16 %v2916, %v2915
        %v2938 = vpack.c.b16 %v2918, %v2917
        %v2939 = vpack.c.b16 %v2920, %v2919
        %v2940 = vpack.c.b16 %v2922, %v2921
        %v2941 = vpack.c.b16 %v2924, %v2923
        %v2942 = vpack.c.b16 %v2926, %v2925
        %v2951 = vunpack.c.l.b16 %v2484
        %v2952 = vunpack.c.h.b16 %v2484
        %v2953 = vunpack.c.l.b16 %v2485
        %v2954 = vunpack.c.l.b16 %v2486
        %v2955 = vunpack.c.h.b16 %v2486
        %v2956 = vunpack.c.l.b16 %v2487
        %v2957 = vunpack.c.l.b16 %v2488
        %v2958 = vunpack.c.h.b16 %v2488
        %v2959 = vunpack.c.l.b16 %v2489
        %v2960 = vunpack.c.l.b16 %v2490
        %v2961 = vunpack.c.h.b16 %v2490
        %v2962 = vunpack.c.l.b16 %v2491
        %v2963 = vpack.c.b16 %v2954, %v2951
        %v2964 = vpack.c.b16 %v2955, %v2952
        %v2965 = vpack.c.b16 %v2956, %v2953
        %v2966 = vpack.c.b16 %v2960, %v2957
        %v2967 = vpack.c.b16 %v2961, %v2958
        %v2968 = vpack.c.b16 %v2962, %v2959
        %v2976 = vsel %vm939, %v2927, 0
        %v2979 = vsel %vm939, %v2928, 0
        %v2982 = vsel %vm939, %v2929, 0
        %v2985 = vsel %vm939, %v2930, 0
        %v2988 = vsel %vm939, %v2931, 0
        %v2991 = vsel %vm939, %v2932, 0
        %v2994 = vsel %vm939, %v2933, 0
        %v2997 = vsel %vm939, %v2934, 0
        %v3000 = vsel %vm939, %v2935, 0
        %v3003 = vsel %vm939, %v2936, 0
        %v3006 = vsel %vm939, %v2937, 0
        %v3009 = vsel %vm939, %v2938, 0
        %v3012 = vsel %vm939, %v2939, 0
        %v3015 = vsel %vm939, %v2940, 0
        %v3018 = vsel %vm939, %v2941, 0
        %v3021 = vsel %vm939, %v2942, 0
        %3023 = vmatpush.bf16.msra.mxu0 0
        %3024 = vmatpush.bf16.msra.mxu0 0
        %3025 = vmatpush.bf16.msra.mxu0 0
        %3026 = vmatpush.bf16.msra.mxu0 0
        %3027 = vmatpush.bf16.msra.mxu0 0
        %3028 = vmatpush.bf16.msra.mxu0 0
        %3029 = vmatpush.bf16.msra.mxu0 %v2966
        %3030 = vmatpush.bf16.msra.mxu0 %v2963
        %3031 = vmatmul.bf16.gmra.mxu0 %v2976
        %v3032 = vpop.f32.mrf.mxu0
        %v3033 = vadd.f32 %v2606, %v3032
        %v3034 = vpop.f32.mrf.mxu0
        %v3035 = vadd.f32 %v2608, %v3034
        %3036 = vmatmul.bf16.gmra.mxu0 %v2979
        %v3037 = vpop.f32.mrf.mxu0
        %v3038 = vadd.f32 %v2611, %v3037
        %v3039 = vpop.f32.mrf.mxu0
        %v3040 = vadd.f32 %v2613, %v3039
        %3041 = vmatmul.bf16.gmra.mxu0 %v2982
        %v3042 = vpop.f32.mrf.mxu0
        %v3043 = vadd.f32 %v2616, %v3042
        %v3044 = vpop.f32.mrf.mxu0
        %v3045 = vadd.f32 %v2618, %v3044
        %3046 = vmatmul.bf16.gmra.mxu0 %v2985
        %v3047 = vpop.f32.mrf.mxu0
        %v3048 = vadd.f32 %v2621, %v3047
        %v3049 = vpop.f32.mrf.mxu0
        %v3050 = vadd.f32 %v2623, %v3049
        %3051 = vmatmul.bf16.gmra.mxu0 %v2988
        %v3052 = vpop.f32.mrf.mxu0
        %v3053 = vadd.f32 %v2626, %v3052
        %v3054 = vpop.f32.mrf.mxu0
        %v3055 = vadd.f32 %v2628, %v3054
        %3056 = vmatmul.bf16.gmra.mxu0 %v2991
        %v3057 = vpop.f32.mrf.mxu0
        %v3058 = vadd.f32 %v2631, %v3057
        %v3059 = vpop.f32.mrf.mxu0
        %v3060 = vadd.f32 %v2633, %v3059
        %3061 = vmatmul.bf16.gmra.mxu0 %v2994
        %v3062 = vpop.f32.mrf.mxu0
        %v3063 = vadd.f32 %v2636, %v3062
        %v3064 = vpop.f32.mrf.mxu0
        %v3065 = vadd.f32 %v2638, %v3064
        %3066 = vmatmul.bf16.gmra.mxu0 %v2997
        %v3067 = vpop.f32.mrf.mxu0
        %v3068 = vadd.f32 %v2641, %v3067
        %v3069 = vpop.f32.mrf.mxu0
        %v3070 = vadd.f32 %v2643, %v3069
        %3071 = vmatmul.bf16.gmra.mxu0 %v3000
        %v3072 = vpop.f32.mrf.mxu0
        %v3073 = vadd.f32 %v2646, %v3072
        %v3074 = vpop.f32.mrf.mxu0
        %v3075 = vadd.f32 %v2648, %v3074
        %3076 = vmatmul.bf16.gmra.mxu0 %v3003
        %v3077 = vpop.f32.mrf.mxu0
        %v3078 = vadd.f32 %v2651, %v3077
        %v3079 = vpop.f32.mrf.mxu0
        %v3080 = vadd.f32 %v2653, %v3079
        %3081 = vmatmul.bf16.gmra.mxu0 %v3006
        %v3082 = vpop.f32.mrf.mxu0
        %v3083 = vadd.f32 %v2656, %v3082
        %v3084 = vpop.f32.mrf.mxu0
        %v3085 = vadd.f32 %v2658, %v3084
        %3086 = vmatmul.bf16.gmra.mxu0 %v3009
        %v3087 = vpop.f32.mrf.mxu0
        %v3088 = vadd.f32 %v2661, %v3087
        %v3089 = vpop.f32.mrf.mxu0
        %v3090 = vadd.f32 %v2663, %v3089
        %3091 = vmatmul.bf16.gmra.mxu0 %v3012
        %v3092 = vpop.f32.mrf.mxu0
        %v3093 = vadd.f32 %v2666, %v3092
        %v3094 = vpop.f32.mrf.mxu0
        %v3095 = vadd.f32 %v2668, %v3094
        %3096 = vmatmul.bf16.gmra.mxu0 %v3015
        %v3097 = vpop.f32.mrf.mxu0
        %v3098 = vadd.f32 %v2671, %v3097
        %v3099 = vpop.f32.mrf.mxu0
        %v3100 = vadd.f32 %v2673, %v3099
        %3101 = vmatmul.bf16.gmra.mxu0 %v3018
        %v3102 = vpop.f32.mrf.mxu0
        %v3103 = vadd.f32 %v2676, %v3102
        %v3104 = vpop.f32.mrf.mxu0
        %v3105 = vadd.f32 %v2678, %v3104
        %3106 = vmatmul.bf16.gmra.mxu0 %v3021
        %v3107 = vpop.f32.mrf.mxu0
        %v3108 = vadd.f32 %v2681, %v3107
        %v3109 = vpop.f32.mrf.mxu0
        %v3110 = vadd.f32 %v2683, %v3109
        %3111 = vdwg.mxu0
        %3112 = vmatpush.bf16.msra.mxu0 0
        %3113 = vmatpush.bf16.msra.mxu0 0
        %3114 = vmatpush.bf16.msra.mxu0 0
        %3115 = vmatpush.bf16.msra.mxu0 0
        %3116 = vmatpush.bf16.msra.mxu0 0
        %3117 = vmatpush.bf16.msra.mxu0 0
        %3118 = vmatpush.bf16.msra.mxu0 %v2967
        %3119 = vmatpush.bf16.msra.mxu0 %v2964
        %3120 = vmatmul.bf16.gmra.mxu0 %v2976
        %v3121 = vpop.f32.mrf.mxu0
        %v3122 = vadd.f32 %v2695, %v3121
        %v3123 = vpop.f32.mrf.mxu0
        %v3124 = vadd.f32 %v2697, %v3123
        %3125 = vmatmul.bf16.gmra.mxu0 %v2979
        %v3126 = vpop.f32.mrf.mxu0
        %v3127 = vadd.f32 %v2700, %v3126
        %v3128 = vpop.f32.mrf.mxu0
        %v3129 = vadd.f32 %v2702, %v3128
        %3130 = vmatmul.bf16.gmra.mxu0 %v2982
        %v3131 = vpop.f32.mrf.mxu0
        %v3132 = vadd.f32 %v2705, %v3131
        %v3133 = vpop.f32.mrf.mxu0
        %v3134 = vadd.f32 %v2707, %v3133
        %3135 = vmatmul.bf16.gmra.mxu0 %v2985
        %v3136 = vpop.f32.mrf.mxu0
        %v3137 = vadd.f32 %v2710, %v3136
        %v3138 = vpop.f32.mrf.mxu0
        %v3139 = vadd.f32 %v2712, %v3138
        %3140 = vmatmul.bf16.gmra.mxu0 %v2988
        %v3141 = vpop.f32.mrf.mxu0
        %v3142 = vadd.f32 %v2715, %v3141
        %v3143 = vpop.f32.mrf.mxu0
        %v3144 = vadd.f32 %v2717, %v3143
        %3145 = vmatmul.bf16.gmra.mxu0 %v2991
        %v3146 = vpop.f32.mrf.mxu0
        %v3147 = vadd.f32 %v2720, %v3146
        %v3148 = vpop.f32.mrf.mxu0
        %v3149 = vadd.f32 %v2722, %v3148
        %3150 = vmatmul.bf16.gmra.mxu0 %v2994
        %v3151 = vpop.f32.mrf.mxu0
        %v3152 = vadd.f32 %v2725, %v3151
        %v3153 = vpop.f32.mrf.mxu0
        %v3154 = vadd.f32 %v2727, %v3153
        %3155 = vmatmul.bf16.gmra.mxu0 %v2997
        %v3156 = vpop.f32.mrf.mxu0
        %v3157 = vadd.f32 %v2730, %v3156
        %v3158 = vpop.f32.mrf.mxu0
        %v3159 = vadd.f32 %v2732, %v3158
        %3160 = vmatmul.bf16.gmra.mxu0 %v3000
        %v3161 = vpop.f32.mrf.mxu0
        %v3162 = vadd.f32 %v2735, %v3161
        %v3163 = vpop.f32.mrf.mxu0
        %v3164 = vadd.f32 %v2737, %v3163
        %3165 = vmatmul.bf16.gmra.mxu0 %v3003
        %v3166 = vpop.f32.mrf.mxu0
        %v3167 = vadd.f32 %v2740, %v3166
        %v3168 = vpop.f32.mrf.mxu0
        %v3169 = vadd.f32 %v2742, %v3168
        %3170 = vmatmul.bf16.gmra.mxu0 %v3006
        %v3171 = vpop.f32.mrf.mxu0
        %v3172 = vadd.f32 %v2745, %v3171
        %v3173 = vpop.f32.mrf.mxu0
        %v3174 = vadd.f32 %v2747, %v3173
        %3175 = vmatmul.bf16.gmra.mxu0 %v3009
        %v3176 = vpop.f32.mrf.mxu0
        %v3177 = vadd.f32 %v2750, %v3176
        %v3178 = vpop.f32.mrf.mxu0
        %v3179 = vadd.f32 %v2752, %v3178
        %3180 = vmatmul.bf16.gmra.mxu0 %v3012
        %v3181 = vpop.f32.mrf.mxu0
        %v3182 = vadd.f32 %v2755, %v3181
        %v3183 = vpop.f32.mrf.mxu0
        %v3184 = vadd.f32 %v2757, %v3183
        %3185 = vmatmul.bf16.gmra.mxu0 %v3015
        %v3186 = vpop.f32.mrf.mxu0
        %v3187 = vadd.f32 %v2760, %v3186
        %v3188 = vpop.f32.mrf.mxu0
        %v3189 = vadd.f32 %v2762, %v3188
        %3190 = vmatmul.bf16.gmra.mxu0 %v3018
        %v3191 = vpop.f32.mrf.mxu0
        %v3192 = vadd.f32 %v2765, %v3191
        %v3193 = vpop.f32.mrf.mxu0
        %v3194 = vadd.f32 %v2767, %v3193
        %3195 = vmatmul.bf16.gmra.mxu0 %v3021
        %v3196 = vpop.f32.mrf.mxu0
        %v3197 = vadd.f32 %v2770, %v3196
        %v3198 = vpop.f32.mrf.mxu0
        %v3199 = vadd.f32 %v2772, %v3198
        %3200 = vdwg.mxu0
        %3201 = vmatpush.bf16.msra.mxu0 0
        %3202 = vmatpush.bf16.msra.mxu0 0
        %3203 = vmatpush.bf16.msra.mxu0 0
        %3204 = vmatpush.bf16.msra.mxu0 0
        %3205 = vmatpush.bf16.msra.mxu0 0
        %3206 = vmatpush.bf16.msra.mxu0 0
        %3207 = vmatpush.bf16.msra.mxu0 %v2968
        %3208 = vmatpush.bf16.msra.mxu0 %v2965
        %3209 = vmatmul.bf16.gmra.mxu0 %v2976
        %v3210 = vpop.f32.mrf.mxu0
        %v3211 = vadd.f32 %v2784, %v3210
        %v3212 = vpop.f32.mrf.mxu0
        %v3213 = vadd.f32 %v2786, %v3212
        %3214 = vmatmul.bf16.gmra.mxu0 %v2979
        %v3215 = vpop.f32.mrf.mxu0
        %v3216 = vadd.f32 %v2789, %v3215
        %v3217 = vpop.f32.mrf.mxu0
        %v3218 = vadd.f32 %v2791, %v3217
        %3219 = vmatmul.bf16.gmra.mxu0 %v2982
        %v3220 = vpop.f32.mrf.mxu0
        %v3221 = vadd.f32 %v2794, %v3220
        %v3222 = vpop.f32.mrf.mxu0
        %v3223 = vadd.f32 %v2796, %v3222
        %3224 = vmatmul.bf16.gmra.mxu0 %v2985
        %v3225 = vpop.f32.mrf.mxu0
        %v3226 = vadd.f32 %v2799, %v3225
        %v3227 = vpop.f32.mrf.mxu0
        %v3228 = vadd.f32 %v2801, %v3227
        %3229 = vmatmul.bf16.gmra.mxu0 %v2988
        %v3230 = vpop.f32.mrf.mxu0
        %v3231 = vadd.f32 %v2804, %v3230
        %v3232 = vpop.f32.mrf.mxu0
        %v3233 = vadd.f32 %v2806, %v3232
        %3234 = vmatmul.bf16.gmra.mxu0 %v2991
        %v3235 = vpop.f32.mrf.mxu0
        %v3236 = vadd.f32 %v2809, %v3235
        %v3237 = vpop.f32.mrf.mxu0
        %v3238 = vadd.f32 %v2811, %v3237
        %3239 = vmatmul.bf16.gmra.mxu0 %v2994
        %v3240 = vpop.f32.mrf.mxu0
        %v3241 = vadd.f32 %v2814, %v3240
        %v3242 = vpop.f32.mrf.mxu0
        %v3243 = vadd.f32 %v2816, %v3242
        %3244 = vmatmul.bf16.gmra.mxu0 %v2997
        %v3245 = vpop.f32.mrf.mxu0
        %v3246 = vadd.f32 %v2819, %v3245
        %v3247 = vpop.f32.mrf.mxu0
        %v3248 = vadd.f32 %v2821, %v3247
        %3249 = vmatmul.bf16.gmra.mxu0 %v3000
        %v3250 = vpop.f32.mrf.mxu0
        %v3251 = vadd.f32 %v2824, %v3250
        %v3252 = vpop.f32.mrf.mxu0
        %v3253 = vadd.f32 %v2826, %v3252
        %3254 = vmatmul.bf16.gmra.mxu0 %v3003
        %v3255 = vpop.f32.mrf.mxu0
        %v3256 = vadd.f32 %v2829, %v3255
        %v3257 = vpop.f32.mrf.mxu0
        %v3258 = vadd.f32 %v2831, %v3257
        %3259 = vmatmul.bf16.gmra.mxu0 %v3006
        %v3260 = vpop.f32.mrf.mxu0
        %v3261 = vadd.f32 %v2834, %v3260
        %v3262 = vpop.f32.mrf.mxu0
        %v3263 = vadd.f32 %v2836, %v3262
        %3264 = vmatmul.bf16.gmra.mxu0 %v3009
        %v3265 = vpop.f32.mrf.mxu0
        %v3266 = vadd.f32 %v2839, %v3265
        %v3267 = vpop.f32.mrf.mxu0
        %v3268 = vadd.f32 %v2841, %v3267
        %3269 = vmatmul.bf16.gmra.mxu0 %v3012
        %v3270 = vpop.f32.mrf.mxu0
        %v3271 = vadd.f32 %v2844, %v3270
        %v3272 = vpop.f32.mrf.mxu0
        %v3273 = vadd.f32 %v2846, %v3272
        %3274 = vmatmul.bf16.gmra.mxu0 %v3015
        %v3275 = vpop.f32.mrf.mxu0
        %v3276 = vadd.f32 %v2849, %v3275
        %v3277 = vpop.f32.mrf.mxu0
        %v3278 = vadd.f32 %v2851, %v3277
        %3279 = vmatmul.bf16.gmra.mxu0 %v3018
        %v3280 = vpop.f32.mrf.mxu0
        %v3281 = vadd.f32 %v2854, %v3280
        %v3282 = vpop.f32.mrf.mxu0
        %v3283 = vadd.f32 %v2856, %v3282
        %3284 = vmatmul.bf16.gmra.mxu0 %v3021
        %v3285 = vpop.f32.mrf.mxu0
        %v3286 = vadd.f32 %v2859, %v3285
        %v3287 = vpop.f32.mrf.mxu0
        %v3288 = vadd.f32 %v2861, %v3287
        %3289 = vdwg.mxu0
        %v3290 = vpack.c.bf16 %v2421, %v2420
        %v3291 = vpack.c.bf16 %v2423, %v2422
        %v3292 = vpack.c.bf16 %v2425, %v2424
        %v3293 = vpack.c.bf16 %v2427, %v2426
        %v3294 = vpack.c.bf16 %v2429, %v2428
        %v3295 = vpack.c.bf16 %v2431, %v2430
        %v3296 = vpack.c.bf16 %v2433, %v2432
        %v3297 = vpack.c.bf16 %v2435, %v2434
        %v3298 = vpack.c.bf16 %v2437, %v2436
        %v3299 = vpack.c.bf16 %v2439, %v2438
        %v3300 = vpack.c.bf16 %v2441, %v2440
        %v3301 = vpack.c.bf16 %v2443, %v2442
        %v3302 = vpack.c.bf16 %v2445, %v2444
        %v3303 = vpack.c.bf16 %v2447, %v2446
        %v3304 = vpack.c.bf16 %v2449, %v2448
        %v3305 = vpack.c.bf16 %v2451, %v2450
        %v3306 = vld [vmem:[%s10 + $0x60] sm:$0xff]
        %v3307 = vld [vmem:[%s10 + $0x68] sm:$0xf]
        %v3308 = vld [vmem:[%s10 + $0x6c] sm:$0xff]
        %v3309 = vld [vmem:[%s10 + $0x74] sm:$0xf]
        %v3310 = vld [vmem:[%s10 + $0x78] sm:$0xff]
        %v3311 = vld [vmem:[%s10 + $0x80] sm:$0xf]
        %v3312 = vld [vmem:[%s10 + $0x84] sm:$0xff]
        %v3313 = vld [vmem:[%s10 + $0x8c] sm:$0xf]
        %v3314 = vld [vmem:[%s10 + $0x90] sm:$0xff]
        %v3315 = vld [vmem:[%s10 + $0x98] sm:$0xf]
        %v3316 = vld [vmem:[%s10 + $0x9c] sm:$0xff]
        %v3317 = vld [vmem:[%s10 + $0xa4] sm:$0xf]
        %v3318 = vld [vmem:[%s10 + $0xa8] sm:$0xff]
        %v3319 = vld [vmem:[%s10 + $0xb0] sm:$0xf]
        %v3320 = vld [vmem:[%s10 + $0xb4] sm:$0xff]
        %v3321 = vld [vmem:[%s10 + $0xbc] sm:$0xf]
        %v3338 = vunpack.c.l.b16 %v3306
        %v3339 = vunpack.c.h.b16 %v3306
        %v3340 = vunpack.c.l.b16 %v3307
        %v3341 = vunpack.c.l.b16 %v3308
        %v3342 = vunpack.c.h.b16 %v3308
        %v3343 = vunpack.c.l.b16 %v3309
        %v3344 = vunpack.c.l.b16 %v3310
        %v3345 = vunpack.c.h.b16 %v3310
        %v3346 = vunpack.c.l.b16 %v3311
        %v3347 = vunpack.c.l.b16 %v3312
        %v3348 = vunpack.c.h.b16 %v3312
        %v3349 = vunpack.c.l.b16 %v3313
        %v3350 = vunpack.c.l.b16 %v3314
        %v3351 = vunpack.c.h.b16 %v3314
        %v3352 = vunpack.c.l.b16 %v3315
        %v3353 = vunpack.c.l.b16 %v3316
        %v3354 = vunpack.c.h.b16 %v3316
        %v3355 = vunpack.c.l.b16 %v3317
        %v3356 = vunpack.c.l.b16 %v3318
        %v3357 = vunpack.c.h.b16 %v3318
        %v3358 = vunpack.c.l.b16 %v3319
        %v3359 = vunpack.c.l.b16 %v3320
        %v3360 = vunpack.c.h.b16 %v3320
        %v3361 = vunpack.c.l.b16 %v3321
        %v3362 = vpack.c.b16 %v3341, %v3338
        %v3363 = vpack.c.b16 %v3342, %v3339
        %v3364 = vpack.c.b16 %v3343, %v3340
        %v3365 = vpack.c.b16 %v3347, %v3344
        %v3366 = vpack.c.b16 %v3348, %v3345
        %v3367 = vpack.c.b16 %v3349, %v3346
        %v3368 = vpack.c.b16 %v3353, %v3350
        %v3369 = vpack.c.b16 %v3354, %v3351
        %v3370 = vpack.c.b16 %v3355, %v3352
        %v3371 = vpack.c.b16 %v3359, %v3356
        %v3372 = vpack.c.b16 %v3360, %v3357
        %v3373 = vpack.c.b16 %v3361, %v3358
        %vm3386 = vcmask 523264
        %v3388 = vsel %vm3386, %v3290, 0
        %v3391 = vsel %vm3386, %v3291, 0
        %v3394 = vsel %vm3386, %v3292, 0
        %v3397 = vsel %vm3386, %v3293, 0
        %v3400 = vsel %vm3386, %v3294, 0
        %v3403 = vsel %vm3386, %v3295, 0
        %v3406 = vsel %vm3386, %v3296, 0
        %v3409 = vsel %vm3386, %v3297, 0
        %v3412 = vsel %vm3386, %v3298, 0
        %v3415 = vsel %vm3386, %v3299, 0
        %v3418 = vsel %vm3386, %v3300, 0
        %v3421 = vsel %vm3386, %v3301, 0
        %v3424 = vsel %vm3386, %v3302, 0
        %v3427 = vsel %vm3386, %v3303, 0
        %v3430 = vsel %vm3386, %v3304, 0
        %v3433 = vsel %vm3386, %v3305, 0
        %3435 = vmatpush.bf16.msra.mxu0 0
        %3436 = vmatpush.bf16.msra.mxu0 0
        %3437 = vmatpush.bf16.msra.mxu0 0
        %3438 = vmatpush.bf16.msra.mxu0 0
        %3439 = vmatpush.bf16.msra.mxu0 %v3371
        %3440 = vmatpush.bf16.msra.mxu0 %v3368
        %3441 = vmatpush.bf16.msra.mxu0 %v3365
        %3442 = vmatpush.bf16.msra.mxu0 %v3362
        %3443 = vmatmul.bf16.gmra.mxu0 %v3388
        %v3444 = vpop.f32.mrf.mxu0
        %v3445 = vadd.f32 0.0, %v3444
        %v3446 = vpop.f32.mrf.mxu0
        %v3447 = vadd.f32 0.0, %v3446
        %3448 = vmatmul.bf16.gmra.mxu0 %v3391
        %v3449 = vpop.f32.mrf.mxu0
        %v3450 = vadd.f32 0.0, %v3449
        %v3451 = vpop.f32.mrf.mxu0
        %v3452 = vadd.f32 0.0, %v3451
        %3453 = vmatmul.bf16.gmra.mxu0 %v3394
        %v3454 = vpop.f32.mrf.mxu0
        %v3455 = vadd.f32 0.0, %v3454
        %v3456 = vpop.f32.mrf.mxu0
        %v3457 = vadd.f32 0.0, %v3456
        %3458 = vmatmul.bf16.gmra.mxu0 %v3397
        %v3459 = vpop.f32.mrf.mxu0
        %v3460 = vadd.f32 0.0, %v3459
        %v3461 = vpop.f32.mrf.mxu0
        %v3462 = vadd.f32 0.0, %v3461
        %3463 = vmatmul.bf16.gmra.mxu0 %v3400
        %v3464 = vpop.f32.mrf.mxu0
        %v3465 = vadd.f32 0.0, %v3464
        %v3466 = vpop.f32.mrf.mxu0
        %v3467 = vadd.f32 0.0, %v3466
        %3468 = vmatmul.bf16.gmra.mxu0 %v3403
        %v3469 = vpop.f32.mrf.mxu0
        %v3470 = vadd.f32 0.0, %v3469
        %v3471 = vpop.f32.mrf.mxu0
        %v3472 = vadd.f32 0.0, %v3471
        %3473 = vmatmul.bf16.gmra.mxu0 %v3406
        %v3474 = vpop.f32.mrf.mxu0
        %v3475 = vadd.f32 0.0, %v3474
        %v3476 = vpop.f32.mrf.mxu0
        %v3477 = vadd.f32 0.0, %v3476
        %3478 = vmatmul.bf16.gmra.mxu0 %v3409
        %v3479 = vpop.f32.mrf.mxu0
        %v3480 = vadd.f32 0.0, %v3479
        %v3481 = vpop.f32.mrf.mxu0
        %v3482 = vadd.f32 0.0, %v3481
        %3483 = vmatmul.bf16.gmra.mxu0 %v3412
        %v3484 = vpop.f32.mrf.mxu0
        %v3485 = vadd.f32 0.0, %v3484
        %v3486 = vpop.f32.mrf.mxu0
        %v3487 = vadd.f32 0.0, %v3486
        %3488 = vmatmul.bf16.gmra.mxu0 %v3415
        %v3489 = vpop.f32.mrf.mxu0
        %v3490 = vadd.f32 0.0, %v3489
        %v3491 = vpop.f32.mrf.mxu0
        %v3492 = vadd.f32 0.0, %v3491
        %3493 = vmatmul.bf16.gmra.mxu0 %v3418
        %v3494 = vpop.f32.mrf.mxu0
        %v3495 = vadd.f32 0.0, %v3494
        %v3496 = vpop.f32.mrf.mxu0
        %v3497 = vadd.f32 0.0, %v3496
        %3498 = vmatmul.bf16.gmra.mxu0 %v3421
        %v3499 = vpop.f32.mrf.mxu0
        %v3500 = vadd.f32 0.0, %v3499
        %v3501 = vpop.f32.mrf.mxu0
        %v3502 = vadd.f32 0.0, %v3501
        %3503 = vmatmul.bf16.gmra.mxu0 %v3424
        %v3504 = vpop.f32.mrf.mxu0
        %v3505 = vadd.f32 0.0, %v3504
        %v3506 = vpop.f32.mrf.mxu0
        %v3507 = vadd.f32 0.0, %v3506
        %3508 = vmatmul.bf16.gmra.mxu0 %v3427
        %v3509 = vpop.f32.mrf.mxu0
        %v3510 = vadd.f32 0.0, %v3509
        %v3511 = vpop.f32.mrf.mxu0
        %v3512 = vadd.f32 0.0, %v3511
        %3513 = vmatmul.bf16.gmra.mxu0 %v3430
        %v3514 = vpop.f32.mrf.mxu0
        %v3515 = vadd.f32 0.0, %v3514
        %v3516 = vpop.f32.mrf.mxu0
        %v3517 = vadd.f32 0.0, %v3516
        %3518 = vmatmul.bf16.gmra.mxu0 %v3433
        %v3519 = vpop.f32.mrf.mxu0
        %v3520 = vadd.f32 0.0, %v3519
        %v3521 = vpop.f32.mrf.mxu0
        %v3522 = vadd.f32 0.0, %v3521
        %3523 = vdwg.mxu0
        %3524 = vmatpush.bf16.msra.mxu0 0
        %3525 = vmatpush.bf16.msra.mxu0 0
        %3526 = vmatpush.bf16.msra.mxu0 0
        %3527 = vmatpush.bf16.msra.mxu0 0
        %3528 = vmatpush.bf16.msra.mxu0 %v3372
        %3529 = vmatpush.bf16.msra.mxu0 %v3369
        %3530 = vmatpush.bf16.msra.mxu0 %v3366
        %3531 = vmatpush.bf16.msra.mxu0 %v3363
        %3532 = vmatmul.bf16.gmra.mxu0 %v3388
        %v3533 = vpop.f32.mrf.mxu0
        %v3534 = vadd.f32 0.0, %v3533
        %v3535 = vpop.f32.mrf.mxu0
        %v3536 = vadd.f32 0.0, %v3535
        %3537 = vmatmul.bf16.gmra.mxu0 %v3391
        %v3538 = vpop.f32.mrf.mxu0
        %v3539 = vadd.f32 0.0, %v3538
        %v3540 = vpop.f32.mrf.mxu0
        %v3541 = vadd.f32 0.0, %v3540
        %3542 = vmatmul.bf16.gmra.mxu0 %v3394
        %v3543 = vpop.f32.mrf.mxu0
        %v3544 = vadd.f32 0.0, %v3543
        %v3545 = vpop.f32.mrf.mxu0
        %v3546 = vadd.f32 0.0, %v3545
        %3547 = vmatmul.bf16.gmra.mxu0 %v3397
        %v3548 = vpop.f32.mrf.mxu0
        %v3549 = vadd.f32 0.0, %v3548
        %v3550 = vpop.f32.mrf.mxu0
        %v3551 = vadd.f32 0.0, %v3550
        %3552 = vmatmul.bf16.gmra.mxu0 %v3400
        %v3553 = vpop.f32.mrf.mxu0
        %v3554 = vadd.f32 0.0, %v3553
        %v3555 = vpop.f32.mrf.mxu0
        %v3556 = vadd.f32 0.0, %v3555
        %3557 = vmatmul.bf16.gmra.mxu0 %v3403
        %v3558 = vpop.f32.mrf.mxu0
        %v3559 = vadd.f32 0.0, %v3558
        %v3560 = vpop.f32.mrf.mxu0
        %v3561 = vadd.f32 0.0, %v3560
        %3562 = vmatmul.bf16.gmra.mxu0 %v3406
        %v3563 = vpop.f32.mrf.mxu0
        %v3564 = vadd.f32 0.0, %v3563
        %v3565 = vpop.f32.mrf.mxu0
        %v3566 = vadd.f32 0.0, %v3565
        %3567 = vmatmul.bf16.gmra.mxu0 %v3409
        %v3568 = vpop.f32.mrf.mxu0
        %v3569 = vadd.f32 0.0, %v3568
        %v3570 = vpop.f32.mrf.mxu0
        %v3571 = vadd.f32 0.0, %v3570
        %3572 = vmatmul.bf16.gmra.mxu0 %v3412
        %v3573 = vpop.f32.mrf.mxu0
        %v3574 = vadd.f32 0.0, %v3573
        %v3575 = vpop.f32.mrf.mxu0
        %v3576 = vadd.f32 0.0, %v3575
        %3577 = vmatmul.bf16.gmra.mxu0 %v3415
        %v3578 = vpop.f32.mrf.mxu0
        %v3579 = vadd.f32 0.0, %v3578
        %v3580 = vpop.f32.mrf.mxu0
        %v3581 = vadd.f32 0.0, %v3580
        %3582 = vmatmul.bf16.gmra.mxu0 %v3418
        %v3583 = vpop.f32.mrf.mxu0
        %v3584 = vadd.f32 0.0, %v3583
        %v3585 = vpop.f32.mrf.mxu0
        %v3586 = vadd.f32 0.0, %v3585
        %3587 = vmatmul.bf16.gmra.mxu0 %v3421
        %v3588 = vpop.f32.mrf.mxu0
        %v3589 = vadd.f32 0.0, %v3588
        %v3590 = vpop.f32.mrf.mxu0
        %v3591 = vadd.f32 0.0, %v3590
        %3592 = vmatmul.bf16.gmra.mxu0 %v3424
        %v3593 = vpop.f32.mrf.mxu0
        %v3594 = vadd.f32 0.0, %v3593
        %v3595 = vpop.f32.mrf.mxu0
        %v3596 = vadd.f32 0.0, %v3595
        %3597 = vmatmul.bf16.gmra.mxu0 %v3427
        %v3598 = vpop.f32.mrf.mxu0
        %v3599 = vadd.f32 0.0, %v3598
        %v3600 = vpop.f32.mrf.mxu0
        %v3601 = vadd.f32 0.0, %v3600
        %3602 = vmatmul.bf16.gmra.mxu0 %v3430
        %v3603 = vpop.f32.mrf.mxu0
        %v3604 = vadd.f32 0.0, %v3603
        %v3605 = vpop.f32.mrf.mxu0
        %v3606 = vadd.f32 0.0, %v3605
        %3607 = vmatmul.bf16.gmra.mxu0 %v3433
        %v3608 = vpop.f32.mrf.mxu0
        %v3609 = vadd.f32 0.0, %v3608
        %v3610 = vpop.f32.mrf.mxu0
        %v3611 = vadd.f32 0.0, %v3610
        %3612 = vdwg.mxu0
        %3613 = vmatpush.bf16.msra.mxu0 0
        %3614 = vmatpush.bf16.msra.mxu0 0
        %3615 = vmatpush.bf16.msra.mxu0 0
        %3616 = vmatpush.bf16.msra.mxu0 0
        %3617 = vmatpush.bf16.msra.mxu0 %v3373
        %3618 = vmatpush.bf16.msra.mxu0 %v3370
        %3619 = vmatpush.bf16.msra.mxu0 %v3367
        %3620 = vmatpush.bf16.msra.mxu0 %v3364
        %3621 = vmatmul.bf16.gmra.mxu0 %v3388
        %v3622 = vpop.f32.mrf.mxu0
        %v3623 = vadd.f32 0.0, %v3622
        %v3624 = vpop.f32.mrf.mxu0
        %v3625 = vadd.f32 0.0, %v3624
        %3626 = vmatmul.bf16.gmra.mxu0 %v3391
        %v3627 = vpop.f32.mrf.mxu0
        %v3628 = vadd.f32 0.0, %v3627
        %v3629 = vpop.f32.mrf.mxu0
        %v3630 = vadd.f32 0.0, %v3629
        %3631 = vmatmul.bf16.gmra.mxu0 %v3394
        %v3632 = vpop.f32.mrf.mxu0
        %v3633 = vadd.f32 0.0, %v3632
        %v3634 = vpop.f32.mrf.mxu0
        %v3635 = vadd.f32 0.0, %v3634
        %3636 = vmatmul.bf16.gmra.mxu0 %v3397
        %v3637 = vpop.f32.mrf.mxu0
        %v3638 = vadd.f32 0.0, %v3637
        %v3639 = vpop.f32.mrf.mxu0
        %v3640 = vadd.f32 0.0, %v3639
        %3641 = vmatmul.bf16.gmra.mxu0 %v3400
        %v3642 = vpop.f32.mrf.mxu0
        %v3643 = vadd.f32 0.0, %v3642
        %v3644 = vpop.f32.mrf.mxu0
        %v3645 = vadd.f32 0.0, %v3644
        %3646 = vmatmul.bf16.gmra.mxu0 %v3403
        %v3647 = vpop.f32.mrf.mxu0
        %v3648 = vadd.f32 0.0, %v3647
        %v3649 = vpop.f32.mrf.mxu0
        %v3650 = vadd.f32 0.0, %v3649
        %3651 = vmatmul.bf16.gmra.mxu0 %v3406
        %v3652 = vpop.f32.mrf.mxu0
        %v3653 = vadd.f32 0.0, %v3652
        %v3654 = vpop.f32.mrf.mxu0
        %v3655 = vadd.f32 0.0, %v3654
        %3656 = vmatmul.bf16.gmra.mxu0 %v3409
        %v3657 = vpop.f32.mrf.mxu0
        %v3658 = vadd.f32 0.0, %v3657
        %v3659 = vpop.f32.mrf.mxu0
        %v3660 = vadd.f32 0.0, %v3659
        %3661 = vmatmul.bf16.gmra.mxu0 %v3412
        %v3662 = vpop.f32.mrf.mxu0
        %v3663 = vadd.f32 0.0, %v3662
        %v3664 = vpop.f32.mrf.mxu0
        %v3665 = vadd.f32 0.0, %v3664
        %3666 = vmatmul.bf16.gmra.mxu0 %v3415
        %v3667 = vpop.f32.mrf.mxu0
        %v3668 = vadd.f32 0.0, %v3667
        %v3669 = vpop.f32.mrf.mxu0
        %v3670 = vadd.f32 0.0, %v3669
        %3671 = vmatmul.bf16.gmra.mxu0 %v3418
        %v3672 = vpop.f32.mrf.mxu0
        %v3673 = vadd.f32 0.0, %v3672
        %v3674 = vpop.f32.mrf.mxu0
        %v3675 = vadd.f32 0.0, %v3674
        %3676 = vmatmul.bf16.gmra.mxu0 %v3421
        %v3677 = vpop.f32.mrf.mxu0
        %v3678 = vadd.f32 0.0, %v3677
        %v3679 = vpop.f32.mrf.mxu0
        %v3680 = vadd.f32 0.0, %v3679
        %3681 = vmatmul.bf16.gmra.mxu0 %v3424
        %v3682 = vpop.f32.mrf.mxu0
        %v3683 = vadd.f32 0.0, %v3682
        %v3684 = vpop.f32.mrf.mxu0
        %v3685 = vadd.f32 0.0, %v3684
        %3686 = vmatmul.bf16.gmra.mxu0 %v3427
        %v3687 = vpop.f32.mrf.mxu0
        %v3688 = vadd.f32 0.0, %v3687
        %v3689 = vpop.f32.mrf.mxu0
        %v3690 = vadd.f32 0.0, %v3689
        %3691 = vmatmul.bf16.gmra.mxu0 %v3430
        %v3692 = vpop.f32.mrf.mxu0
        %v3693 = vadd.f32 0.0, %v3692
        %v3694 = vpop.f32.mrf.mxu0
        %v3695 = vadd.f32 0.0, %v3694
        %3696 = vmatmul.bf16.gmra.mxu0 %v3433
        %v3697 = vpop.f32.mrf.mxu0
        %v3698 = vadd.f32 0.0, %v3697
        %v3699 = vpop.f32.mrf.mxu0
        %v3700 = vadd.f32 0.0, %v3699
        %3701 = vdwg.mxu0
        %v3702 = vadd.f32 %v3033, %v3445
        %v3703 = vadd.f32 %v3122, %v3534
        %v3704 = vadd.f32 %v3211, %v3623
        %v3705 = vadd.f32 %v3035, %v3447
        %v3706 = vadd.f32 %v3124, %v3536
        %v3707 = vadd.f32 %v3213, %v3625
        %v3708 = vadd.f32 %v3038, %v3450
        %v3709 = vadd.f32 %v3127, %v3539
        %v3710 = vadd.f32 %v3216, %v3628
        %v3711 = vadd.f32 %v3040, %v3452
        %v3712 = vadd.f32 %v3129, %v3541
        %v3713 = vadd.f32 %v3218, %v3630
        %v3714 = vadd.f32 %v3043, %v3455
        %v3715 = vadd.f32 %v3132, %v3544
        %v3716 = vadd.f32 %v3221, %v3633
        %v3717 = vadd.f32 %v3045, %v3457
        %v3718 = vadd.f32 %v3134, %v3546
        %v3719 = vadd.f32 %v3223, %v3635
        %v3720 = vadd.f32 %v3048, %v3460
        %v3721 = vadd.f32 %v3137, %v3549
        %v3722 = vadd.f32 %v3226, %v3638
        %v3723 = vadd.f32 %v3050, %v3462
        %v3724 = vadd.f32 %v3139, %v3551
        %v3725 = vadd.f32 %v3228, %v3640
        %v3726 = vadd.f32 %v3053, %v3465
        %v3727 = vadd.f32 %v3142, %v3554
        %v3728 = vadd.f32 %v3231, %v3643
        %v3729 = vadd.f32 %v3055, %v3467
        %v3730 = vadd.f32 %v3144, %v3556
        %v3731 = vadd.f32 %v3233, %v3645
        %v3732 = vadd.f32 %v3058, %v3470
        %v3733 = vadd.f32 %v3147, %v3559
        %v3734 = vadd.f32 %v3236, %v3648
        %v3735 = vadd.f32 %v3060, %v3472
        %v3736 = vadd.f32 %v3149, %v3561
        %v3737 = vadd.f32 %v3238, %v3650
        %v3738 = vadd.f32 %v3063, %v3475
        %v3739 = vadd.f32 %v3152, %v3564
        %v3740 = vadd.f32 %v3241, %v3653
        %v3741 = vadd.f32 %v3065, %v3477
        %v3742 = vadd.f32 %v3154, %v3566
        %v3743 = vadd.f32 %v3243, %v3655
        %v3744 = vadd.f32 %v3068, %v3480
        %v3745 = vadd.f32 %v3157, %v3569
        %v3746 = vadd.f32 %v3246, %v3658
        %v3747 = vadd.f32 %v3070, %v3482
        %v3748 = vadd.f32 %v3159, %v3571
        %v3749 = vadd.f32 %v3248, %v3660
        %v3750 = vadd.f32 %v3073, %v3485
        %v3751 = vadd.f32 %v3162, %v3574
        %v3752 = vadd.f32 %v3251, %v3663
        %v3753 = vadd.f32 %v3075, %v3487
        %v3754 = vadd.f32 %v3164, %v3576
        %v3755 = vadd.f32 %v3253, %v3665
        %v3756 = vadd.f32 %v3078, %v3490
        %v3757 = vadd.f32 %v3167, %v3579
        %v3758 = vadd.f32 %v3256, %v3668
        %v3759 = vadd.f32 %v3080, %v3492
        %v3760 = vadd.f32 %v3169, %v3581
        %v3761 = vadd.f32 %v3258, %v3670
        %v3762 = vadd.f32 %v3083, %v3495
        %v3763 = vadd.f32 %v3172, %v3584
        %v3764 = vadd.f32 %v3261, %v3673
        %v3765 = vadd.f32 %v3085, %v3497
        %v3766 = vadd.f32 %v3174, %v3586
        %v3767 = vadd.f32 %v3263, %v3675
        %v3768 = vadd.f32 %v3088, %v3500
        %v3769 = vadd.f32 %v3177, %v3589
        %v3770 = vadd.f32 %v3266, %v3678
        %v3771 = vadd.f32 %v3090, %v3502
        %v3772 = vadd.f32 %v3179, %v3591
        %v3773 = vadd.f32 %v3268, %v3680
        %v3774 = vadd.f32 %v3093, %v3505
        %v3775 = vadd.f32 %v3182, %v3594
        %v3776 = vadd.f32 %v3271, %v3683
        %v3777 = vadd.f32 %v3095, %v3507
        %v3778 = vadd.f32 %v3184, %v3596
        %v3779 = vadd.f32 %v3273, %v3685
        %v3780 = vadd.f32 %v3098, %v3510
        %v3781 = vadd.f32 %v3187, %v3599
        %v3782 = vadd.f32 %v3276, %v3688
        %v3783 = vadd.f32 %v3100, %v3512
        %v3784 = vadd.f32 %v3189, %v3601
        %v3785 = vadd.f32 %v3278, %v3690
        %v3786 = vadd.f32 %v3103, %v3515
        %v3787 = vadd.f32 %v3192, %v3604
        %v3788 = vadd.f32 %v3281, %v3693
        %v3789 = vadd.f32 %v3105, %v3517
        %v3790 = vadd.f32 %v3194, %v3606
        %v3791 = vadd.f32 %v3283, %v3695
        %v3792 = vadd.f32 %v3108, %v3520
        %v3793 = vadd.f32 %v3197, %v3609
        %v3794 = vadd.f32 %v3286, %v3698
        %v3795 = vadd.f32 %v3110, %v3522
        %v3796 = vadd.f32 %v3199, %v3611
        %v3797 = vadd.f32 %v3288, %v3700
        %v3798 = vld [vmem:[%s11] sm:$0x7]
        %v3800 = vperm.slane %v3798, 0
        %v3801 = vperm.slane %v3798, 1
        %v3802 = vperm.slane %v3798, 2
        %v3806 = vadd.f32 %v3702, %v3800
        %v3807 = vadd.f32 %v3703, %v3801
        %v3808 = vadd.f32 %v3704, %v3802
        %v3809 = vadd.f32 %v3705, %v3800
        %v3810 = vadd.f32 %v3706, %v3801
        %v3811 = vadd.f32 %v3707, %v3802
        %v3812 = vadd.f32 %v3708, %v3800
        %v3813 = vadd.f32 %v3709, %v3801
        %v3814 = vadd.f32 %v3710, %v3802
        %v3815 = vadd.f32 %v3711, %v3800
        %v3816 = vadd.f32 %v3712, %v3801
        %v3817 = vadd.f32 %v3713, %v3802
        %v3818 = vadd.f32 %v3714, %v3800
        %v3819 = vadd.f32 %v3715, %v3801
        %v3820 = vadd.f32 %v3716, %v3802
        %v3821 = vadd.f32 %v3717, %v3800
        %v3822 = vadd.f32 %v3718, %v3801
        %v3823 = vadd.f32 %v3719, %v3802
        %v3824 = vadd.f32 %v3720, %v3800
        %v3825 = vadd.f32 %v3721, %v3801
        %v3826 = vadd.f32 %v3722, %v3802
        %v3827 = vadd.f32 %v3723, %v3800
        %v3828 = vadd.f32 %v3724, %v3801
        %v3829 = vadd.f32 %v3725, %v3802
        %v3830 = vadd.f32 %v3726, %v3800
        %v3831 = vadd.f32 %v3727, %v3801
        %v3832 = vadd.f32 %v3728, %v3802
        %v3833 = vadd.f32 %v3729, %v3800
        %v3834 = vadd.f32 %v3730, %v3801
        %v3835 = vadd.f32 %v3731, %v3802
        %v3836 = vadd.f32 %v3732, %v3800
        %v3837 = vadd.f32 %v3733, %v3801
        %v3838 = vadd.f32 %v3734, %v3802
        %v3839 = vadd.f32 %v3735, %v3800
        %v3840 = vadd.f32 %v3736, %v3801
        %v3841 = vadd.f32 %v3737, %v3802
        %v3842 = vadd.f32 %v3738, %v3800
        %v3843 = vadd.f32 %v3739, %v3801
        %v3844 = vadd.f32 %v3740, %v3802
        %v3845 = vadd.f32 %v3741, %v3800
        %v3846 = vadd.f32 %v3742, %v3801
        %v3847 = vadd.f32 %v3743, %v3802
        %v3848 = vadd.f32 %v3744, %v3800
        %v3849 = vadd.f32 %v3745, %v3801
        %v3850 = vadd.f32 %v3746, %v3802
        %v3851 = vadd.f32 %v3747, %v3800
        %v3852 = vadd.f32 %v3748, %v3801
        %v3853 = vadd.f32 %v3749, %v3802
        %v3854 = vadd.f32 %v3750, %v3800
        %v3855 = vadd.f32 %v3751, %v3801
        %v3856 = vadd.f32 %v3752, %v3802
        %v3857 = vadd.f32 %v3753, %v3800
        %v3858 = vadd.f32 %v3754, %v3801
        %v3859 = vadd.f32 %v3755, %v3802
        %v3860 = vadd.f32 %v3756, %v3800
        %v3861 = vadd.f32 %v3757, %v3801
        %v3862 = vadd.f32 %v3758, %v3802
        %v3863 = vadd.f32 %v3759, %v3800
        %v3864 = vadd.f32 %v3760, %v3801
        %v3865 = vadd.f32 %v3761, %v3802
        %v3866 = vadd.f32 %v3762, %v3800
        %v3867 = vadd.f32 %v3763, %v3801
        %v3868 = vadd.f32 %v3764, %v3802
        %v3869 = vadd.f32 %v3765, %v3800
        %v3870 = vadd.f32 %v3766, %v3801
        %v3871 = vadd.f32 %v3767, %v3802
        %v3872 = vadd.f32 %v3768, %v3800
        %v3873 = vadd.f32 %v3769, %v3801
        %v3874 = vadd.f32 %v3770, %v3802
        %v3875 = vadd.f32 %v3771, %v3800
        %v3876 = vadd.f32 %v3772, %v3801
        %v3877 = vadd.f32 %v3773, %v3802
        %v3878 = vadd.f32 %v3774, %v3800
        %v3879 = vadd.f32 %v3775, %v3801
        %v3880 = vadd.f32 %v3776, %v3802
        %v3881 = vadd.f32 %v3777, %v3800
        %v3882 = vadd.f32 %v3778, %v3801
        %v3883 = vadd.f32 %v3779, %v3802
        %v3884 = vadd.f32 %v3780, %v3800
        %v3885 = vadd.f32 %v3781, %v3801
        %v3886 = vadd.f32 %v3782, %v3802
        %v3887 = vadd.f32 %v3783, %v3800
        %v3888 = vadd.f32 %v3784, %v3801
        %v3889 = vadd.f32 %v3785, %v3802
        %v3890 = vadd.f32 %v3786, %v3800
        %v3891 = vadd.f32 %v3787, %v3801
        %v3892 = vadd.f32 %v3788, %v3802
        %v3893 = vadd.f32 %v3789, %v3800
        %v3894 = vadd.f32 %v3790, %v3801
        %v3895 = vadd.f32 %v3791, %v3802
        %v3896 = vadd.f32 %v3792, %v3800
        %v3897 = vadd.f32 %v3793, %v3801
        %v3898 = vadd.f32 %v3794, %v3802
        %v3899 = vadd.f32 %v3795, %v3800
        %v3900 = vadd.f32 %v3796, %v3801
        %v3901 = vadd.f32 %v3797, %v3802
        %v3902 = vld [vmem:[%s487] sm:$0xff]
        %v3903 = vld [vmem:[%s487 + $0x8] sm:$0xff]
        %v3904 = vld [vmem:[%s487 + $0x10] sm:$0xff]
        %v3905 = vld [vmem:[%s487 + $0x18] sm:$0xff]
        %v3906 = vld [vmem:[%s487 + $0x20] sm:$0xff]
        %v3907 = vld [vmem:[%s487 + $0x28] sm:$0xff]
        %v3908 = vld [vmem:[%s487 + $0x30] sm:$0xff]
        %v3909 = vld [vmem:[%s487 + $0x38] sm:$0xff]
        %v3910 = vld [vmem:[%s487 + $0x40] sm:$0xff]
        %v3911 = vld [vmem:[%s487 + $0x48] sm:$0xff]
        %v3912 = vld [vmem:[%s487 + $0x50] sm:$0xff]
        %v3913 = vld [vmem:[%s487 + $0x58] sm:$0xff]
        %v3914 = vld [vmem:[%s487 + $0x60] sm:$0xff]
        %v3915 = vld [vmem:[%s487 + $0x68] sm:$0xff]
        %v3916 = vld [vmem:[%s487 + $0x70] sm:$0xff]
        %v3917 = vld [vmem:[%s487 + $0x78] sm:$0xff]
        %v3918 = vld [vmem:[%s487 + $0x80] sm:$0xff]
        %v3919 = vld [vmem:[%s487 + $0x88] sm:$0xff]
        %v3920 = vld [vmem:[%s487 + $0x90] sm:$0xff]
        %v3921 = vld [vmem:[%s487 + $0x98] sm:$0xff]
        %v3922 = vld [vmem:[%s487 + $0xa0] sm:$0xff]
        %v3923 = vld [vmem:[%s487 + $0xa8] sm:$0xff]
        %v3924 = vld [vmem:[%s487 + $0xb0] sm:$0xff]
        %v3925 = vld [vmem:[%s487 + $0xb8] sm:$0xff]
        %v3926 = vld [vmem:[%s487 + $0xc0] sm:$0xff]
        %v3927 = vld [vmem:[%s487 + $0xc8] sm:$0xff]
        %v3928 = vld [vmem:[%s487 + $0xd0] sm:$0xff]
        %v3929 = vld [vmem:[%s487 + $0xd8] sm:$0xff]
        %v3930 = vld [vmem:[%s487 + $0xe0] sm:$0xff]
        %v3931 = vld [vmem:[%s487 + $0xe8] sm:$0xff]
        %v3932 = vld [vmem:[%s487 + $0xf0] sm:$0xff]
        %v3933 = vld [vmem:[%s487 + $0xf8] sm:$0xff]
        %v3934 = vld [vmem:[%s487 + $0x100] sm:$0xff]
        %v3935 = vld [vmem:[%s487 + $0x108] sm:$0xff]
        %v3936 = vld [vmem:[%s487 + $0x110] sm:$0xff]
        %v3937 = vld [vmem:[%s487 + $0x118] sm:$0xff]
        %v3938 = vld [vmem:[%s487 + $0x120] sm:$0xff]
        %v3939 = vld [vmem:[%s487 + $0x128] sm:$0xff]
        %v3940 = vld [vmem:[%s487 + $0x130] sm:$0xff]
        %v3941 = vld [vmem:[%s487 + $0x138] sm:$0xff]
        %v3942 = vld [vmem:[%s487 + $0x140] sm:$0xff]
        %v3943 = vld [vmem:[%s487 + $0x148] sm:$0xff]
        %v3944 = vld [vmem:[%s487 + $0x150] sm:$0xff]
        %v3945 = vld [vmem:[%s487 + $0x158] sm:$0xff]
        %v3946 = vld [vmem:[%s487 + $0x160] sm:$0xff]
        %v3947 = vld [vmem:[%s487 + $0x168] sm:$0xff]
        %v3948 = vld [vmem:[%s487 + $0x170] sm:$0xff]
        %v3949 = vld [vmem:[%s487 + $0x178] sm:$0xff]
        %v3950 = vld [vmem:[%s487 + $0x180] sm:$0xff]
        %v3951 = vld [vmem:[%s487 + $0x188] sm:$0xff]
        %v3952 = vld [vmem:[%s487 + $0x190] sm:$0xff]
        %v3953 = vld [vmem:[%s487 + $0x198] sm:$0xff]
        %v3954 = vld [vmem:[%s487 + $0x1a0] sm:$0xff]
        %v3955 = vld [vmem:[%s487 + $0x1a8] sm:$0xff]
        %v3956 = vld [vmem:[%s487 + $0x1b0] sm:$0xff]
        %v3957 = vld [vmem:[%s487 + $0x1b8] sm:$0xff]
        %v3958 = vld [vmem:[%s487 + $0x1c0] sm:$0xff]
        %v3959 = vld [vmem:[%s487 + $0x1c8] sm:$0xff]
        %v3960 = vld [vmem:[%s487 + $0x1d0] sm:$0xff]
        %v3961 = vld [vmem:[%s487 + $0x1d8] sm:$0xff]
        %v3962 = vld [vmem:[%s487 + $0x1e0] sm:$0xff]
        %v3963 = vld [vmem:[%s487 + $0x1e8] sm:$0xff]
        %v3964 = vld [vmem:[%s487 + $0x1f0] sm:$0xff]
        %v3965 = vld [vmem:[%s487 + $0x1f8] sm:$0xff]
        %v3966 = vld [vmem:[%s487 + $0x200] sm:$0xff]
        %v3967 = vld [vmem:[%s487 + $0x208] sm:$0xff]
        %v3968 = vld [vmem:[%s487 + $0x210] sm:$0xff]
        %v3969 = vld [vmem:[%s487 + $0x218] sm:$0xff]
        %v3970 = vld [vmem:[%s487 + $0x220] sm:$0xff]
        %v3971 = vld [vmem:[%s487 + $0x228] sm:$0xff]
        %v3972 = vld [vmem:[%s487 + $0x230] sm:$0xff]
        %v3973 = vld [vmem:[%s487 + $0x238] sm:$0xff]
        %v3974 = vld [vmem:[%s487 + $0x240] sm:$0xff]
        %v3975 = vld [vmem:[%s487 + $0x248] sm:$0xff]
        %v3976 = vld [vmem:[%s487 + $0x250] sm:$0xff]
        %v3977 = vld [vmem:[%s487 + $0x258] sm:$0xff]
        %v3978 = vld [vmem:[%s487 + $0x260] sm:$0xff]
        %v3979 = vld [vmem:[%s487 + $0x268] sm:$0xff]
        %v3980 = vld [vmem:[%s487 + $0x270] sm:$0xff]
        %v3981 = vld [vmem:[%s487 + $0x278] sm:$0xff]
        %v3982 = vld [vmem:[%s487 + $0x280] sm:$0xff]
        %v3983 = vld [vmem:[%s487 + $0x288] sm:$0xff]
        %v3984 = vld [vmem:[%s487 + $0x290] sm:$0xff]
        %v3985 = vld [vmem:[%s487 + $0x298] sm:$0xff]
        %v3986 = vld [vmem:[%s487 + $0x2a0] sm:$0xff]
        %v3987 = vld [vmem:[%s487 + $0x2a8] sm:$0xff]
        %v3988 = vld [vmem:[%s487 + $0x2b0] sm:$0xff]
        %v3989 = vld [vmem:[%s487 + $0x2b8] sm:$0xff]
        %v3990 = vld [vmem:[%s487 + $0x2c0] sm:$0xff]
        %v3991 = vld [vmem:[%s487 + $0x2c8] sm:$0xff]
        %v3992 = vld [vmem:[%s487 + $0x2d0] sm:$0xff]
        %v3993 = vld [vmem:[%s487 + $0x2d8] sm:$0xff]
        %v3994 = vld [vmem:[%s487 + $0x2e0] sm:$0xff]
        %v3995 = vld [vmem:[%s487 + $0x2e8] sm:$0xff]
        %v3996 = vld [vmem:[%s487 + $0x2f0] sm:$0xff]
        %v3997 = vld [vmem:[%s487 + $0x2f8] sm:$0xff]
        %v3998 = vadd.f32 %v3806, %v3902
        %v3999 = vadd.f32 %v3807, %v3903
        %v4000 = vadd.f32 %v3808, %v3904
        %v4001 = vadd.f32 %v3809, %v3905
        %v4002 = vadd.f32 %v3810, %v3906
        %v4003 = vadd.f32 %v3811, %v3907
        %v4004 = vadd.f32 %v3812, %v3908
        %v4005 = vadd.f32 %v3813, %v3909
        %v4006 = vadd.f32 %v3814, %v3910
        %v4007 = vadd.f32 %v3815, %v3911
        %v4008 = vadd.f32 %v3816, %v3912
        %v4009 = vadd.f32 %v3817, %v3913
        %v4010 = vadd.f32 %v3818, %v3914
        %v4011 = vadd.f32 %v3819, %v3915
        %v4012 = vadd.f32 %v3820, %v3916
        %v4013 = vadd.f32 %v3821, %v3917
        %v4014 = vadd.f32 %v3822, %v3918
        %v4015 = vadd.f32 %v3823, %v3919
        %v4016 = vadd.f32 %v3824, %v3920
        %v4017 = vadd.f32 %v3825, %v3921
        %v4018 = vadd.f32 %v3826, %v3922
        %v4019 = vadd.f32 %v3827, %v3923
        %v4020 = vadd.f32 %v3828, %v3924
        %v4021 = vadd.f32 %v3829, %v3925
        %v4022 = vadd.f32 %v3830, %v3926
        %v4023 = vadd.f32 %v3831, %v3927
        %v4024 = vadd.f32 %v3832, %v3928
        %v4025 = vadd.f32 %v3833, %v3929
        %v4026 = vadd.f32 %v3834, %v3930
        %v4027 = vadd.f32 %v3835, %v3931
        %v4028 = vadd.f32 %v3836, %v3932
        %v4029 = vadd.f32 %v3837, %v3933
        %v4030 = vadd.f32 %v3838, %v3934
        %v4031 = vadd.f32 %v3839, %v3935
        %v4032 = vadd.f32 %v3840, %v3936
        %v4033 = vadd.f32 %v3841, %v3937
        %v4034 = vadd.f32 %v3842, %v3938
        %v4035 = vadd.f32 %v3843, %v3939
        %v4036 = vadd.f32 %v3844, %v3940
        %v4037 = vadd.f32 %v3845, %v3941
        %v4038 = vadd.f32 %v3846, %v3942
        %v4039 = vadd.f32 %v3847, %v3943
        %v4040 = vadd.f32 %v3848, %v3944
        %v4041 = vadd.f32 %v3849, %v3945
        %v4042 = vadd.f32 %v3850, %v3946
        %v4043 = vadd.f32 %v3851, %v3947
        %v4044 = vadd.f32 %v3852, %v3948
        %v4045 = vadd.f32 %v3853, %v3949
        %v4046 = vadd.f32 %v3854, %v3950
        %v4047 = vadd.f32 %v3855, %v3951
        %v4048 = vadd.f32 %v3856, %v3952
        %v4049 = vadd.f32 %v3857, %v3953
        %v4050 = vadd.f32 %v3858, %v3954
        %v4051 = vadd.f32 %v3859, %v3955
        %v4052 = vadd.f32 %v3860, %v3956
        %v4053 = vadd.f32 %v3861, %v3957
        %v4054 = vadd.f32 %v3862, %v3958
        %v4055 = vadd.f32 %v3863, %v3959
        %v4056 = vadd.f32 %v3864, %v3960
        %v4057 = vadd.f32 %v3865, %v3961
        %v4058 = vadd.f32 %v3866, %v3962
        %v4059 = vadd.f32 %v3867, %v3963
        %v4060 = vadd.f32 %v3868, %v3964
        %v4061 = vadd.f32 %v3869, %v3965
        %v4062 = vadd.f32 %v3870, %v3966
        %v4063 = vadd.f32 %v3871, %v3967
        %v4064 = vadd.f32 %v3872, %v3968
        %v4065 = vadd.f32 %v3873, %v3969
        %v4066 = vadd.f32 %v3874, %v3970
        %v4067 = vadd.f32 %v3875, %v3971
        %v4068 = vadd.f32 %v3876, %v3972
        %v4069 = vadd.f32 %v3877, %v3973
        %v4070 = vadd.f32 %v3878, %v3974
        %v4071 = vadd.f32 %v3879, %v3975
        %v4072 = vadd.f32 %v3880, %v3976
        %v4073 = vadd.f32 %v3881, %v3977
        %v4074 = vadd.f32 %v3882, %v3978
        %v4075 = vadd.f32 %v3883, %v3979
        %v4076 = vadd.f32 %v3884, %v3980
        %v4077 = vadd.f32 %v3885, %v3981
        %v4078 = vadd.f32 %v3886, %v3982
        %v4079 = vadd.f32 %v3887, %v3983
        %v4080 = vadd.f32 %v3888, %v3984
        %v4081 = vadd.f32 %v3889, %v3985
        %v4082 = vadd.f32 %v3890, %v3986
        %v4083 = vadd.f32 %v3891, %v3987
        %v4084 = vadd.f32 %v3892, %v3988
        %v4085 = vadd.f32 %v3893, %v3989
        %v4086 = vadd.f32 %v3894, %v3990
        %v4087 = vadd.f32 %v3895, %v3991
        %v4088 = vadd.f32 %v3896, %v3992
        %v4089 = vadd.f32 %v3897, %v3993
        %v4090 = vadd.f32 %v3898, %v3994
        %v4091 = vadd.f32 %v3899, %v3995
        %v4092 = vadd.f32 %v3900, %v3996
        %v4093 = vadd.f32 %v3901, %v3997
        %v4094 = vmax.f32 %v3998, 0.0
        %v4095 = vmax.f32 %v3999, 0.0
        %v4096 = vmax.f32 %v4000, 0.0
        %v4097 = vmax.f32 %v4001, 0.0
        %v4098 = vmax.f32 %v4002, 0.0
        %v4099 = vmax.f32 %v4003, 0.0
        %v4100 = vmax.f32 %v4004, 0.0
        %v4101 = vmax.f32 %v4005, 0.0
        %v4102 = vmax.f32 %v4006, 0.0
        %v4103 = vmax.f32 %v4007, 0.0
        %v4104 = vmax.f32 %v4008, 0.0
        %v4105 = vmax.f32 %v4009, 0.0
        %v4106 = vmax.f32 %v4010, 0.0
        %v4107 = vmax.f32 %v4011, 0.0
        %v4108 = vmax.f32 %v4012, 0.0
        %v4109 = vmax.f32 %v4013, 0.0
        %v4110 = vmax.f32 %v4014, 0.0
        %v4111 = vmax.f32 %v4015, 0.0
        %v4112 = vmax.f32 %v4016, 0.0
        %v4113 = vmax.f32 %v4017, 0.0
        %v4114 = vmax.f32 %v4018, 0.0
        %v4115 = vmax.f32 %v4019, 0.0
        %v4116 = vmax.f32 %v4020, 0.0
        %v4117 = vmax.f32 %v4021, 0.0
        %v4118 = vmax.f32 %v4022, 0.0
        %v4119 = vmax.f32 %v4023, 0.0
        %v4120 = vmax.f32 %v4024, 0.0
        %v4121 = vmax.f32 %v4025, 0.0
        %v4122 = vmax.f32 %v4026, 0.0
        %v4123 = vmax.f32 %v4027, 0.0
        %v4124 = vmax.f32 %v4028, 0.0
        %v4125 = vmax.f32 %v4029, 0.0
        %v4126 = vmax.f32 %v4030, 0.0
        %v4127 = vmax.f32 %v4031, 0.0
        %v4128 = vmax.f32 %v4032, 0.0
        %v4129 = vmax.f32 %v4033, 0.0
        %v4130 = vmax.f32 %v4034, 0.0
        %v4131 = vmax.f32 %v4035, 0.0
        %v4132 = vmax.f32 %v4036, 0.0
        %v4133 = vmax.f32 %v4037, 0.0
        %v4134 = vmax.f32 %v4038, 0.0
        %v4135 = vmax.f32 %v4039, 0.0
        %v4136 = vmax.f32 %v4040, 0.0
        %v4137 = vmax.f32 %v4041, 0.0
        %v4138 = vmax.f32 %v4042, 0.0
        %v4139 = vmax.f32 %v4043, 0.0
        %v4140 = vmax.f32 %v4044, 0.0
        %v4141 = vmax.f32 %v4045, 0.0
        %v4142 = vmax.f32 %v4046, 0.0
        %v4143 = vmax.f32 %v4047, 0.0
        %v4144 = vmax.f32 %v4048, 0.0
        %v4145 = vmax.f32 %v4049, 0.0
        %v4146 = vmax.f32 %v4050, 0.0
        %v4147 = vmax.f32 %v4051, 0.0
        %v4148 = vmax.f32 %v4052, 0.0
        %v4149 = vmax.f32 %v4053, 0.0
        %v4150 = vmax.f32 %v4054, 0.0
        %v4151 = vmax.f32 %v4055, 0.0
        %v4152 = vmax.f32 %v4056, 0.0
        %v4153 = vmax.f32 %v4057, 0.0
        %v4154 = vmax.f32 %v4058, 0.0
        %v4155 = vmax.f32 %v4059, 0.0
        %v4156 = vmax.f32 %v4060, 0.0
        %v4157 = vmax.f32 %v4061, 0.0
        %v4158 = vmax.f32 %v4062, 0.0
        %v4159 = vmax.f32 %v4063, 0.0
        %v4160 = vmax.f32 %v4064, 0.0
        %v4161 = vmax.f32 %v4065, 0.0
        %v4162 = vmax.f32 %v4066, 0.0
        %v4163 = vmax.f32 %v4067, 0.0
        %v4164 = vmax.f32 %v4068, 0.0
        %v4165 = vmax.f32 %v4069, 0.0
        %v4166 = vmax.f32 %v4070, 0.0
        %v4167 = vmax.f32 %v4071, 0.0
        %v4168 = vmax.f32 %v4072, 0.0
        %v4169 = vmax.f32 %v4073, 0.0
        %v4170 = vmax.f32 %v4074, 0.0
        %v4171 = vmax.f32 %v4075, 0.0
        %v4172 = vmax.f32 %v4076, 0.0
        %v4173 = vmax.f32 %v4077, 0.0
        %v4174 = vmax.f32 %v4078, 0.0
        %v4175 = vmax.f32 %v4079, 0.0
        %v4176 = vmax.f32 %v4080, 0.0
        %v4177 = vmax.f32 %v4081, 0.0
        %v4178 = vmax.f32 %v4082, 0.0
        %v4179 = vmax.f32 %v4083, 0.0
        %v4180 = vmax.f32 %v4084, 0.0
        %v4181 = vmax.f32 %v4085, 0.0
        %v4182 = vmax.f32 %v4086, 0.0
        %v4183 = vmax.f32 %v4087, 0.0
        %v4184 = vmax.f32 %v4088, 0.0
        %v4185 = vmax.f32 %v4089, 0.0
        %v4186 = vmax.f32 %v4090, 0.0
        %v4187 = vmax.f32 %v4091, 0.0
        %v4188 = vmax.f32 %v4092, 0.0
        %v4189 = vmax.f32 %v4093, 0.0
        %4190 = vst [vmem:[%s461] sm:$0xff] %v4094
        %4191 = vst [vmem:[%s461 + $0x8] sm:$0xff] %v4095
        %4192 = vst.msk [vmem:[%s461 + $0x10] sm:$0xff] %vm3386, %v4096
        %4193 = vst [vmem:[%s461 + $0x18] sm:$0xff] %v4097
        %4194 = vst [vmem:[%s461 + $0x20] sm:$0xff] %v4098
        %4195 = vst.msk [vmem:[%s461 + $0x28] sm:$0xff] %vm3386, %v4099
        %4196 = vst [vmem:[%s461 + $0x30] sm:$0xff] %v4100
        %4197 = vst [vmem:[%s461 + $0x38] sm:$0xff] %v4101
        %4198 = vst.msk [vmem:[%s461 + $0x40] sm:$0xff] %vm3386, %v4102
        %4199 = vst [vmem:[%s461 + $0x48] sm:$0xff] %v4103
        %4200 = vst [vmem:[%s461 + $0x50] sm:$0xff] %v4104
        %4201 = vst.msk [vmem:[%s461 + $0x58] sm:$0xff] %vm3386, %v4105
        %4202 = vst [vmem:[%s461 + $0x60] sm:$0xff] %v4106
        %4203 = vst [vmem:[%s461 + $0x68] sm:$0xff] %v4107
        %4204 = vst.msk [vmem:[%s461 + $0x70] sm:$0xff] %vm3386, %v4108
        %4205 = vst [vmem:[%s461 + $0x78] sm:$0xff] %v4109
        %4206 = vst [vmem:[%s461 + $0x80] sm:$0xff] %v4110
        %4207 = vst.msk [vmem:[%s461 + $0x88] sm:$0xff] %vm3386, %v4111
        %4208 = vst [vmem:[%s461 + $0x90] sm:$0xff] %v4112
        %4209 = vst [vmem:[%s461 + $0x98] sm:$0xff] %v4113
        %4210 = vst.msk [vmem:[%s461 + $0xa0] sm:$0xff] %vm3386, %v4114
        %4211 = vst [vmem:[%s461 + $0xa8] sm:$0xff] %v4115
        %4212 = vst [vmem:[%s461 + $0xb0] sm:$0xff] %v4116
        %4213 = vst.msk [vmem:[%s461 + $0xb8] sm:$0xff] %vm3386, %v4117
        %4214 = vst [vmem:[%s461 + $0xc0] sm:$0xff] %v4118
        %4215 = vst [vmem:[%s461 + $0xc8] sm:$0xff] %v4119
        %4216 = vst.msk [vmem:[%s461 + $0xd0] sm:$0xff] %vm3386, %v4120
        %4217 = vst [vmem:[%s461 + $0xd8] sm:$0xff] %v4121
        %4218 = vst [vmem:[%s461 + $0xe0] sm:$0xff] %v4122
        %4219 = vst.msk [vmem:[%s461 + $0xe8] sm:$0xff] %vm3386, %v4123
        %4220 = vst [vmem:[%s461 + $0xf0] sm:$0xff] %v4124
        %4221 = vst [vmem:[%s461 + $0xf8] sm:$0xff] %v4125
        %4222 = vst.msk [vmem:[%s461 + $0x100] sm:$0xff] %vm3386, %v4126
        %4223 = vst [vmem:[%s461 + $0x108] sm:$0xff] %v4127
        %4224 = vst [vmem:[%s461 + $0x110] sm:$0xff] %v4128
        %4225 = vst.msk [vmem:[%s461 + $0x118] sm:$0xff] %vm3386, %v4129
        %4226 = vst [vmem:[%s461 + $0x120] sm:$0xff] %v4130
        %4227 = vst [vmem:[%s461 + $0x128] sm:$0xff] %v4131
        %4228 = vst.msk [vmem:[%s461 + $0x130] sm:$0xff] %vm3386, %v4132
        %4229 = vst [vmem:[%s461 + $0x138] sm:$0xff] %v4133
        %4230 = vst [vmem:[%s461 + $0x140] sm:$0xff] %v4134
        %4231 = vst.msk [vmem:[%s461 + $0x148] sm:$0xff] %vm3386, %v4135
        %4232 = vst [vmem:[%s461 + $0x150] sm:$0xff] %v4136
        %4233 = vst [vmem:[%s461 + $0x158] sm:$0xff] %v4137
        %4234 = vst.msk [vmem:[%s461 + $0x160] sm:$0xff] %vm3386, %v4138
        %4235 = vst [vmem:[%s461 + $0x168] sm:$0xff] %v4139
        %4236 = vst [vmem:[%s461 + $0x170] sm:$0xff] %v4140
        %4237 = vst.msk [vmem:[%s461 + $0x178] sm:$0xff] %vm3386, %v4141
        %4238 = vst [vmem:[%s461 + $0x180] sm:$0xff] %v4142
        %4239 = vst [vmem:[%s461 + $0x188] sm:$0xff] %v4143
        %4240 = vst.msk [vmem:[%s461 + $0x190] sm:$0xff] %vm3386, %v4144
        %4241 = vst [vmem:[%s461 + $0x198] sm:$0xff] %v4145
        %4242 = vst [vmem:[%s461 + $0x1a0] sm:$0xff] %v4146
        %4243 = vst.msk [vmem:[%s461 + $0x1a8] sm:$0xff] %vm3386, %v4147
        %4244 = vst [vmem:[%s461 + $0x1b0] sm:$0xff] %v4148
        %4245 = vst [vmem:[%s461 + $0x1b8] sm:$0xff] %v4149
        %4246 = vst.msk [vmem:[%s461 + $0x1c0] sm:$0xff] %vm3386, %v4150
        %4247 = vst [vmem:[%s461 + $0x1c8] sm:$0xff] %v4151
        %4248 = vst [vmem:[%s461 + $0x1d0] sm:$0xff] %v4152
        %4249 = vst.msk [vmem:[%s461 + $0x1d8] sm:$0xff] %vm3386, %v4153
        %4250 = vst [vmem:[%s461 + $0x1e0] sm:$0xff] %v4154
        %4251 = vst [vmem:[%s461 + $0x1e8] sm:$0xff] %v4155
        %4252 = vst.msk [vmem:[%s461 + $0x1f0] sm:$0xff] %vm3386, %v4156
        %4253 = vst [vmem:[%s461 + $0x1f8] sm:$0xff] %v4157
        %4254 = vst [vmem:[%s461 + $0x200] sm:$0xff] %v4158
        %4255 = vst.msk [vmem:[%s461 + $0x208] sm:$0xff] %vm3386, %v4159
        %4256 = vst [vmem:[%s461 + $0x210] sm:$0xff] %v4160
        %4257 = vst [vmem:[%s461 + $0x218] sm:$0xff] %v4161
        %4258 = vst.msk [vmem:[%s461 + $0x220] sm:$0xff] %vm3386, %v4162
        %4259 = vst [vmem:[%s461 + $0x228] sm:$0xff] %v4163
        %4260 = vst [vmem:[%s461 + $0x230] sm:$0xff] %v4164
        %4261 = vst.msk [vmem:[%s461 + $0x238] sm:$0xff] %vm3386, %v4165
        %4262 = vst [vmem:[%s461 + $0x240] sm:$0xff] %v4166
        %4263 = vst [vmem:[%s461 + $0x248] sm:$0xff] %v4167
        %4264 = vst.msk [vmem:[%s461 + $0x250] sm:$0xff] %vm3386, %v4168
        %4265 = vst [vmem:[%s461 + $0x258] sm:$0xff] %v4169
        %4266 = vst [vmem:[%s461 + $0x260] sm:$0xff] %v4170
        %4267 = vst.msk [vmem:[%s461 + $0x268] sm:$0xff] %vm3386, %v4171
        %4268 = vst [vmem:[%s461 + $0x270] sm:$0xff] %v4172
        %4269 = vst [vmem:[%s461 + $0x278] sm:$0xff] %v4173
        %4270 = vst.msk [vmem:[%s461 + $0x280] sm:$0xff] %vm3386, %v4174
        %4271 = vst [vmem:[%s461 + $0x288] sm:$0xff] %v4175
        %4272 = vst [vmem:[%s461 + $0x290] sm:$0xff] %v4176
        %4273 = vst.msk [vmem:[%s461 + $0x298] sm:$0xff] %vm3386, %v4177
        %4274 = vst [vmem:[%s461 + $0x2a0] sm:$0xff] %v4178
        %4275 = vst [vmem:[%s461 + $0x2a8] sm:$0xff] %v4179
        %4276 = vst.msk [vmem:[%s461 + $0x2b0] sm:$0xff] %vm3386, %v4180
        %4277 = vst [vmem:[%s461 + $0x2b8] sm:$0xff] %v4181
        %4278 = vst [vmem:[%s461 + $0x2c0] sm:$0xff] %v4182
        %4279 = vst.msk [vmem:[%s461 + $0x2c8] sm:$0xff] %vm3386, %v4183
        %4280 = vst [vmem:[%s461 + $0x2d0] sm:$0xff] %v4184
        %4281 = vst [vmem:[%s461 + $0x2d8] sm:$0xff] %v4185
        %4282 = vst.msk [vmem:[%s461 + $0x2e0] sm:$0xff] %vm3386, %v4186
        %4283 = vst [vmem:[%s461 + $0x2e8] sm:$0xff] %v4187
        %4284 = vst [vmem:[%s461 + $0x2f0] sm:$0xff] %v4188
        %4285 = vst.msk [vmem:[%s461 + $0x2f8] sm:$0xff] %vm3386, %v4189
        %s4286 = sand.u32 %s306, 1
        %s4287 = scalar_lea.sflag [#allocation3], %s4286
        %s4288 = sand.u32 %s306, 1
        %s4289 = smul.addr %s4288, 768
        %s4290 = scalar_lea.vmem [#allocation2], %s4289
        // Predicated region
        $region69: #{_lambda_.5} parent=67 // pred_check
          %p4291 = pneg %p316
        $region70: #{_lambda_.5} parent=67 // pred_check_branch
          %4293 = sbr.rel (%p4291) target = $region72
        $region71: #{_lambda_.5} parent=67 // pred_region
          %s4294 = smul.u32 32, %s26
          %4296 = vsyncadd %s4287, 0
          %s4297 = smul.addr %s4294, 3
          %s4298 = smul.addr %s4297, 8
          %s4299 = scalar_lea.hbm %s12, %s4298
          %s4300 = sshll.u32 %s4290, 4
          %s4301 = int_to_ptr.vmem [resolvable:$true] %s4300
          %s4302 = sshll.u32 %s4299, 4
          %s4303 = int_to_ptr.hbm [resolvable:$true] %s4302
          %4308 = dma.vmem_to_hbm [thread:$0]  %s4301, 12288, %s4303, %s4287, 384, 384, 24
        $region72: #{_lambda_.5} parent=67 // pred_fallthru
          _
      $region68: #{_lambda_.5} parent=5 // pred_fallthru
        _
      %p4309 = scmp.le.s32.totalorder 2, %s21
      // Predicated region
      $region73: #{_lambda_.5} parent=5 // pred_check
        %p4310 = pneg %p4309
      $region74: #{_lambda_.5} parent=5 // pred_check_branch
        %4312 = sbr.rel (%p4310) target = $region76
      $region75: #{_lambda_.5} parent=5 // pred_region
        %s4313 = ssub.s32 %s21, 2
        // Predicated region
        $region77: #{_lambda_.5} parent=75 // pred_check
          %p4314 = pneg %p322
        $region78: #{_lambda_.5} parent=75 // pred_check_branch
          %4316 = sbr.rel (%p4314) target = $region80
        $region79: #{_lambda_.5} parent=75 // pred_region
          %s4317 = sand.u32 %s307, 1
          %s4318 = scalar_lea.sflag [#allocation3], %s4317
          %s4319 = sand.u32 %s307, 1
          %s4320 = smul.addr %s4319, 768
          %s4321 = scalar_lea.vmem [#allocation2], %s4320
          %4323 = dma.done %s4318, 12288
        $region80: #{_lambda_.5} parent=75 // pred_fallthru
          _
      $region76: #{_lambda_.5} parent=5 // pred_fallthru
        _
    $region6: #{_lambda_.5} parent=1 // loop_footer
      %s25 = sadd.s32 1, %s21
    $region7: #{_lambda_.5} parent=1 // loop_footer_branch
      %20 = sbr.rel target = $region3
    $region8: #{_lambda_.5} parent=1 // loop_exit
      _
    %4324 = vsyncpa [#allocation3], 1
    %s4325 = scalar_lea.sflag [#allocation3], 1
    %4326 = vsyncpa %s4325, 1

</llo_original>
